<compile_context>
chip_gen: v7x
topology: tpu7x:2x2x1
jax: 0.10.0
libtpu: 0.0.40
codegen_flags: <defaults>
</compile_context>

<pallas_src>
import jax
import jax.numpy as jnp
from jax.experimental import pallas as pl
from jax.experimental.pallas import tpu as pltpu

EPS = 1e-5  # PyTorch BatchNorm2d default


# ----------------------------------------------------------------------------
# In-kernel helpers
# ----------------------------------------------------------------------------
def _conv3x3_folded(rows, w_ref, block_h, width):
    """3x3 'same' conv of one row-tile via 3 MXU matmuls (K folded to 3*Cin).

    rows:  (block_h+2, W, Cin) f32 value; rows[0]/rows[-1] are the 1-row halo
           (already zeroed at the image boundary).
    w_ref: ref of (3, 3*Cin, Cout) weights; w_ref[ky][kx*Cin+ci, co] is the
           torch weight w[co, ci, ky, kx].
    returns (block_h*W, Cout) f32 accumulator.
    """
    c_out = w_ref.shape[-1]
    # Column shifts implement the kx offsets with zero "padding=1" borders.
    zero_col = jnp.zeros_like(rows[:, :1, :])
    left = jnp.concatenate([zero_col, rows[:, :width - 1, :]], axis=1)   # x-1
    right = jnp.concatenate([rows[:, 1:, :], zero_col], axis=1)          # x+1
    cat = jnp.concatenate([left, rows, right], axis=-1)   # (bh+2, W, 3*Cin)
    c3 = cat.shape[-1]

    acc = jnp.zeros((block_h * width, c_out), jnp.float32)
    for ky in range(3):
        w_k = w_ref[ky]                                    # (3*Cin, Cout)
        patch = cat[ky:ky + block_h].reshape(block_h * width, c3)
        acc = acc + jnp.dot(patch.astype(w_k.dtype), w_k,
                            preferred_element_type=jnp.float32)
    return acc


def _halo_rows(mid, top, bot, grid_j, n_grid):
    """Assemble (bh+2, W, C) rows with halos zeroed at the image boundary."""
    top = top * (grid_j != 0).astype(jnp.float32)
    bot = bot * (grid_j != n_grid - 1).astype(jnp.float32)
    return jnp.concatenate([top, mid, bot], axis=0)


# ----------------------------------------------------------------------------
# Pass A: conv1 + per-tile BN1 partial statistics
# ----------------------------------------------------------------------------
def _conv1_kernel(x_mid_ref, x_top_ref, x_bot_ref, w_ref, y_ref, ps_ref, pq_ref):
    j = pl.program_id(1)
    n_h = pl.num_programs(1)
    _, block_h, width, c_out = y_ref.shape

    rows = _halo_rows(x_mid_ref[0].astype(jnp.float32),
                      x_top_ref[0].astype(jnp.float32),
                      x_bot_ref[0].astype(jnp.float32), j, n_h)
    acc = _conv3x3_folded(rows, w_ref, block_h, width)        # (bh*W, Cout) f32

    y_ref[...] = acc.reshape(1, block_h, width, c_out).astype(y_ref.dtype)
    ps_ref[...] = jnp.sum(acc, axis=0).reshape(1, 1, 1, c_out)
    pq_ref[...] = jnp.sum(acc * acc, axis=0).reshape(1, 1, 1, c_out)


# ----------------------------------------------------------------------------
# Pass B: BN1 + ReLU fused into conv2, + per-tile BN2 partial statistics
# ----------------------------------------------------------------------------
def _bnrelu_conv2_kernel(y_mid_ref, y_top_ref, y_bot_ref, s_ref, b_ref, w_ref,
                         y2_ref, ps_ref, pq_ref):
    j = pl.program_id(1)
    n_h = pl.num_programs(1)
    _, block_h, width, c_out = y2_ref.shape

    scale = s_ref[0]   # (Cin,)
    shift = b_ref[0]

    def bn_relu(v):    # BN1 affine + ReLU applied before conv2's zero padding
        return jnp.maximum(v.astype(jnp.float32) * scale + shift, 0.0)

    rows = _halo_rows(bn_relu(y_mid_ref[0]), bn_relu(y_top_ref[0]),
                      bn_relu(y_bot_ref[0]), j, n_h)
    acc = _conv3x3_folded(rows, w_ref, block_h, width)

    y2_ref[...] = acc.reshape(1, block_h, width, c_out).astype(y2_ref.dtype)
    ps_ref[...] = jnp.sum(acc, axis=0).reshape(1, 1, 1, c_out)
    pq_ref[...] = jnp.sum(acc * acc, axis=0).reshape(1, 1, 1, c_out)


# ----------------------------------------------------------------------------
# Pass C: BN2 + ReLU, lane-dense on the packed (N, H, W*C) view
# ----------------------------------------------------------------------------
def _bnrelu_kernel(y_ref, s_ref, b_ref, o_ref):
    v = y_ref[0].astype(jnp.float32)                    # (bhc, W*C), 128 lanes
    o_ref[...] = jnp.maximum(v * s_ref[...] + b_ref[...], 0.0)[None]


# ----------------------------------------------------------------------------
# Wrapper
# ----------------------------------------------------------------------------
def _bn_fold(psum, psq, gamma, beta, count):
    """Fold per-tile partial sums into per-channel affine scale/shift (f32)."""
    s = jnp.sum(psum, axis=(0, 1, 2))                   # (C,)
    q = jnp.sum(psq, axis=(0, 1, 2))
    mean = s / count
    var = jnp.maximum(q / count - mean * mean, 0.0)     # biased (train-mode) var
    inv = jax.lax.rsqrt(var + EPS)
    scale = gamma * inv
    shift = beta - mean * scale
    return scale, shift


def _pick_block_h(height, target):
    """Largest divisor of height that is <= target (tiles H exactly)."""
    best = 1
    for d in range(1, min(target, height) + 1):
        if height % d == 0:
            best = d
    return best


def _pick_rows_c(height, row_bytes, budget):
    """Row-block for Pass C: full image if it fits, else a multiple-of-8 divisor."""
    if height * row_bytes <= budget:
        return height
    best = None
    d = 8
    while d < height:
        if height % d == 0 and d * row_bytes <= budget:
            best = d
        d += 8
    return best if best is not None else height


def double_conv(x_nchw, params, *, block_h=32,
                matmul_dtype=jnp.float32, act_dtype=jnp.float32):
    """Forward of DoubleConv. x_nchw: (N, Cin, H, W) -> (N, Cout, H, W).

    matmul_dtype=jnp.bfloat16 doubles MXU throughput (f32 accumulation kept);
    act_dtype=jnp.bfloat16 halves inter-pass HBM traffic. Defaults stay f32 to
    match the f32 PyTorch reference bit-for-bit-ish.
    """
    w1, g1, b1, w2, g2, b2 = params
    n, c_in, height, width = x_nchw.shape
    c = w1.shape[-1]
    bh = _pick_block_h(height, block_h)
    hb = height // bh
    count = float(n * height * width)

    x = jnp.transpose(x_nchw, (0, 2, 3, 1)).astype(jnp.float32)   # NCHW -> NHWC

    # Fold weights per stencil row: (9, Cin, Cout) -> (3, 3*Cin, Cout).
    w1f = w1.reshape(3, 3 * c_in, c).astype(matmul_dtype)
    w2f = w2.reshape(3, 3 * c, c).astype(matmul_dtype)

    cparams = pltpu.CompilerParams(
        dimension_semantics=("parallel", "parallel"),
        vmem_limit_bytes=48 * 1024 * 1024)

    stat_spec = pl.BlockSpec((1, 1, 1, c), lambda i, j: (i, j, 0, 0))
    stat_shape = jax.ShapeDtypeStruct((n, hb, 1, c), jnp.float32)
    act_spec = pl.BlockSpec((1, bh, width, c), lambda i, j: (i, j, 0, 0))
    act_shape = jax.ShapeDtypeStruct((n, height, width, c), act_dtype)

    def halo_specs(chan):
        # Same array passed three times: interior rows + clamped 1-row halos.
        mid = pl.BlockSpec((1, bh, width, chan), lambda i, j: (i, j, 0, 0))
        top = pl.BlockSpec((1, 1, width, chan),
                           lambda i, j: (i, jnp.maximum(j * bh - 1, 0), 0, 0))
        bot = pl.BlockSpec((1, 1, width, chan),
                           lambda i, j: (i, jnp.minimum(j * bh + bh, height - 1), 0, 0))
        return mid, top, bot

    w1_spec = pl.BlockSpec((3, 3 * c_in, c), lambda i, j: (0, 0, 0))
    w2_spec = pl.BlockSpec((3, 3 * c, c), lambda i, j: (0, 0, 0))

    # ---- pass A: conv1 + BN1 partial stats ---------------------------------
    mid1, top1, bot1 = halo_specs(c_in)
    y1, ps1, pq1 = pl.pallas_call(
        _conv1_kernel,
        grid=(n, hb),
        in_specs=[mid1, top1, bot1, w1_spec],
        out_specs=[act_spec, stat_spec, stat_spec],
        out_shape=[act_shape, stat_shape, stat_shape],
        compiler_params=cparams,
    )(x, x, x, w1f)

    scale1, shift1 = _bn_fold(ps1, pq1, g1, b1, count)

    # ---- pass B: BN1+ReLU fused into conv2 + BN2 partial stats -------------
    mid2, top2, bot2 = halo_specs(c)
    y2, ps2, pq2 = pl.pallas_call(
        _bnrelu_conv2_kernel,
        grid=(n, hb),
        in_specs=[mid2, top2, bot2,
                  pl.BlockSpec((1, c), lambda i, j: (0, 0)),
                  pl.BlockSpec((1, c), lambda i, j: (0, 0)),
                  w2_spec],
        out_specs=[act_spec, stat_spec, stat_spec],
        out_shape=[act_shape, stat_shape, stat_shape],
        compiler_params=cparams,
    )(y1, y1, y1, scale1.reshape(1, c), shift1.reshape(1, c), w2f)

    scale2, shift2 = _bn_fold(ps2, pq2, g2, b2, count)

    # ---- pass C: BN2 + ReLU, large lane-dense packed blocks ------------------
    wc = width * c
    bhc = _pick_rows_c(height, wc * jnp.dtype(act_dtype).itemsize, 4 * 1024 * 1024)
    hbc = height // bhc
    y2_packed = y2.reshape(n, height, wc)        # free view of the same bytes
    s2p = jnp.tile(scale2, width).reshape(1, wc)
    b2p = jnp.tile(shift2, width).reshape(1, wc)
    out_packed = pl.pallas_call(
        _bnrelu_kernel,
        grid=(n, hbc),
        in_specs=[
            pl.BlockSpec((1, bhc, wc), lambda i, j: (i, j, 0)),
            pl.BlockSpec((1, wc), lambda i, j: (0, 0)),
            pl.BlockSpec((1, wc), lambda i, j: (0, 0)),
        ],
        out_specs=pl.BlockSpec((1, bhc, wc), lambda i, j: (i, j, 0)),
        out_shape=jax.ShapeDtypeStruct((n, height, wc), jnp.float32),
        compiler_params=cparams,
    )(y2_packed, s2p, b2p)

    out = out_packed.reshape(n, height, width, c)
    return jnp.transpose(out, (0, 3, 1, 2))                       # NHWC -> NCHW


def init_params(key, in_channels, out_channels):
    """Deterministic synthetic params (conv weights stored as (9, Cin, Cout))."""
    k1, k2 = jax.random.split(key)
    fan1 = in_channels * 9
    fan2 = out_channels * 9
    w1 = jax.random.normal(k1, (9, in_channels, out_channels), jnp.float32) * (2.0 / fan1) ** 0.5
    w2 = jax.random.normal(k2, (9, out_channels, out_channels), jnp.float32) * (2.0 / fan2) ** 0.5
    g1 = jnp.ones((out_channels,), jnp.float32)   # BN weight init = 1
    b1 = jnp.zeros((out_channels,), jnp.float32)  # BN bias init = 0
    g2 = jnp.ones((out_channels,), jnp.float32)
    b2 = jnp.zeros((out_channels,), jnp.float32)
    return (w1, g1, b1, w2, g2, b2)


def _reference_double_conv(x_nchw, params):
    """Pure-JAX reference (train-mode BN), for a numerical self-check."""
    w1, g1, b1, w2, g2, b2 = params
    x = jnp.transpose(x_nchw, (0, 2, 3, 1)).astype(jnp.float32)

    def conv(v, w9):
        w = w9.reshape(3, 3, w9.shape[1], w9.shape[2])           # HWIO
        return jax.lax.conv_general_dilated(
            v, w, (1, 1), "SAME",
            dimension_numbers=("NHWC", "HWIO", "NHWC"),
            precision=jax.lax.Precision.HIGHEST)

    def bn_relu(v, g, b):
        mean = jnp.mean(v, axis=(0, 1, 2))
        var = jnp.mean((v - mean) ** 2, axis=(0, 1, 2))           # biased
        return jnp.maximum((v - mean) * jax.lax.rsqrt(var + EPS) * g + b, 0.0)

    y = bn_relu(conv(x, w1), g1, b1)
    y = bn_relu(conv(y, w2), g2, b2)
    return jnp.transpose(y, (0, 3, 1, 2))


if __name__ == "__main__":
    key = jax.random.PRNGKey(0)
    kx, kp = jax.random.split(key)

    N, Cin, H, W, Cout = 2, 4, 16, 16, 8
    x = jax.random.normal(kx, (N, Cin, H, W), jnp.float32)
    params = init_params(kp, Cin, Cout)

    out = jax.jit(double_conv)(x, params)
    out = jax.block_until_ready(out)

    assert out.shape == (N, Cout, H, W), out.shape
    assert out.dtype == jnp.float32
    assert bool(jnp.all(out >= 0.0))          # ReLU output is non-negative
    assert bool(jnp.all(jnp.isfinite(out)))

    ref = _reference_double_conv(x, params)
    max_err = float(jnp.max(jnp.abs(out - ref)))
    assert max_err < 5e-2, max_err            # loose: MXU matmul precision

    print("KERNEL_OK")
</pallas_src>

<mosaic_0001>
module attributes {stable_mosaic.version = 11 : i64} {
  func.func @_conv1_kernel(%arg0: i32, %arg1: i32, %arg2: memref<1x16x16x4xf32, #tpu.memory_space<vmem>>, %arg3: memref<1x1x16x4xf32, #tpu.memory_space<vmem>>, %arg4: memref<1x1x16x4xf32, #tpu.memory_space<vmem>>, %arg5: memref<3x12x8xf32, #tpu.memory_space<vmem>>, %arg6: memref<1x16x16x8xf32, #tpu.memory_space<vmem>>, %arg7: memref<1x1x1x8xf32, #tpu.memory_space<vmem>>, %arg8: memref<1x1x1x8xf32, #tpu.memory_space<vmem>>) attributes {dimension_semantics = [#tpu.dimension_semantics<parallel>, #tpu.dimension_semantics<parallel>], iteration_bounds = array<i64: 2, 1>, scalar_prefetch = 0 : i64, scratch_operands = 0 : i64, tpu.core_type = #tpu.core_type<tc>, window_params = [{transform_indices = @transform_0, window_bounds = array<i64: 1, 16, 16, 4>}, {transform_indices = @transform_1, window_bounds = array<i64: 1, 1, 16, 4>}, {transform_indices = @transform_2, window_bounds = array<i64: 1, 1, 16, 4>}, {pipeline_mode = #tpu.pipeline_mode<synchronous>, transform_indices = @transform_3, window_bounds = array<i64: 3, 12, 8>}, {transform_indices = @transform_4, window_bounds = array<i64: 1, 16, 16, 8>}, {transform_indices = @transform_5, window_bounds = array<i64: 1, 1, 1, 8>}, {transform_indices = @transform_6, window_bounds = array<i64: 1, 1, 1, 8>}]} {
    %c0 = arith.constant 0 : index
    %c0_0 = arith.constant 0 : index
    %c0_1 = arith.constant 0 : index
    %c0_2 = arith.constant 0 : index
    %0 = vector.load %arg2[%c0, %c0_0, %c0_1, %c0_2] : memref<1x16x16x4xf32, #tpu.memory_space<vmem>>, vector<1x16x16x4xf32>
    %1 = vector.shape_cast %0 : vector<1x16x16x4xf32> to vector<16x16x4xf32>
    %c0_3 = arith.constant 0 : index
    %c0_4 = arith.constant 0 : index
    %c0_5 = arith.constant 0 : index
    %c0_6 = arith.constant 0 : index
    %2 = vector.load %arg3[%c0_3, %c0_4, %c0_5, %c0_6] : memref<1x1x16x4xf32, #tpu.memory_space<vmem>>, vector<1x1x16x4xf32>
    %3 = vector.shape_cast %2 : vector<1x1x16x4xf32> to vector<1x16x4xf32>
    %c0_7 = arith.constant 0 : index
    %c0_8 = arith.constant 0 : index
    %c0_9 = arith.constant 0 : index
    %c0_10 = arith.constant 0 : index
    %4 = vector.load %arg4[%c0_7, %c0_8, %c0_9, %c0_10] : memref<1x1x16x4xf32, #tpu.memory_space<vmem>>, vector<1x1x16x4xf32>
    %5 = vector.shape_cast %4 : vector<1x1x16x4xf32> to vector<1x16x4xf32>
    %c0_i32 = arith.constant 0 : i32
    %6 = arith.cmpi ne, %arg1, %c0_i32 : i32
    %7 = arith.extui %6 : i1 to i32
    %8 = arith.sitofp %7 : i32 to f32
    %9 = vector.broadcast %8 : f32 to vector<1x16x4xf32>
    %10 = arith.mulf %3, %9 : vector<1x16x4xf32>
    %c0_i32_11 = arith.constant 0 : i32
    %11 = arith.cmpi ne, %arg1, %c0_i32_11 : i32
    %12 = arith.extui %11 : i1 to i32
    %13 = arith.sitofp %12 : i32 to f32
    %14 = vector.broadcast %13 : f32 to vector<1x16x4xf32>
    %15 = arith.mulf %5, %14 : vector<1x16x4xf32>
    %16 = tpu.concatenate %10, %1, %15 in 0 : vector<1x16x4xf32>, vector<16x16x4xf32>, vector<1x16x4xf32> -> vector<18x16x4xf32>
    %cst = arith.constant 0.000000e+00 : f32
    %17 = vector.broadcast %cst : f32 to vector<18x1x4xf32>
    %18 = vector.extract_strided_slice %16 {offsets = [0, 0, 0], sizes = [18, 15, 4], strides = [1, 1, 1]} : vector<18x16x4xf32> to vector<18x15x4xf32>
    %19 = tpu.concatenate %17, %18 in 1 : vector<18x1x4xf32>, vector<18x15x4xf32> -> vector<18x16x4xf32>
    %20 = vector.extract_strided_slice %16 {offsets = [0, 1, 0], sizes = [18, 15, 4], strides = [1, 1, 1]} : vector<18x16x4xf32> to vector<18x15x4xf32>
    %21 = tpu.concatenate %20, %17 in 1 : vector<18x15x4xf32>, vector<18x1x4xf32> -> vector<18x16x4xf32>
    %22 = tpu.concatenate %19, %16, %21 in 2 : vector<18x16x4xf32>, vector<18x16x4xf32>, vector<18x16x4xf32> -> vector<18x16x12xf32>
    %cst_12 = arith.constant 0.000000e+00 : f32
    %23 = vector.broadcast %cst_12 : f32 to vector<256x8xf32>
    %c0_13 = arith.constant 0 : index
    %c0_14 = arith.constant 0 : index
    %c0_15 = arith.constant 0 : index
    %24 = vector.load %arg5[%c0_13, %c0_14, %c0_15] : memref<3x12x8xf32, #tpu.memory_space<vmem>>, vector<1x12x8xf32>
    %25 = vector.shape_cast %24 : vector<1x12x8xf32> to vector<12x8xf32>
    %26 = vector.extract_strided_slice %22 {offsets = [0, 0, 0], sizes = [16, 16, 12], strides = [1, 1, 1]} : vector<18x16x12xf32> to vector<16x16x12xf32>
    %27 = vector.shape_cast %26 : vector<16x16x12xf32> to vector<256x12xf32>
    %cst_16 = arith.constant dense<0.000000e+00> : vector<256x8xf32>
    %28 = tpu.matmul %27, %25, %cst_16 {dimension_numbers = #tpu.dot_dimension_numbers<[1], [0], [0], [1], [0, 0, 1, 1], [], []>} : vector<256x12xf32>, vector<12x8xf32>, vector<256x8xf32> -> vector<256x8xf32>
    %29 = arith.addf %23, %28 : vector<256x8xf32>
    %c1 = arith.constant 1 : index
    %c0_17 = arith.constant 0 : index
    %c0_18 = arith.constant 0 : index
    %30 = vector.load %arg5[%c1, %c0_17, %c0_18] : memref<3x12x8xf32, #tpu.memory_space<vmem>>, vector<1x12x8xf32>
    %31 = vector.shape_cast %30 : vector<1x12x8xf32> to vector<12x8xf32>
    %32 = vector.extract_strided_slice %22 {offsets = [1, 0, 0], sizes = [16, 16, 12], strides = [1, 1, 1]} : vector<18x16x12xf32> to vector<16x16x12xf32>
    %33 = vector.shape_cast %32 : vector<16x16x12xf32> to vector<256x12xf32>
    %cst_19 = arith.constant dense<0.000000e+00> : vector<256x8xf32>
    %34 = tpu.matmul %33, %31, %cst_19 {dimension_numbers = #tpu.dot_dimension_numbers<[1], [0], [0], [1], [0, 0, 1, 1], [], []>} : vector<256x12xf32>, vector<12x8xf32>, vector<256x8xf32> -> vector<256x8xf32>
    %35 = arith.addf %29, %34 : vector<256x8xf32>
    %c2 = arith.constant 2 : index
    %c0_20 = arith.constant 0 : index
    %c0_21 = arith.constant 0 : index
    %36 = vector.load %arg5[%c2, %c0_20, %c0_21] : memref<3x12x8xf32, #tpu.memory_space<vmem>>, vector<1x12x8xf32>
    %37 = vector.shape_cast %36 : vector<1x12x8xf32> to vector<12x8xf32>
    %38 = vector.extract_strided_slice %22 {offsets = [2, 0, 0], sizes = [16, 16, 12], strides = [1, 1, 1]} : vector<18x16x12xf32> to vector<16x16x12xf32>
    %39 = vector.shape_cast %38 : vector<16x16x12xf32> to vector<256x12xf32>
    %cst_22 = arith.constant dense<0.000000e+00> : vector<256x8xf32>
    %40 = tpu.matmul %39, %37, %cst_22 {dimension_numbers = #tpu.dot_dimension_numbers<[1], [0], [0], [1], [0, 0, 1, 1], [], []>} : vector<256x12xf32>, vector<12x8xf32>, vector<256x8xf32> -> vector<256x8xf32>
    %41 = arith.addf %35, %40 : vector<256x8xf32>
    %42 = vector.shape_cast %41 : vector<256x8xf32> to vector<1x16x16x8xf32>
    %c0_23 = arith.constant 0 : index
    %c0_24 = arith.constant 0 : index
    %c0_25 = arith.constant 0 : index
    %c0_26 = arith.constant 0 : index
    %43 = vector.load %arg6[%c0_23, %c0_24, %c0_25, %c0_26] : memref<1x16x16x8xf32, #tpu.memory_space<vmem>>, vector<1x16x16x8xf32>
    tpu.vector_store %arg6[%c0_23, %c0_24, %c0_25, %c0_26], %42 {strides = array<i32>} : memref<1x16x16x8xf32, #tpu.memory_space<vmem>>, vector<1x16x16x8xf32>,
    %cst_27 = arith.constant dense<0.000000e+00> : vector<8xf32>
    %44 = vector.multi_reduction <add>, %41, %cst_27 [0] : vector<256x8xf32> to vector<8xf32>
    %45 = vector.shape_cast %44 : vector<8xf32> to vector<1x1x1x8xf32>
    %c0_28 = arith.constant 0 : index
    %c0_29 = arith.constant 0 : index
    %c0_30 = arith.constant 0 : index
    %c0_31 = arith.constant 0 : index
    %46 = vector.load %arg7[%c0_28, %c0_29, %c0_30, %c0_31] : memref<1x1x1x8xf32, #tpu.memory_space<vmem>>, vector<1x1x1x8xf32>
    tpu.vector_store %arg7[%c0_28, %c0_29, %c0_30, %c0_31], %45 {strides = array<i32>} : memref<1x1x1x8xf32, #tpu.memory_space<vmem>>, vector<1x1x1x8xf32>,
    %47 = arith.mulf %41, %41 : vector<256x8xf32>
    %cst_32 = arith.constant dense<0.000000e+00> : vector<8xf32>
    %48 = vector.multi_reduction <add>, %47, %cst_32 [0] : vector<256x8xf32> to vector<8xf32>
    %49 = vector.shape_cast %48 : vector<8xf32> to vector<1x1x1x8xf32>
    %c0_33 = arith.constant 0 : index
    %c0_34 = arith.constant 0 : index
    %c0_35 = arith.constant 0 : index
    %c0_36 = arith.constant 0 : index
    %50 = vector.load %arg8[%c0_33, %c0_34, %c0_35, %c0_36] : memref<1x1x1x8xf32, #tpu.memory_space<vmem>>, vector<1x1x1x8xf32>
    tpu.vector_store %arg8[%c0_33, %c0_34, %c0_35, %c0_36], %49 {strides = array<i32>} : memref<1x1x1x8xf32, #tpu.memory_space<vmem>>, vector<1x1x1x8xf32>,
    return
  }
  func.func @transform_0(%arg0: i32, %arg1: i32) -> (i32, i32, i32, i32) {
    %c0_i32 = arith.constant 0 : i32
    %c0_i32_0 = arith.constant 0 : i32
    %c0_i32_1 = arith.constant 0 : i32
    return %arg0, %arg1, %c0_i32, %c0_i32_0 : i32, i32, i32, i32
  }
  func.func @transform_1(%arg0: i32, %arg1: i32) -> (i32, i32, i32, i32) {
    %c16_i32 = arith.constant 16 : i32
    %0 = arith.muli %arg1, %c16_i32 : i32
    %c1_i32 = arith.constant 1 : i32
    %1 = arith.subi %0, %c1_i32 : i32
    %c0_i32 = arith.constant 0 : i32
    %2 = arith.maxsi %1, %c0_i32 : i32
    %c0_i32_0 = arith.constant 0 : i32
    %c0_i32_1 = arith.constant 0 : i32
    %c0_i32_2 = arith.constant 0 : i32
    return %arg0, %2, %c0_i32_0, %c0_i32_1 : i32, i32, i32, i32
  }
  func.func @transform_2(%arg0: i32, %arg1: i32) -> (i32, i32, i32, i32) {
    %c16_i32 = arith.constant 16 : i32
    %0 = arith.muli %arg1, %c16_i32 : i32
    %c16_i32_0 = arith.constant 16 : i32
    %1 = arith.addi %0, %c16_i32_0 : i32
    %c15_i32 = arith.constant 15 : i32
    %2 = arith.minsi %1, %c15_i32 : i32
    %c0_i32 = arith.constant 0 : i32
    %c0_i32_1 = arith.constant 0 : i32
    %c0_i32_2 = arith.constant 0 : i32
    return %arg0, %2, %c0_i32, %c0_i32_1 : i32, i32, i32, i32
  }
  func.func @transform_3(%arg0: i32, %arg1: i32) -> (i32, i32, i32) {
    %c0_i32 = arith.constant 0 : i32
    %c0_i32_0 = arith.constant 0 : i32
    %c0_i32_1 = arith.constant 0 : i32
    %c0_i32_2 = arith.constant 0 : i32
    return %c0_i32, %c0_i32_0, %c0_i32_1 : i32, i32, i32
  }
  func.func @transform_4(%arg0: i32, %arg1: i32) -> (i32, i32, i32, i32) {
    %c0_i32 = arith.constant 0 : i32
    %c0_i32_0 = arith.constant 0 : i32
    %c0_i32_1 = arith.constant 0 : i32
    return %arg0, %arg1, %c0_i32, %c0_i32_0 : i32, i32, i32, i32
  }
  func.func @transform_5(%arg0: i32, %arg1: i32) -> (i32, i32, i32, i32) {
    %c0_i32 = arith.constant 0 : i32
    %c0_i32_0 = arith.constant 0 : i32
    %c0_i32_1 = arith.constant 0 : i32
    return %arg0, %arg1, %c0_i32, %c0_i32_0 : i32, i32, i32, i32
  }
  func.func @transform_6(%arg0: i32, %arg1: i32) -> (i32, i32, i32, i32) {
    %c0_i32 = arith.constant 0 : i32
    %c0_i32_0 = arith.constant 0 : i32
    %c0_i32_1 = arith.constant 0 : i32
    return %arg0, %arg1, %c0_i32, %c0_i32_0 : i32, i32, i32, i32
  }
}

module attributes {stable_mosaic.version = 11 : i64} {
  func.func @_bnrelu_conv2_kernel(%arg0: i32, %arg1: i32, %arg2: memref<1x16x16x8xf32, #tpu.memory_space<vmem>>, %arg3: memref<1x1x16x8xf32, #tpu.memory_space<vmem>>, %arg4: memref<1x1x16x8xf32, #tpu.memory_space<vmem>>, %arg5: memref<1x8xf32, #tpu.memory_space<vmem>>, %arg6: memref<1x8xf32, #tpu.memory_space<vmem>>, %arg7: memref<3x24x8xf32, #tpu.memory_space<vmem>>, %arg8: memref<1x16x16x8xf32, #tpu.memory_space<vmem>>, %arg9: memref<1x1x1x8xf32, #tpu.memory_space<vmem>>, %arg10: memref<1x1x1x8xf32, #tpu.memory_space<vmem>>) attributes {dimension_semantics = [#tpu.dimension_semantics<parallel>, #tpu.dimension_semantics<parallel>], iteration_bounds = array<i64: 2, 1>, scalar_prefetch = 0 : i64, scratch_operands = 0 : i64, tpu.core_type = #tpu.core_type<tc>, window_params = [{transform_indices = @transform_0, window_bounds = array<i64: 1, 16, 16, 8>}, {transform_indices = @transform_1, window_bounds = array<i64: 1, 1, 16, 8>}, {transform_indices = @transform_2, window_bounds = array<i64: 1, 1, 16, 8>}, {pipeline_mode = #tpu.pipeline_mode<synchronous>, transform_indices = @transform_3, window_bounds = array<i64: 1, 8>}, {pipeline_mode = #tpu.pipeline_mode<synchronous>, transform_indices = @transform_4, window_bounds = array<i64: 1, 8>}, {pipeline_mode = #tpu.pipeline_mode<synchronous>, transform_indices = @transform_5, window_bounds = array<i64: 3, 24, 8>}, {transform_indices = @transform_6, window_bounds = array<i64: 1, 16, 16, 8>}, {transform_indices = @transform_7, window_bounds = array<i64: 1, 1, 1, 8>}, {transform_indices = @transform_8, window_bounds = array<i64: 1, 1, 1, 8>}]} {
    %c0 = arith.constant 0 : index
    %c0_0 = arith.constant 0 : index
    %0 = vector.load %arg5[%c0, %c0_0] : memref<1x8xf32, #tpu.memory_space<vmem>>, vector<1x8xf32>
    %1 = vector.shape_cast %0 : vector<1x8xf32> to vector<8xf32>
    %c0_1 = arith.constant 0 : index
    %c0_2 = arith.constant 0 : index
    %2 = vector.load %arg6[%c0_1, %c0_2] : memref<1x8xf32, #tpu.memory_space<vmem>>, vector<1x8xf32>
    %3 = vector.shape_cast %2 : vector<1x8xf32> to vector<8xf32>
    %c0_3 = arith.constant 0 : index
    %c0_4 = arith.constant 0 : index
    %c0_5 = arith.constant 0 : index
    %c0_6 = arith.constant 0 : index
    %4 = vector.load %arg2[%c0_3, %c0_4, %c0_5, %c0_6] : memref<1x16x16x8xf32, #tpu.memory_space<vmem>>, vector<1x16x16x8xf32>
    %5 = vector.shape_cast %4 : vector<1x16x16x8xf32> to vector<16x16x8xf32>
    %6 = vector.shape_cast %1 : vector<8xf32> to vector<1x1x8xf32>
    %7 = vector.broadcast %6 : vector<1x1x8xf32> to vector<16x16x8xf32>
    %8 = arith.mulf %5, %7 : vector<16x16x8xf32>
    %9 = vector.shape_cast %3 : vector<8xf32> to vector<1x1x8xf32>
    %10 = vector.broadcast %9 : vector<1x1x8xf32> to vector<16x16x8xf32>
    %11 = arith.addf %8, %10 : vector<16x16x8xf32>
    %cst = arith.constant 0.000000e+00 : f32
    %12 = vector.broadcast %cst : f32 to vector<16x16x8xf32>
    %13 = arith.maximumf %11, %12 : vector<16x16x8xf32>
    %c0_7 = arith.constant 0 : index
    %c0_8 = arith.constant 0 : index
    %c0_9 = arith.constant 0 : index
    %c0_10 = arith.constant 0 : index
    %14 = vector.load %arg3[%c0_7, %c0_8, %c0_9, %c0_10] : memref<1x1x16x8xf32, #tpu.memory_space<vmem>>, vector<1x1x16x8xf32>
    %15 = vector.shape_cast %14 : vector<1x1x16x8xf32> to vector<1x16x8xf32>
    %16 = vector.shape_cast %1 : vector<8xf32> to vector<1x1x8xf32>
    %17 = vector.broadcast %16 : vector<1x1x8xf32> to vector<1x16x8xf32>
    %18 = arith.mulf %15, %17 : vector<1x16x8xf32>
    %19 = vector.shape_cast %3 : vector<8xf32> to vector<1x1x8xf32>
    %20 = vector.broadcast %19 : vector<1x1x8xf32> to vector<1x16x8xf32>
    %21 = arith.addf %18, %20 : vector<1x16x8xf32>
    %cst_11 = arith.constant 0.000000e+00 : f32
    %22 = vector.broadcast %cst_11 : f32 to vector<1x16x8xf32>
    %23 = arith.maximumf %21, %22 : vector<1x16x8xf32>
    %c0_12 = arith.constant 0 : index
    %c0_13 = arith.constant 0 : index
    %c0_14 = arith.constant 0 : index
    %c0_15 = arith.constant 0 : index
    %24 = vector.load %arg4[%c0_12, %c0_13, %c0_14, %c0_15] : memref<1x1x16x8xf32, #tpu.memory_space<vmem>>, vector<1x1x16x8xf32>
    %25 = vector.shape_cast %24 : vector<1x1x16x8xf32> to vector<1x16x8xf32>
    %26 = vector.shape_cast %1 : vector<8xf32> to vector<1x1x8xf32>
    %27 = vector.broadcast %26 : vector<1x1x8xf32> to vector<1x16x8xf32>
    %28 = arith.mulf %25, %27 : vector<1x16x8xf32>
    %29 = vector.shape_cast %3 : vector<8xf32> to vector<1x1x8xf32>
    %30 = vector.broadcast %29 : vector<1x1x8xf32> to vector<1x16x8xf32>
    %31 = arith.addf %28, %30 : vector<1x16x8xf32>
    %cst_16 = arith.constant 0.000000e+00 : f32
    %32 = vector.broadcast %cst_16 : f32 to vector<1x16x8xf32>
    %33 = arith.maximumf %31, %32 : vector<1x16x8xf32>
    %c0_i32 = arith.constant 0 : i32
    %34 = arith.cmpi ne, %arg1, %c0_i32 : i32
    %35 = arith.extui %34 : i1 to i32
    %36 = arith.sitofp %35 : i32 to f32
    %37 = vector.broadcast %36 : f32 to vector<1x16x8xf32>
    %38 = arith.mulf %23, %37 : vector<1x16x8xf32>
    %c0_i32_17 = arith.constant 0 : i32
    %39 = arith.cmpi ne, %arg1, %c0_i32_17 : i32
    %40 = arith.extui %39 : i1 to i32
    %41 = arith.sitofp %40 : i32 to f32
    %42 = vector.broadcast %41 : f32 to vector<1x16x8xf32>
    %43 = arith.mulf %33, %42 : vector<1x16x8xf32>
    %44 = tpu.concatenate %38, %13, %43 in 0 : vector<1x16x8xf32>, vector<16x16x8xf32>, vector<1x16x8xf32> -> vector<18x16x8xf32>
    %cst_18 = arith.constant 0.000000e+00 : f32
    %45 = vector.broadcast %cst_18 : f32 to vector<18x1x8xf32>
    %46 = vector.extract_strided_slice %44 {offsets = [0, 0, 0], sizes = [18, 15, 8], strides = [1, 1, 1]} : vector<18x16x8xf32> to vector<18x15x8xf32>
    %47 = tpu.concatenate %45, %46 in 1 : vector<18x1x8xf32>, vector<18x15x8xf32> -> vector<18x16x8xf32>
    %48 = vector.extract_strided_slice %44 {offsets = [0, 1, 0], sizes = [18, 15, 8], strides = [1, 1, 1]} : vector<18x16x8xf32> to vector<18x15x8xf32>
    %49 = tpu.concatenate %48, %45 in 1 : vector<18x15x8xf32>, vector<18x1x8xf32> -> vector<18x16x8xf32>
    %50 = tpu.concatenate %47, %44, %49 in 2 : vector<18x16x8xf32>, vector<18x16x8xf32>, vector<18x16x8xf32> -> vector<18x16x24xf32>
    %cst_19 = arith.constant 0.000000e+00 : f32
    %51 = vector.broadcast %cst_19 : f32 to vector<256x8xf32>
    %c0_20 = arith.constant 0 : index
    %c0_21 = arith.constant 0 : index
    %c0_22 = arith.constant 0 : index
    %52 = vector.load %arg7[%c0_20, %c0_21, %c0_22] : memref<3x24x8xf32, #tpu.memory_space<vmem>>, vector<1x24x8xf32>
    %53 = vector.shape_cast %52 : vector<1x24x8xf32> to vector<24x8xf32>
    %54 = vector.extract_strided_slice %50 {offsets = [0, 0, 0], sizes = [16, 16, 24], strides = [1, 1, 1]} : vector<18x16x24xf32> to vector<16x16x24xf32>
    %55 = vector.shape_cast %54 : vector<16x16x24xf32> to vector<256x24xf32>
    %cst_23 = arith.constant dense<0.000000e+00> : vector<256x8xf32>
    %56 = tpu.matmul %55, %53, %cst_23 {dimension_numbers = #tpu.dot_dimension_numbers<[1], [0], [0], [1], [0, 0, 1, 1], [], []>} : vector<256x24xf32>, vector<24x8xf32>, vector<256x8xf32> -> vector<256x8xf32>
    %57 = arith.addf %51, %56 : vector<256x8xf32>
    %c1 = arith.constant 1 : index
    %c0_24 = arith.constant 0 : index
    %c0_25 = arith.constant 0 : index
    %58 = vector.load %arg7[%c1, %c0_24, %c0_25] : memref<3x24x8xf32, #tpu.memory_space<vmem>>, vector<1x24x8xf32>
    %59 = vector.shape_cast %58 : vector<1x24x8xf32> to vector<24x8xf32>
    %60 = vector.extract_strided_slice %50 {offsets = [1, 0, 0], sizes = [16, 16, 24], strides = [1, 1, 1]} : vector<18x16x24xf32> to vector<16x16x24xf32>
    %61 = vector.shape_cast %60 : vector<16x16x24xf32> to vector<256x24xf32>
    %cst_26 = arith.constant dense<0.000000e+00> : vector<256x8xf32>
    %62 = tpu.matmul %61, %59, %cst_26 {dimension_numbers = #tpu.dot_dimension_numbers<[1], [0], [0], [1], [0, 0, 1, 1], [], []>} : vector<256x24xf32>, vector<24x8xf32>, vector<256x8xf32> -> vector<256x8xf32>
    %63 = arith.addf %57, %62 : vector<256x8xf32>
    %c2 = arith.constant 2 : index
    %c0_27 = arith.constant 0 : index
    %c0_28 = arith.constant 0 : index
    %64 = vector.load %arg7[%c2, %c0_27, %c0_28] : memref<3x24x8xf32, #tpu.memory_space<vmem>>, vector<1x24x8xf32>
    %65 = vector.shape_cast %64 : vector<1x24x8xf32> to vector<24x8xf32>
    %66 = vector.extract_strided_slice %50 {offsets = [2, 0, 0], sizes = [16, 16, 24], strides = [1, 1, 1]} : vector<18x16x24xf32> to vector<16x16x24xf32>
    %67 = vector.shape_cast %66 : vector<16x16x24xf32> to vector<256x24xf32>
    %cst_29 = arith.constant dense<0.000000e+00> : vector<256x8xf32>
    %68 = tpu.matmul %67, %65, %cst_29 {dimension_numbers = #tpu.dot_dimension_numbers<[1], [0], [0], [1], [0, 0, 1, 1], [], []>} : vector<256x24xf32>, vector<24x8xf32>, vector<256x8xf32> -> vector<256x8xf32>
    %69 = arith.addf %63, %68 : vector<256x8xf32>
    %70 = vector.shape_cast %69 : vector<256x8xf32> to vector<1x16x16x8xf32>
    %c0_30 = arith.constant 0 : index
    %c0_31 = arith.constant 0 : index
    %c0_32 = arith.constant 0 : index
    %c0_33 = arith.constant 0 : index
    %71 = vector.load %arg8[%c0_30, %c0_31, %c0_32, %c0_33] : memref<1x16x16x8xf32, #tpu.memory_space<vmem>>, vector<1x16x16x8xf32>
    tpu.vector_store %arg8[%c0_30, %c0_31, %c0_32, %c0_33], %70 {strides = array<i32>} : memref<1x16x16x8xf32, #tpu.memory_space<vmem>>, vector<1x16x16x8xf32>,
    %cst_34 = arith.constant dense<0.000000e+00> : vector<8xf32>
    %72 = vector.multi_reduction <add>, %69, %cst_34 [0] : vector<256x8xf32> to vector<8xf32>
    %73 = vector.shape_cast %72 : vector<8xf32> to vector<1x1x1x8xf32>
    %c0_35 = arith.constant 0 : index
    %c0_36 = arith.constant 0 : index
    %c0_37 = arith.constant 0 : index
    %c0_38 = arith.constant 0 : index
    %74 = vector.load %arg9[%c0_35, %c0_36, %c0_37, %c0_38] : memref<1x1x1x8xf32, #tpu.memory_space<vmem>>, vector<1x1x1x8xf32>
    tpu.vector_store %arg9[%c0_35, %c0_36, %c0_37, %c0_38], %73 {strides = array<i32>} : memref<1x1x1x8xf32, #tpu.memory_space<vmem>>, vector<1x1x1x8xf32>,
    %75 = arith.mulf %69, %69 : vector<256x8xf32>
    %cst_39 = arith.constant dense<0.000000e+00> : vector<8xf32>
    %76 = vector.multi_reduction <add>, %75, %cst_39 [0] : vector<256x8xf32> to vector<8xf32>
    %77 = vector.shape_cast %76 : vector<8xf32> to vector<1x1x1x8xf32>
    %c0_40 = arith.constant 0 : index
    %c0_41 = arith.constant 0 : index
    %c0_42 = arith.constant 0 : index
    %c0_43 = arith.constant 0 : index
    %78 = vector.load %arg10[%c0_40, %c0_41, %c0_42, %c0_43] : memref<1x1x1x8xf32, #tpu.memory_space<vmem>>, vector<1x1x1x8xf32>
    tpu.vector_store %arg10[%c0_40, %c0_41, %c0_42, %c0_43], %77 {strides = array<i32>} : memref<1x1x1x8xf32, #tpu.memory_space<vmem>>, vector<1x1x1x8xf32>,
    return
  }
  func.func @transform_0(%arg0: i32, %arg1: i32) -> (i32, i32, i32, i32) {
    %c0_i32 = arith.constant 0 : i32
    %c0_i32_0 = arith.constant 0 : i32
    %c0_i32_1 = arith.constant 0 : i32
    return %arg0, %arg1, %c0_i32, %c0_i32_0 : i32, i32, i32, i32
  }
  func.func @transform_1(%arg0: i32, %arg1: i32) -> (i32, i32, i32, i32) {
    %c16_i32 = arith.constant 16 : i32
    %0 = arith.muli %arg1, %c16_i32 : i32
    %c1_i32 = arith.constant 1 : i32
    %1 = arith.subi %0, %c1_i32 : i32
    %c0_i32 = arith.constant 0 : i32
    %2 = arith.maxsi %1, %c0_i32 : i32
    %c0_i32_0 = arith.constant 0 : i32
    %c0_i32_1 = arith.constant 0 : i32
    %c0_i32_2 = arith.constant 0 : i32
    return %arg0, %2, %c0_i32_0, %c0_i32_1 : i32, i32, i32, i32
  }
  func.func @transform_2(%arg0: i32, %arg1: i32) -> (i32, i32, i32, i32) {
    %c16_i32 = arith.constant 16 : i32
    %0 = arith.muli %arg1, %c16_i32 : i32
    %c16_i32_0 = arith.constant 16 : i32
    %1 = arith.addi %0, %c16_i32_0 : i32
    %c15_i32 = arith.constant 15 : i32
    %2 = arith.minsi %1, %c15_i32 : i32
    %c0_i32 = arith.constant 0 : i32
    %c0_i32_1 = arith.constant 0 : i32
    %c0_i32_2 = arith.constant 0 : i32
    return %arg0, %2, %c0_i32, %c0_i32_1 : i32, i32, i32, i32
  }
  func.func @transform_3(%arg0: i32, %arg1: i32) -> (i32, i32) {
    %c0_i32 = arith.constant 0 : i32
    %c0_i32_0 = arith.constant 0 : i32
    %c0_i32_1 = arith.constant 0 : i32
    return %c0_i32, %c0_i32_0 : i32, i32
  }
  func.func @transform_4(%arg0: i32, %arg1: i32) -> (i32, i32) {
    %c0_i32 = arith.constant 0 : i32
    %c0_i32_0 = arith.constant 0 : i32
    %c0_i32_1 = arith.constant 0 : i32
    return %c0_i32, %c0_i32_0 : i32, i32
  }
  func.func @transform_5(%arg0: i32, %arg1: i32) -> (i32, i32, i32) {
    %c0_i32 = arith.constant 0 : i32
    %c0_i32_0 = arith.constant 0 : i32
    %c0_i32_1 = arith.constant 0 : i32
    %c0_i32_2 = arith.constant 0 : i32
    return %c0_i32, %c0_i32_0, %c0_i32_1 : i32, i32, i32
  }
  func.func @transform_6(%arg0: i32, %arg1: i32) -> (i32, i32, i32, i32) {
    %c0_i32 = arith.constant 0 : i32
    %c0_i32_0 = arith.constant 0 : i32
    %c0_i32_1 = arith.constant 0 : i32
    return %arg0, %arg1, %c0_i32, %c0_i32_0 : i32, i32, i32, i32
  }
  func.func @transform_7(%arg0: i32, %arg1: i32) -> (i32, i32, i32, i32) {
    %c0_i32 = arith.constant 0 : i32
    %c0_i32_0 = arith.constant 0 : i32
    %c0_i32_1 = arith.constant 0 : i32
    return %arg0, %arg1, %c0_i32, %c0_i32_0 : i32, i32, i32, i32
  }
  func.func @transform_8(%arg0: i32, %arg1: i32) -> (i32, i32, i32, i32) {
    %c0_i32 = arith.constant 0 : i32
    %c0_i32_0 = arith.constant 0 : i32
    %c0_i32_1 = arith.constant 0 : i32
    return %arg0, %arg1, %c0_i32, %c0_i32_0 : i32, i32, i32, i32
  }
}

module attributes {stable_mosaic.version = 11 : i64} {
  func.func @_bnrelu_kernel(%arg0: i32, %arg1: i32, %arg2: memref<1x16x128xf32, #tpu.memory_space<vmem>>, %arg3: memref<1x128xf32, #tpu.memory_space<vmem>>, %arg4: memref<1x128xf32, #tpu.memory_space<vmem>>, %arg5: memref<1x16x128xf32, #tpu.memory_space<vmem>>) attributes {dimension_semantics = [#tpu.dimension_semantics<parallel>, #tpu.dimension_semantics<parallel>], iteration_bounds = array<i64: 2, 1>, scalar_prefetch = 0 : i64, scratch_operands = 0 : i64, tpu.core_type = #tpu.core_type<tc>, window_params = [{transform_indices = @transform_0, window_bounds = array<i64: 1, 16, 128>}, {pipeline_mode = #tpu.pipeline_mode<synchronous>, transform_indices = @transform_1, window_bounds = array<i64: 1, 128>}, {pipeline_mode = #tpu.pipeline_mode<synchronous>, transform_indices = @transform_2, window_bounds = array<i64: 1, 128>}, {transform_indices = @transform_3, window_bounds = array<i64: 1, 16, 128>}]} {
    %c0 = arith.constant 0 : index
    %c0_0 = arith.constant 0 : index
    %c0_1 = arith.constant 0 : index
    %0 = vector.load %arg2[%c0, %c0_0, %c0_1] : memref<1x16x128xf32, #tpu.memory_space<vmem>>, vector<1x16x128xf32>
    %1 = vector.shape_cast %0 : vector<1x16x128xf32> to vector<16x128xf32>
    %c0_2 = arith.constant 0 : index
    %c0_3 = arith.constant 0 : index
    %2 = vector.load %arg3[%c0_2, %c0_3] : memref<1x128xf32, #tpu.memory_space<vmem>>, vector<1x128xf32>
    %3 = vector.broadcast %2 : vector<1x128xf32> to vector<16x128xf32>
    %4 = arith.mulf %1, %3 : vector<16x128xf32>
    %c0_4 = arith.constant 0 : index
    %c0_5 = arith.constant 0 : index
    %5 = vector.load %arg4[%c0_4, %c0_5] : memref<1x128xf32, #tpu.memory_space<vmem>>, vector<1x128xf32>
    %6 = vector.broadcast %5 : vector<1x128xf32> to vector<16x128xf32>
    %7 = arith.addf %4, %6 : vector<16x128xf32>
    %cst = arith.constant 0.000000e+00 : f32
    %8 = vector.broadcast %cst : f32 to vector<16x128xf32>
    %9 = arith.maximumf %7, %8 : vector<16x128xf32>
    %10 = vector.shape_cast %9 : vector<16x128xf32> to vector<1x16x128xf32>
    %c0_6 = arith.constant 0 : index
    %c0_7 = arith.constant 0 : index
    %c0_8 = arith.constant 0 : index
    %11 = vector.load %arg5[%c0_6, %c0_7, %c0_8] : memref<1x16x128xf32, #tpu.memory_space<vmem>>, vector<1x16x128xf32>
    tpu.vector_store %arg5[%c0_6, %c0_7, %c0_8], %10 {strides = array<i32>} : memref<1x16x128xf32, #tpu.memory_space<vmem>>, vector<1x16x128xf32>,
    return
  }
  func.func @transform_0(%arg0: i32, %arg1: i32) -> (i32, i32, i32) {
    %c0_i32 = arith.constant 0 : i32
    %c0_i32_0 = arith.constant 0 : i32
    return %arg0, %arg1, %c0_i32 : i32, i32, i32
  }
  func.func @transform_1(%arg0: i32, %arg1: i32) -> (i32, i32) {
    %c0_i32 = arith.constant 0 : i32
    %c0_i32_0 = arith.constant 0 : i32
    %c0_i32_1 = arith.constant 0 : i32
    return %c0_i32, %c0_i32_0 : i32, i32
  }
  func.func @transform_2(%arg0: i32, %arg1: i32) -> (i32, i32) {
    %c0_i32 = arith.constant 0 : i32
    %c0_i32_0 = arith.constant 0 : i32
    %c0_i32_1 = arith.constant 0 : i32
    return %c0_i32, %c0_i32_0 : i32, i32
  }
  func.func @transform_3(%arg0: i32, %arg1: i32) -> (i32, i32, i32) {
    %c0_i32 = arith.constant 0 : i32
    %c0_i32_0 = arith.constant 0 : i32
    return %arg0, %arg1, %c0_i32 : i32, i32, i32
  }
}

</mosaic_0001>

<llo_original>
// kernel: tile.13
$region0: #{tile.13}
  #allocation0 [shape = 's32[1]{0}', space=sflag, size = 0x4, scoped, tag = 'scoped memory for tile.13']
  %s0 = inlined_call_operand.vmem [shape: f32[8], index: 0, kind: input, shape index: {}]
  %s1 = inlined_call_operand.vmem [shape: f32[16,8], index: 1, kind: output, shape index: {}]
  // Predicated region
  $region2: #{tile.13} parent=0 // pred_check
    _
  $region3: #{tile.13} parent=0 // pred_check_branch
    %3 = sbr.rel (0) target = $region5
  $region4: #{tile.13} parent=0 // pred_region
    _
  $region5: #{tile.13} parent=0 // pred_fallthru
    _
  %v4 = vld [vmem:[%s0] ss:$0 sm:$0xff]
  %5 = vst [vmem:[%s1] sm:$0xff] %v4
  %s6 = scalar_lea.vmem %s1, 8
  %7 = vst [vmem:[%s6] sm:$0xff] %v4

// kernel: tile.14
$region0: #{tile.14}
  %s0 = inlined_call_operand.vmem [shape: f32[16,8], index: 0, kind: input, shape index: {}]
  %s1 = inlined_call_operand.vmem [shape: f32[1,128], index: 1, kind: output, shape index: {}]
  $region1: #{tile.14} parent=0
    #allocation0 [shape = 'u8[4096]{0}', space=vmem, size = 0x1000, scoped, tag = 'scoped mem for output reshape']
    %v2 = vld [vmem:[%s0] sm:$0x1]
    %vm3 = vcmask 64512
    %4 = vst.msk [vmem:[#allocation0] sm:$0x1] %vm3, %v2
    %s5 = scalar_lea.vmem %s0, 15
    %v6 = vld [vmem:[%s5] sm:$0x1]
    %7 = vrot.lane.b32.xlu0 %v6, 120
    %v8 = vpop.permute.xlu0 %7
    %vm9 = vcmask 1048512
    %10 = vst.msk [vmem:[#allocation0] sm:$0x1] %vm9, %v8
    %s11 = scalar_lea.vmem %s0, 14
    %v12 = vld [vmem:[%s11] sm:$0x1]
    %13 = vrot.lane.b32.xlu0 %v12, 112
    %v14 = vpop.permute.xlu0 %13
    %vm15 = vcmask 982912
    %16 = vst.msk [vmem:[#allocation0] sm:$0x1] %vm15, %v14
    %s17 = scalar_lea.vmem %s0, 13
    %v18 = vld [vmem:[%s17] sm:$0x1]
    %19 = vrot.lane.b32.xlu0 %v18, 104
    %v20 = vpop.permute.xlu0 %19
    %vm21 = vcmask 917312
    %22 = vst.msk [vmem:[#allocation0] sm:$0x1] %vm21, %v20
    %s23 = scalar_lea.vmem %s0, 12
    %v24 = vld [vmem:[%s23] sm:$0x1]
    %25 = vrot.lane.b32.xlu0 %v24, 96
    %v26 = vpop.permute.xlu0 %25
    %vm27 = vcmask 851712
    %28 = vst.msk [vmem:[#allocation0] sm:$0x1] %vm27, %v26
    %s29 = scalar_lea.vmem %s0, 11
    %v30 = vld [vmem:[%s29] sm:$0x1]
    %31 = vrot.lane.b32.xlu0 %v30, 88
    %v32 = vpop.permute.xlu0 %31
    %vm33 = vcmask 786112
    %34 = vst.msk [vmem:[#allocation0] sm:$0x1] %vm33, %v32
    %s35 = scalar_lea.vmem %s0, 10
    %v36 = vld [vmem:[%s35] sm:$0x1]
    %37 = vrot.lane.b32.xlu0 %v36, 80
    %v38 = vpop.permute.xlu0 %37
    %vm39 = vcmask 720512
    %40 = vst.msk [vmem:[#allocation0] sm:$0x1] %vm39, %v38
    %s41 = scalar_lea.vmem %s0, 9
    %v42 = vld [vmem:[%s41] sm:$0x1]
    %43 = vrot.lane.b32.xlu0 %v42, 72
    %v44 = vpop.permute.xlu0 %43
    %vm45 = vcmask 654912
    %46 = vst.msk [vmem:[#allocation0] sm:$0x1] %vm45, %v44
    %s47 = scalar_lea.vmem %s0, 8
    %v48 = vld [vmem:[%s47] sm:$0x1]
    %49 = vrot.lane.b32.xlu0 %v48, 64
    %v50 = vpop.permute.xlu0 %49
    %vm51 = vcmask 589312
    %52 = vst.msk [vmem:[#allocation0] sm:$0x1] %vm51, %v50
    %s53 = scalar_lea.vmem %s0, 7
    %v54 = vld [vmem:[%s53] sm:$0x1]
    %55 = vrot.lane.b32.xlu0 %v54, 56
    %v56 = vpop.permute.xlu0 %55
    %vm57 = vcmask 523712
    %58 = vst.msk [vmem:[#allocation0] sm:$0x1] %vm57, %v56
    %s59 = scalar_lea.vmem %s0, 6
    %v60 = vld [vmem:[%s59] sm:$0x1]
    %61 = vrot.lane.b32.xlu0 %v60, 48
    %v62 = vpop.permute.xlu0 %61
    %vm63 = vcmask 458112
    %64 = vst.msk [vmem:[#allocation0] sm:$0x1] %vm63, %v62
    %s65 = scalar_lea.vmem %s0, 5
    %v66 = vld [vmem:[%s65] sm:$0x1]
    %67 = vrot.lane.b32.xlu0 %v66, 40
    %v68 = vpop.permute.xlu0 %67
    %vm69 = vcmask 392512
    %70 = vst.msk [vmem:[#allocation0] sm:$0x1] %vm69, %v68
    %s71 = scalar_lea.vmem %s0, 4
    %v72 = vld [vmem:[%s71] sm:$0x1]
    %73 = vrot.lane.b32.xlu0 %v72, 32
    %v74 = vpop.permute.xlu0 %73
    %vm75 = vcmask 326912
    %76 = vst.msk [vmem:[#allocation0] sm:$0x1] %vm75, %v74
    %s77 = scalar_lea.vmem %s0, 3
    %v78 = vld [vmem:[%s77] sm:$0x1]
    %79 = vrot.lane.b32.xlu0 %v78, 24
    %v80 = vpop.permute.xlu0 %79
    %vm81 = vcmask 261312
    %82 = vst.msk [vmem:[#allocation0] sm:$0x1] %vm81, %v80
    %s83 = scalar_lea.vmem %s0, 2
    %v84 = vld [vmem:[%s83] sm:$0x1]
    %85 = vrot.lane.b32.xlu0 %v84, 16
    %v86 = vpop.permute.xlu0 %85
    %vm87 = vcmask 195712
    %88 = vst.msk [vmem:[#allocation0] sm:$0x1] %vm87, %v86
    %s89 = scalar_lea.vmem %s0, 1
    %v90 = vld [vmem:[%s89] sm:$0x1]
    %91 = vrot.lane.b32.xlu0 %v90, 8
    %v92 = vpop.permute.xlu0 %91
    %vm93 = vcmask 130112
    %94 = vst.msk [vmem:[#allocation0] sm:$0x1] %vm93, %v92
    %s96 = sshllo.u32 0, 1
    %v98 = vld [vmem:[#allocation0] sm:%s96]
    %s99 = sshllo.u32 0, 1
    %100 = vst [vmem:[%s1] sm:%s99] %v98

// kernel: double_conv.5
$region0: #{double_conv.5}
  #allocation0 [shape = 'u32[]', space=smem, size = 0x4, offset = 0x4, fixed_abs, tag = 'smem constant byte address 0x4 - core index']
  #allocation1 [shape = 'u32[144,128]{1,0:T(1,128)}', space=vmem, size = 0x12000, scoped, tag = 'internal scratch']
  %s0 = inlined_call_operand.vmem [shape: f32[2,16,128], index: 0, kind: input, shape index: {}]
  %s1 = inlined_call_operand.vmem [shape: f32[1,128], index: 1, kind: input, shape index: {}]
  %s2 = inlined_call_operand.vmem [shape: f32[1,128], index: 2, kind: input, shape index: {}]
  %s3 = inlined_call_operand.vmem [shape: f32[2,16,128], index: 3, kind: output, shape index: {}]
  %s4 = sld [smem:[#allocation0]]
  $region45: #{double_conv.5} parent=0
    _
  %s6 = ssub.s32 1, %s4
  %s7 = scalar_select 0, %s6, %s4
  loop: start=0, step=1, limit=4
  $region2: #{double_conv.5} parent=0 // loop_pre_header
    _
  $region3: #{double_conv.5} parent=0 // loop_header
    %s9 = sphi 0, %s13
    %p10 = scmp.ge.s32.totalorder %s9, 4
    %s16 = sphi 0, %s28
    %s17 = sphi 0, %s24
    %s18 = sphi 0, %s16
    %s19 = sphi 0, %s17
    %s20 = sphi 0, %s18
    %s21 = sphi 0, %s19
    %s33 = sphi 0, %s35
    %s36 = sphi 0, %s33
    %s37 = sphi 0, %s36
    %s53 = sphi 0, %s37
    %s57 = sphi 0, %s57
    %s59 = sphi 0, %s57
    %s60 = sphi 0, %s59
    %s74 = sphi 0, %s60
    %s78 = sphi 0, %s78
    %s80 = sphi 0, %s78
    %s81 = sphi 0, %s80
    %s95 = sphi 0, %s81
    %s103 = sphi 0, %s105
    %s106 = sphi 0, %s103
    %s107 = sphi 0, %s106
    %s123 = sphi 0, %s107
  $region4: #{double_conv.5} parent=0 // loop_header_branch
    %12 = sbr.rel (%p10) target = $region8
  $region5: #{double_conv.5} parent=0 // loop_body
    %s14 = ssub.s32 %s9, 1
    %s15 = ssub.s32 %s9, 2
    %s22 = sadd.s32 1, %s17
    %p23 = scmp.ge.s32.totalorder %s22, 1
    %s24 = scalar_select %p23, 0, %s22
    %s25 = sadd.s32 1, %s16
    %s26 = scalar_select %p23, %s25, %s16
    %p27 = scmp.ge.s32.totalorder %s26, 2
    %s28 = scalar_select %p27, 0, %s26
    %s29 = ssub.s32 %s16, %s28
    %s30 = ssub.s32 %s17, %s24
    %s31 = sor.u32 %s29, %s30
    %p32 = scmp.eq.s32.totalorder %s31, 0
    %s34 = sadd.s32 %s33, 1
    %s35 = scalar_select %p32, %s33, %s34
    %p38 = pneg %p32
    %p39 = scmp.eq.s32.totalorder %s9, 1
    %p40 = por %p38, %p39
    %p41 = scmp.ne.s32.totalorder %s33, %s36
    %p42 = scmp.eq.s32.totalorder %s9, 0
    %p43 = por %p41, %p42
    %p44 = scmp.ne.s32.totalorder %s33, %s36
    %p45 = scmp.eq.s32.totalorder %s14, 1
    %p46 = por %p44, %p45
    %p47 = scmp.ne.s32.totalorder %s36, %s37
    %p48 = scmp.eq.s32.totalorder %s14, 0
    %p49 = por %p47, %p48
    %p50 = scmp.ne.s32.totalorder %s36, %s37
    %p51 = scmp.eq.s32.totalorder %s15, 1
    %p52 = por %p50, %p51
    %p54 = scmp.ne.s32.totalorder %s37, %s53
    %p55 = scmp.eq.s32.totalorder %s15, 0
    %p56 = por %p54, %p55
    %s58 = sadd.s32 %s57, 1
    %p61 = scmp.eq.s32.totalorder %s9, 1
    %p62 = scmp.ne.s32.totalorder %s57, %s59
    %p63 = scmp.eq.s32.totalorder %s9, 0
    %p64 = por %p62, %p63
    %p65 = scmp.ne.s32.totalorder %s57, %s59
    %p66 = scmp.eq.s32.totalorder %s14, 1
    %p67 = por %p65, %p66
    %p68 = scmp.ne.s32.totalorder %s59, %s60
    %p69 = scmp.eq.s32.totalorder %s14, 0
    %p70 = por %p68, %p69
    %p71 = scmp.ne.s32.totalorder %s59, %s60
    %p72 = scmp.eq.s32.totalorder %s15, 1
    %p73 = por %p71, %p72
    %p75 = scmp.ne.s32.totalorder %s60, %s74
    %p76 = scmp.eq.s32.totalorder %s15, 0
    %p77 = por %p75, %p76
    %s79 = sadd.s32 %s78, 1
    %p82 = scmp.eq.s32.totalorder %s9, 1
    %p83 = scmp.ne.s32.totalorder %s78, %s80
    %p84 = scmp.eq.s32.totalorder %s9, 0
    %p85 = por %p83, %p84
    %p86 = scmp.ne.s32.totalorder %s78, %s80
    %p87 = scmp.eq.s32.totalorder %s14, 1
    %p88 = por %p86, %p87
    %p89 = scmp.ne.s32.totalorder %s80, %s81
    %p90 = scmp.eq.s32.totalorder %s14, 0
    %p91 = por %p89, %p90
    %p92 = scmp.ne.s32.totalorder %s80, %s81
    %p93 = scmp.eq.s32.totalorder %s15, 1
    %p94 = por %p92, %p93
    %p96 = scmp.ne.s32.totalorder %s81, %s95
    %p97 = scmp.eq.s32.totalorder %s15, 0
    %p98 = por %p96, %p97
    %s99 = ssub.s32 %s16, %s28
    %s100 = ssub.s32 %s17, %s24
    %s101 = sor.u32 %s99, %s100
    %p102 = scmp.eq.s32.totalorder %s101, 0
    %s104 = sadd.s32 %s103, 1
    %s105 = scalar_select %p102, %s103, %s104
    %p108 = pneg %p102
    %p109 = scmp.eq.s32.totalorder %s9, 1
    %p110 = por %p108, %p109
    %p111 = scmp.ne.s32.totalorder %s103, %s106
    %p112 = scmp.eq.s32.totalorder %s9, 0
    %p113 = por %p111, %p112
    %p114 = scmp.ne.s32.totalorder %s103, %s106
    %p115 = scmp.eq.s32.totalorder %s14, 1
    %p116 = por %p114, %p115
    %p117 = scmp.ne.s32.totalorder %s106, %s107
    %p118 = scmp.eq.s32.totalorder %s14, 0
    %p119 = por %p117, %p118
    %p120 = scmp.ne.s32.totalorder %s106, %s107
    %p121 = scmp.eq.s32.totalorder %s15, 1
    %p122 = por %p120, %p121
    %p124 = scmp.ne.s32.totalorder %s107, %s123
    %p125 = scmp.eq.s32.totalorder %s15, 0
    %p126 = por %p124, %p125
    %p127 = scmp.le.s32.totalorder 1, %s9
    %p128 = scmp.lt.s32.totalorder %s9, 3
    %p129 = pnand %p127, %p128
    %p130 = pneg %p129
    // Predicated region
    $region9: #{double_conv.5} parent=5 // pred_check
      _
    $region10: #{double_conv.5} parent=5 // pred_check_branch
      %132 = sbr.rel (%p129) target = $region12
    $region11: #{double_conv.5} parent=5 // pred_region
      %s133 = ssub.s32 %s9, 1
      // Predicated region
      $region13: #{double_conv.5} parent=11 // pred_check
        %p134 = pneg %p70
      $region14: #{double_conv.5} parent=11 // pred_check_branch
        %136 = sbr.rel (%p134) target = $region16
      $region15: #{double_conv.5} parent=11 // pred_region
        _
      $region16: #{double_conv.5} parent=11 // pred_fallthru
        _
      // Predicated region
      $region17: #{double_conv.5} parent=11 // pred_check
        %p137 = pneg %p91
      $region18: #{double_conv.5} parent=11 // pred_check_branch
        %139 = sbr.rel (%p137) target = $region20
      $region19: #{double_conv.5} parent=11 // pred_region
        _
      $region20: #{double_conv.5} parent=11 // pred_fallthru
        _
    $region12: #{double_conv.5} parent=5 // pred_fallthru
      _
    %p140 = scmp.lt.s32.totalorder %s9, 2
    // Predicated region
    $region21: #{double_conv.5} parent=5 // pred_check
      %p141 = pneg %p140
    $region22: #{double_conv.5} parent=5 // pred_check_branch
      %143 = sbr.rel (%p141) target = $region24
    $region23: #{double_conv.5} parent=5 // pred_region
      // Predicated region
      $region25: #{double_conv.5} parent=23 // pred_check
        %p144 = pneg %p43
      $region26: #{double_conv.5} parent=23 // pred_check_branch
        %146 = sbr.rel (%p144) target = $region28
      $region27: #{double_conv.5} parent=23 // pred_region
        %s147 = smul.u32 2, %s17
        %p148 = scmp.lt.s32.totalorder %s16, 1
        %s149 = scalar_select %p148, %s16, 1
        %p150 = scmp.lt.s32.totalorder %s147, 1
        %s151 = scalar_select %p150, %s147, 1
        %s152 = smul.addr %s149, 2
        %s153 = sadd.s32 %s151, %s152
        %s154 = smul.addr %s153, 8
        %s155 = scalar_lea.vmem %s0, %s154
        %s156 = smul.u32 2, %s17
      $region28: #{double_conv.5} parent=23 // pred_fallthru
        _
    $region24: #{double_conv.5} parent=5 // pred_fallthru
      _
    %p157 = scmp.le.s32.totalorder 1, %s9
    %p158 = scmp.lt.s32.totalorder %s9, 3
    %p159 = pnand %p157, %p158
    %p160 = pneg %p159
    // Predicated region
    $region29: #{double_conv.5} parent=5 // pred_check
      _
    $region30: #{double_conv.5} parent=5 // pred_check_branch
      %162 = sbr.rel (%p159) target = $region32
    $region31: #{double_conv.5} parent=5 // pred_region
      %s163 = ssub.s32 %s9, 1
      %s164 = smul.u32 2, %s19
      %p165 = scmp.lt.s32.totalorder %s18, 1
      %s166 = scalar_select %p165, %s18, 1
      %p167 = scmp.lt.s32.totalorder %s164, 1
      %s168 = scalar_select %p167, %s164, 1
      %s169 = smul.addr %s166, 2
      %s170 = sadd.s32 %s168, %s169
      %s171 = smul.addr %s170, 8
      %s172 = scalar_lea.vmem %s0, %s171
      %p173 = pneg %p49
      %p174 = pneg %p46
      %p175 = pneg %p70
      %p176 = pneg %p67
      %p177 = pneg %p91
      %p178 = pneg %p88
      %p179 = pneg %p119
      %p180 = pneg %p116
      %s181 = smul.u32 2, %s19
      %p182 = scmp.lt.s32.totalorder %s18, 1
      %s183 = scalar_select %p182, %s18, 1
      %p184 = scmp.lt.s32.totalorder %s181, 1
      %s185 = scalar_select %p184, %s181, 1
      %s186 = smul.addr %s183, 2
      %s187 = sadd.s32 %s185, %s186
      %s188 = smul.addr %s187, 8
      %s189 = scalar_lea.vmem %s3, %s188
      %s190 = smul.u32 2, %s19
      %p191 = scmp.lt.s32.totalorder %s18, 1
      %s192 = scalar_select %p191, %s18, 1
      %p193 = scmp.lt.s32.totalorder %s190, 1
      %s194 = scalar_select %p193, %s190, 1
      %s195 = smul.addr %s192, 2
      %s196 = sadd.s32 %s194, %s195
      %s197 = smul.addr %s196, 8
      %s198 = scalar_lea.vmem %s0, %s197
      %s199 = smul.u32 2, %s19
      %s200 = smul.u32 2, %s19
      %p201 = scmp.lt.s32.totalorder %s18, 1
      %s202 = scalar_select %p201, %s18, 1
      %p203 = scmp.lt.s32.totalorder %s200, 1
      %s204 = scalar_select %p203, %s200, 1
      %s205 = smul.addr %s202, 2
      %s206 = sadd.s32 %s204, %s205
      %s207 = smul.addr %s206, 8
      %s208 = scalar_lea.vmem %s3, %s207
      %s209 = smul.u32 2, %s19
      %v210 = vld [vmem:[%s198] sm:$0xff]
      %v211 = vld [vmem:[%s198 + $0x8] sm:$0xff]
      %v212 = vld [vmem:[%s1] sm:$0x1]
      %v214 = vlaneseq
      %v215 = vshrl.u32 %v214, 7
      %v216 = vsub.s32 0, %v215
      %v217 = vrot.slane %v212, %v216
      %v219 = vmul.f32 %v210, %v217
      %v220 = vmul.f32 %v211, %v217
      %v221 = vld [vmem:[%s2] sm:$0x1]
      %v223 = vlaneseq
      %v224 = vshrl.u32 %v223, 7
      %v225 = vsub.s32 0, %v224
      %v226 = vrot.slane %v221, %v225
      %v228 = vadd.f32 %v219, %v226
      %v229 = vadd.f32 %v220, %v226
      %v230 = vmax.f32 %v228, 0.0
      %v231 = vmax.f32 %v229, 0.0
      %232 = vst [vmem:[%s208] sm:$0xff] %v230
      %233 = vst [vmem:[%s208 + $0x8] sm:$0xff] %v231
      %s234 = smul.u32 2, %s19
      %p235 = scmp.lt.s32.totalorder %s18, 1
      %s236 = scalar_select %p235, %s18, 1
      %p237 = scmp.lt.s32.totalorder %s234, 1
      %s238 = scalar_select %p237, %s234, 1
      %s239 = smul.addr %s236, 2
      %s240 = sadd.s32 %s238, %s239
      %s241 = smul.addr %s240, 8
      %s242 = scalar_lea.vmem %s3, %s241
      // Predicated region
      $region33: #{double_conv.5} parent=31 // pred_check
        %p243 = pneg %p116
      $region34: #{double_conv.5} parent=31 // pred_check_branch
        %245 = sbr.rel (%p243) target = $region36
      $region35: #{double_conv.5} parent=31 // pred_region
        %s246 = smul.u32 2, %s19
      $region36: #{double_conv.5} parent=31 // pred_fallthru
        _
    $region32: #{double_conv.5} parent=5 // pred_fallthru
      _
    %p247 = scmp.le.s32.totalorder 2, %s9
    // Predicated region
    $region37: #{double_conv.5} parent=5 // pred_check
      %p248 = pneg %p247
    $region38: #{double_conv.5} parent=5 // pred_check_branch
      %250 = sbr.rel (%p248) target = $region40
    $region39: #{double_conv.5} parent=5 // pred_region
      %s251 = ssub.s32 %s9, 2
      // Predicated region
      $region41: #{double_conv.5} parent=39 // pred_check
        %p252 = pneg %p122
      $region42: #{double_conv.5} parent=39 // pred_check_branch
        %254 = sbr.rel (%p252) target = $region44
      $region43: #{double_conv.5} parent=39 // pred_region
        %s255 = smul.u32 2, %s21
        %p256 = scmp.lt.s32.totalorder %s20, 1
        %s257 = scalar_select %p256, %s20, 1
        %p258 = scmp.lt.s32.totalorder %s255, 1
        %s259 = scalar_select %p258, %s255, 1
        %s260 = smul.addr %s257, 2
        %s261 = sadd.s32 %s259, %s260
        %s262 = smul.addr %s261, 8
        %s263 = scalar_lea.vmem %s3, %s262
      $region44: #{double_conv.5} parent=39 // pred_fallthru
        _
    $region40: #{double_conv.5} parent=5 // pred_fallthru
      _
  $region6: #{double_conv.5} parent=0 // loop_footer
    %s13 = sadd.s32 1, %s9
  $region7: #{double_conv.5} parent=0 // loop_footer_branch
    %8 = sbr.rel target = $region3
  $region8: #{double_conv.5} parent=0 // loop_exit
    _

// kernel: double_conv.3
$region0: #{double_conv.3}
  #allocation0 [shape = 'u32[]', space=smem, size = 0x4, offset = 0x4, fixed_abs, tag = 'smem constant byte address 0x4 - core index']
  #allocation1 [shape = 'u32[144,128]{1,0:T(1,128)}', space=vmem, size = 0x12000, scoped, tag = 'internal scratch']
  %s0 = inlined_call_operand.vmem [shape: f32[2,16,16,4], index: 0, kind: input, shape index: {}, may-alias: {0,1,2}]
  %s1 = inlined_call_operand.vmem [shape: f32[2,16,16,4], index: 1, kind: input, shape index: {}, may-alias: {0,1,2}]
  %s2 = inlined_call_operand.vmem [shape: f32[2,16,16,4], index: 2, kind: input, shape index: {}, may-alias: {0,1,2}]
  %s3 = inlined_call_operand.vmem [shape: f32[3,12,8], index: 3, kind: input, shape index: {}]
  %s4 = inlined_call_operand.vmem [shape: f32[2,16,16,8], index: 4, kind: output, shape index: {0}]
  %s5 = inlined_call_operand.vmem [shape: f32[2,1,1,8], index: 5, kind: output, shape index: {1}]
  %s6 = inlined_call_operand.vmem [shape: f32[2,1,1,8], index: 6, kind: output, shape index: {2}]
  %7 = xla_tuple %s4, %s5, %s6
  %s8 = sld [smem:[#allocation0]]
  $region65: #{double_conv.3} parent=0
    _
  %s10 = ssub.s32 1, %s8
  %s11 = scalar_select 0, %s10, %s8
  loop: start=0, step=1, limit=4
  $region2: #{double_conv.3} parent=0 // loop_pre_header
    _
  $region3: #{double_conv.3} parent=0 // loop_header
    %s13 = sphi 0, %s17
    %p14 = scmp.ge.s32.totalorder %s13, 4
    %s20 = sphi 0, %s32
    %s21 = sphi 0, %s28
    %s22 = sphi 0, %s20
    %s23 = sphi 0, %s21
    %s24 = sphi 0, %s22
    %s25 = sphi 0, %s23
    %s37 = sphi 0, %s39
    %s40 = sphi 0, %s37
    %s41 = sphi 0, %s40
    %s57 = sphi 0, %s41
    %s73 = sphi 0, %s75
    %s76 = sphi 0, %s73
    %s77 = sphi 0, %s76
    %s93 = sphi 0, %s77
    %s109 = sphi 0, %s111
    %s112 = sphi 0, %s109
    %s113 = sphi 0, %s112
    %s129 = sphi 0, %s113
    %s133 = sphi 0, %s133
    %s135 = sphi 0, %s133
    %s136 = sphi 0, %s135
    %s150 = sphi 0, %s136
    %s158 = sphi 0, %s160
    %s161 = sphi 0, %s158
    %s162 = sphi 0, %s161
    %s178 = sphi 0, %s162
    %s186 = sphi 0, %s188
    %s189 = sphi 0, %s186
    %s190 = sphi 0, %s189
    %s206 = sphi 0, %s190
    %s214 = sphi 0, %s216
    %s217 = sphi 0, %s214
    %s218 = sphi 0, %s217
    %s234 = sphi 0, %s218
  $region4: #{double_conv.3} parent=0 // loop_header_branch
    %16 = sbr.rel (%p14) target = $region8
  $region5: #{double_conv.3} parent=0 // loop_body
    %s18 = ssub.s32 %s13, 1
    %s19 = ssub.s32 %s13, 2
    %s26 = sadd.s32 1, %s21
    %p27 = scmp.ge.s32.totalorder %s26, 1
    %s28 = scalar_select %p27, 0, %s26
    %s29 = sadd.s32 1, %s20
    %s30 = scalar_select %p27, %s29, %s20
    %p31 = scmp.ge.s32.totalorder %s30, 2
    %s32 = scalar_select %p31, 0, %s30
    %s33 = ssub.s32 %s20, %s32
    %s34 = ssub.s32 %s21, %s28
    %s35 = sor.u32 %s33, %s34
    %p36 = scmp.eq.s32.totalorder %s35, 0
    %s38 = sadd.s32 %s37, 1
    %s39 = scalar_select %p36, %s37, %s38
    %p42 = pneg %p36
    %p43 = scmp.eq.s32.totalorder %s13, 1
    %p44 = por %p42, %p43
    %p45 = scmp.ne.s32.totalorder %s37, %s40
    %p46 = scmp.eq.s32.totalorder %s13, 0
    %p47 = por %p45, %p46
    %p48 = scmp.ne.s32.totalorder %s37, %s40
    %p49 = scmp.eq.s32.totalorder %s18, 1
    %p50 = por %p48, %p49
    %p51 = scmp.ne.s32.totalorder %s40, %s41
    %p52 = scmp.eq.s32.totalorder %s18, 0
    %p53 = por %p51, %p52
    %p54 = scmp.ne.s32.totalorder %s40, %s41
    %p55 = scmp.eq.s32.totalorder %s19, 1
    %p56 = por %p54, %p55
    %p58 = scmp.ne.s32.totalorder %s41, %s57
    %p59 = scmp.eq.s32.totalorder %s19, 0
    %p60 = por %p58, %p59
    %s61 = smul.u32 %s21, 16
    %s62 = ssub.s32 %s61, 1
    %p63 = scmp.gt.s32.totalorder %s62, 0
    %s64 = scalar_select %p63, %s62, 0
    %s65 = smul.u32 %s28, 16
    %s66 = ssub.s32 %s65, 1
    %p67 = scmp.gt.s32.totalorder %s66, 0
    %s68 = scalar_select %p67, %s66, 0
    %s69 = ssub.s32 %s20, %s32
    %s70 = ssub.s32 %s64, %s68
    %s71 = sor.u32 %s69, %s70
    %p72 = scmp.eq.s32.totalorder %s71, 0
    %s74 = sadd.s32 %s73, 1
    %s75 = scalar_select %p72, %s73, %s74
    %p78 = pneg %p72
    %p79 = scmp.eq.s32.totalorder %s13, 1
    %p80 = por %p78, %p79
    %p81 = scmp.ne.s32.totalorder %s73, %s76
    %p82 = scmp.eq.s32.totalorder %s13, 0
    %p83 = por %p81, %p82
    %p84 = scmp.ne.s32.totalorder %s73, %s76
    %p85 = scmp.eq.s32.totalorder %s18, 1
    %p86 = por %p84, %p85
    %p87 = scmp.ne.s32.totalorder %s76, %s77
    %p88 = scmp.eq.s32.totalorder %s18, 0
    %p89 = por %p87, %p88
    %p90 = scmp.ne.s32.totalorder %s76, %s77
    %p91 = scmp.eq.s32.totalorder %s19, 1
    %p92 = por %p90, %p91
    %p94 = scmp.ne.s32.totalorder %s77, %s93
    %p95 = scmp.eq.s32.totalorder %s19, 0
    %p96 = por %p94, %p95
    %s97 = smul.u32 %s21, 16
    %s98 = sadd.s32 %s97, 16
    %p99 = scmp.lt.s32.totalorder %s98, 15
    %s100 = scalar_select %p99, %s98, 15
    %s101 = smul.u32 %s28, 16
    %s102 = sadd.s32 %s101, 16
    %p103 = scmp.lt.s32.totalorder %s102, 15
    %s104 = scalar_select %p103, %s102, 15
    %s105 = ssub.s32 %s20, %s32
    %s106 = ssub.s32 %s100, %s104
    %s107 = sor.u32 %s105, %s106
    %p108 = scmp.eq.s32.totalorder %s107, 0
    %s110 = sadd.s32 %s109, 1
    %s111 = scalar_select %p108, %s109, %s110
    %p114 = pneg %p108
    %p115 = scmp.eq.s32.totalorder %s13, 1
    %p116 = por %p114, %p115
    %p117 = scmp.ne.s32.totalorder %s109, %s112
    %p118 = scmp.eq.s32.totalorder %s13, 0
    %p119 = por %p117, %p118
    %p120 = scmp.ne.s32.totalorder %s109, %s112
    %p121 = scmp.eq.s32.totalorder %s18, 1
    %p122 = por %p120, %p121
    %p123 = scmp.ne.s32.totalorder %s112, %s113
    %p124 = scmp.eq.s32.totalorder %s18, 0
    %p125 = por %p123, %p124
    %p126 = scmp.ne.s32.totalorder %s112, %s113
    %p127 = scmp.eq.s32.totalorder %s19, 1
    %p128 = por %p126, %p127
    %p130 = scmp.ne.s32.totalorder %s113, %s129
    %p131 = scmp.eq.s32.totalorder %s19, 0
    %p132 = por %p130, %p131
    %s134 = sadd.s32 %s133, 1
    %p137 = scmp.eq.s32.totalorder %s13, 1
    %p138 = scmp.ne.s32.totalorder %s133, %s135
    %p139 = scmp.eq.s32.totalorder %s13, 0
    %p140 = por %p138, %p139
    %p141 = scmp.ne.s32.totalorder %s133, %s135
    %p142 = scmp.eq.s32.totalorder %s18, 1
    %p143 = por %p141, %p142
    %p144 = scmp.ne.s32.totalorder %s135, %s136
    %p145 = scmp.eq.s32.totalorder %s18, 0
    %p146 = por %p144, %p145
    %p147 = scmp.ne.s32.totalorder %s135, %s136
    %p148 = scmp.eq.s32.totalorder %s19, 1
    %p149 = por %p147, %p148
    %p151 = scmp.ne.s32.totalorder %s136, %s150
    %p152 = scmp.eq.s32.totalorder %s19, 0
    %p153 = por %p151, %p152
    %s154 = ssub.s32 %s20, %s32
    %s155 = ssub.s32 %s21, %s28
    %s156 = sor.u32 %s154, %s155
    %p157 = scmp.eq.s32.totalorder %s156, 0
    %s159 = sadd.s32 %s158, 1
    %s160 = scalar_select %p157, %s158, %s159
    %p163 = pneg %p157
    %p164 = scmp.eq.s32.totalorder %s13, 1
    %p165 = por %p163, %p164
    %p166 = scmp.ne.s32.totalorder %s158, %s161
    %p167 = scmp.eq.s32.totalorder %s13, 0
    %p168 = por %p166, %p167
    %p169 = scmp.ne.s32.totalorder %s158, %s161
    %p170 = scmp.eq.s32.totalorder %s18, 1
    %p171 = por %p169, %p170
    %p172 = scmp.ne.s32.totalorder %s161, %s162
    %p173 = scmp.eq.s32.totalorder %s18, 0
    %p174 = por %p172, %p173
    %p175 = scmp.ne.s32.totalorder %s161, %s162
    %p176 = scmp.eq.s32.totalorder %s19, 1
    %p177 = por %p175, %p176
    %p179 = scmp.ne.s32.totalorder %s162, %s178
    %p180 = scmp.eq.s32.totalorder %s19, 0
    %p181 = por %p179, %p180
    %s182 = ssub.s32 %s20, %s32
    %s183 = ssub.s32 %s21, %s28
    %s184 = sor.u32 %s182, %s183
    %p185 = scmp.eq.s32.totalorder %s184, 0
    %s187 = sadd.s32 %s186, 1
    %s188 = scalar_select %p185, %s186, %s187
    %p191 = pneg %p185
    %p192 = scmp.eq.s32.totalorder %s13, 1
    %p193 = por %p191, %p192
    %p194 = scmp.ne.s32.totalorder %s186, %s189
    %p195 = scmp.eq.s32.totalorder %s13, 0
    %p196 = por %p194, %p195
    %p197 = scmp.ne.s32.totalorder %s186, %s189
    %p198 = scmp.eq.s32.totalorder %s18, 1
    %p199 = por %p197, %p198
    %p200 = scmp.ne.s32.totalorder %s189, %s190
    %p201 = scmp.eq.s32.totalorder %s18, 0
    %p202 = por %p200, %p201
    %p203 = scmp.ne.s32.totalorder %s189, %s190
    %p204 = scmp.eq.s32.totalorder %s19, 1
    %p205 = por %p203, %p204
    %p207 = scmp.ne.s32.totalorder %s190, %s206
    %p208 = scmp.eq.s32.totalorder %s19, 0
    %p209 = por %p207, %p208
    %s210 = ssub.s32 %s20, %s32
    %s211 = ssub.s32 %s21, %s28
    %s212 = sor.u32 %s210, %s211
    %p213 = scmp.eq.s32.totalorder %s212, 0
    %s215 = sadd.s32 %s214, 1
    %s216 = scalar_select %p213, %s214, %s215
    %p219 = pneg %p213
    %p220 = scmp.eq.s32.totalorder %s13, 1
    %p221 = por %p219, %p220
    %p222 = scmp.ne.s32.totalorder %s214, %s217
    %p223 = scmp.eq.s32.totalorder %s13, 0
    %p224 = por %p222, %p223
    %p225 = scmp.ne.s32.totalorder %s214, %s217
    %p226 = scmp.eq.s32.totalorder %s18, 1
    %p227 = por %p225, %p226
    %p228 = scmp.ne.s32.totalorder %s217, %s218
    %p229 = scmp.eq.s32.totalorder %s18, 0
    %p230 = por %p228, %p229
    %p231 = scmp.ne.s32.totalorder %s217, %s218
    %p232 = scmp.eq.s32.totalorder %s19, 1
    %p233 = por %p231, %p232
    %p235 = scmp.ne.s32.totalorder %s218, %s234
    %p236 = scmp.eq.s32.totalorder %s19, 0
    %p237 = por %p235, %p236
    %p238 = scmp.le.s32.totalorder 1, %s13
    %p239 = scmp.lt.s32.totalorder %s13, 3
    %p240 = pnand %p238, %p239
    %p241 = pneg %p240
    // Predicated region
    $region9: #{double_conv.3} parent=5 // pred_check
      _
    $region10: #{double_conv.3} parent=5 // pred_check_branch
      %243 = sbr.rel (%p240) target = $region12
    $region11: #{double_conv.3} parent=5 // pred_region
      %s244 = ssub.s32 %s13, 1
      // Predicated region
      $region13: #{double_conv.3} parent=11 // pred_check
        %p245 = pneg %p146
      $region14: #{double_conv.3} parent=11 // pred_check_branch
        %247 = sbr.rel (%p245) target = $region16
      $region15: #{double_conv.3} parent=11 // pred_region
        _
      $region16: #{double_conv.3} parent=11 // pred_fallthru
        _
    $region12: #{double_conv.3} parent=5 // pred_fallthru
      _
    %p248 = scmp.lt.s32.totalorder %s13, 2
    // Predicated region
    $region17: #{double_conv.3} parent=5 // pred_check
      %p249 = pneg %p248
    $region18: #{double_conv.3} parent=5 // pred_check_branch
      %251 = sbr.rel (%p249) target = $region20
    $region19: #{double_conv.3} parent=5 // pred_region
      // Predicated region
      $region21: #{double_conv.3} parent=19 // pred_check
        %p252 = pneg %p47
      $region22: #{double_conv.3} parent=19 // pred_check_branch
        %254 = sbr.rel (%p252) target = $region24
      $region23: #{double_conv.3} parent=19 // pred_region
        %s255 = smul.u32 16, %s21
        %p256 = scmp.lt.s32.totalorder %s20, 1
        %s257 = scalar_select %p256, %s20, 1
        %p258 = scmp.lt.s32.totalorder %s255, 15
        %s259 = scalar_select %p258, %s255, 15
        %s260 = smul.addr %s259, 2
        %s261 = smul.addr %s257, 32
        %s262 = sadd.s32 %s260, %s261
        %s263 = smul.addr %s262, 8
        %s264 = scalar_lea.vmem %s0, %s263
        %s265 = smul.u32 16, %s21
      $region24: #{double_conv.3} parent=19 // pred_fallthru
        _
      // Predicated region
      $region25: #{double_conv.3} parent=19 // pred_check
        %p266 = pneg %p83
      $region26: #{double_conv.3} parent=19 // pred_check_branch
        %268 = sbr.rel (%p266) target = $region28
      $region27: #{double_conv.3} parent=19 // pred_region
        %s269 = smul.u32 %s21, 16
        %s270 = ssub.s32 %s269, 1
        %p271 = scmp.gt.s32.totalorder %s270, 0
        %s272 = scalar_select %p271, %s270, 0
        %p273 = scmp.lt.s32.totalorder %s20, 1
        %s274 = scalar_select %p273, %s20, 1
        %p275 = scmp.lt.s32.totalorder %s272, 15
        %s276 = scalar_select %p275, %s272, 15
        %s277 = smul.addr %s276, 2
        %s278 = smul.addr %s274, 32
        %s279 = sadd.s32 %s277, %s278
        %s280 = smul.addr %s279, 8
        %s281 = scalar_lea.vmem %s1, %s280
        %s282 = smul.u32 %s21, 16
        %s283 = ssub.s32 %s282, 1
        %p284 = scmp.gt.s32.totalorder %s283, 0
        %s285 = scalar_select %p284, %s283, 0
      $region28: #{double_conv.3} parent=19 // pred_fallthru
        _
      // Predicated region
      $region29: #{double_conv.3} parent=19 // pred_check
        %p286 = pneg %p119
      $region30: #{double_conv.3} parent=19 // pred_check_branch
        %288 = sbr.rel (%p286) target = $region32
      $region31: #{double_conv.3} parent=19 // pred_region
        %s289 = smul.u32 %s21, 16
        %s290 = sadd.s32 %s289, 16
        %p291 = scmp.lt.s32.totalorder %s290, 15
        %s292 = scalar_select %p291, %s290, 15
        %p293 = scmp.lt.s32.totalorder %s20, 1
        %s294 = scalar_select %p293, %s20, 1
        %p295 = scmp.lt.s32.totalorder %s292, 15
        %s296 = scalar_select %p295, %s292, 15
        %s297 = smul.addr %s296, 2
        %s298 = smul.addr %s294, 32
        %s299 = sadd.s32 %s297, %s298
        %s300 = smul.addr %s299, 8
        %s301 = scalar_lea.vmem %s2, %s300
        %s302 = smul.u32 %s21, 16
        %s303 = sadd.s32 %s302, 16
        %p304 = scmp.lt.s32.totalorder %s303, 15
        %s305 = scalar_select %p304, %s303, 15
      $region32: #{double_conv.3} parent=19 // pred_fallthru
        _
    $region20: #{double_conv.3} parent=5 // pred_fallthru
      _
    %p306 = scmp.le.s32.totalorder 1, %s13
    %p307 = scmp.lt.s32.totalorder %s13, 3
    %p308 = pnand %p306, %p307
    %p309 = pneg %p308
    // Predicated region
    $region33: #{double_conv.3} parent=5 // pred_check
      _
    $region34: #{double_conv.3} parent=5 // pred_check_branch
      %311 = sbr.rel (%p308) target = $region36
    $region35: #{double_conv.3} parent=5 // pred_region
      %s312 = ssub.s32 %s13, 1
      %s313 = smul.u32 16, %s23
      %p314 = scmp.lt.s32.totalorder %s22, 1
      %s315 = scalar_select %p314, %s22, 1
      %p316 = scmp.lt.s32.totalorder %s313, 15
      %s317 = scalar_select %p316, %s313, 15
      %s318 = smul.addr %s317, 2
      %s319 = smul.addr %s315, 32
      %s320 = sadd.s32 %s318, %s319
      %s321 = smul.addr %s320, 8
      %s322 = scalar_lea.vmem %s0, %s321
      %p323 = pneg %p53
      %p324 = pneg %p50
      %s325 = smul.u32 %s23, 16
      %s326 = ssub.s32 %s325, 1
      %p327 = scmp.gt.s32.totalorder %s326, 0
      %s328 = scalar_select %p327, %s326, 0
      %p329 = scmp.lt.s32.totalorder %s22, 1
      %s330 = scalar_select %p329, %s22, 1
      %p331 = scmp.lt.s32.totalorder %s328, 15
      %s332 = scalar_select %p331, %s328, 15
      %s333 = smul.addr %s332, 2
      %s334 = smul.addr %s330, 32
      %s335 = sadd.s32 %s333, %s334
      %s336 = smul.addr %s335, 8
      %s337 = scalar_lea.vmem %s1, %s336
      %p338 = pneg %p89
      %p339 = pneg %p86
      %s340 = smul.u32 %s23, 16
      %s341 = sadd.s32 %s340, 16
      %p342 = scmp.lt.s32.totalorder %s341, 15
      %s343 = scalar_select %p342, %s341, 15
      %p344 = scmp.lt.s32.totalorder %s22, 1
      %s345 = scalar_select %p344, %s22, 1
      %p346 = scmp.lt.s32.totalorder %s343, 15
      %s347 = scalar_select %p346, %s343, 15
      %s348 = smul.addr %s347, 2
      %s349 = smul.addr %s345, 32
      %s350 = sadd.s32 %s348, %s349
      %s351 = smul.addr %s350, 8
      %s352 = scalar_lea.vmem %s2, %s351
      %p353 = pneg %p125
      %p354 = pneg %p122
      %p355 = pneg %p146
      %p356 = pneg %p143
      %p357 = pneg %p174
      %p358 = pneg %p171
      %s359 = smul.u32 16, %s23
      %p360 = scmp.lt.s32.totalorder %s22, 1
      %s361 = scalar_select %p360, %s22, 1
      %p362 = scmp.lt.s32.totalorder %s359, 15
      %s363 = scalar_select %p362, %s359, 15
      %s364 = smul.addr %s363, 2
      %s365 = smul.addr %s361, 32
      %s366 = sadd.s32 %s364, %s365
      %s367 = smul.addr %s366, 8
      %s368 = scalar_lea.vmem %s4, %s367
      %p369 = pneg %p202
      %p370 = pneg %p199
      %p371 = scmp.lt.s32.totalorder %s22, 1
      %s372 = scalar_select %p371, %s22, 1
      %p373 = scmp.lt.s32.totalorder %s23, 0
      %s374 = scalar_select %p373, %s23, 0
      %s375 = sadd.s32 %s374, %s372
      %s376 = scalar_lea.vmem %s5, %s375
      %p377 = pneg %p230
      %p378 = pneg %p227
      %p379 = scmp.lt.s32.totalorder %s22, 1
      %s380 = scalar_select %p379, %s22, 1
      %p381 = scmp.lt.s32.totalorder %s23, 0
      %s382 = scalar_select %p381, %s23, 0
      %s383 = sadd.s32 %s382, %s380
      %s384 = scalar_lea.vmem %s6, %s383
      %s385 = smul.u32 16, %s23
      %p386 = scmp.lt.s32.totalorder %s22, 1
      %s387 = scalar_select %p386, %s22, 1
      %p388 = scmp.lt.s32.totalorder %s385, 15
      %s389 = scalar_select %p388, %s385, 15
      %s390 = smul.addr %s389, 2
      %s391 = smul.addr %s387, 32
      %s392 = sadd.s32 %s390, %s391
      %s393 = smul.addr %s392, 8
      %s394 = scalar_lea.vmem %s0, %s393
      %s395 = smul.u32 16, %s23
      %s396 = smul.u32 %s23, 16
      %s397 = ssub.s32 %s396, 1
      %p398 = scmp.gt.s32.totalorder %s397, 0
      %s399 = scalar_select %p398, %s397, 0
      %p400 = scmp.lt.s32.totalorder %s22, 1
      %s401 = scalar_select %p400, %s22, 1
      %p402 = scmp.lt.s32.totalorder %s399, 15
      %s403 = scalar_select %p402, %s399, 15
      %s404 = smul.addr %s403, 2
      %s405 = smul.addr %s401, 32
      %s406 = sadd.s32 %s404, %s405
      %s407 = smul.addr %s406, 8
      %s408 = scalar_lea.vmem %s1, %s407
      %s409 = smul.u32 %s23, 16
      %s410 = ssub.s32 %s409, 1
      %p411 = scmp.gt.s32.totalorder %s410, 0
      %s412 = scalar_select %p411, %s410, 0
      %s413 = smul.u32 %s23, 16
      %s414 = sadd.s32 %s413, 16
      %p415 = scmp.lt.s32.totalorder %s414, 15
      %s416 = scalar_select %p415, %s414, 15
      %p417 = scmp.lt.s32.totalorder %s22, 1
      %s418 = scalar_select %p417, %s22, 1
      %p419 = scmp.lt.s32.totalorder %s416, 15
      %s420 = scalar_select %p419, %s416, 15
      %s421 = smul.addr %s420, 2
      %s422 = smul.addr %s418, 32
      %s423 = sadd.s32 %s421, %s422
      %s424 = smul.addr %s423, 8
      %s425 = scalar_lea.vmem %s2, %s424
      %s426 = smul.u32 %s23, 16
      %s427 = sadd.s32 %s426, 16
      %p428 = scmp.lt.s32.totalorder %s427, 15
      %s429 = scalar_select %p428, %s427, 15
      %s430 = smul.u32 16, %s23
      %p431 = scmp.lt.s32.totalorder %s22, 1
      %s432 = scalar_select %p431, %s22, 1
      %p433 = scmp.lt.s32.totalorder %s430, 15
      %s434 = scalar_select %p433, %s430, 15
      %s435 = smul.addr %s434, 2
      %s436 = smul.addr %s432, 32
      %s437 = sadd.s32 %s435, %s436
      %s438 = smul.addr %s437, 8
      %s439 = scalar_lea.vmem %s4, %s438
      %s440 = smul.u32 16, %s23
      %p441 = scmp.lt.s32.totalorder %s22, 1
      %s442 = scalar_select %p441, %s22, 1
      %p443 = scmp.lt.s32.totalorder %s23, 0
      %s444 = scalar_select %p443, %s23, 0
      %s445 = sadd.s32 %s444, %s442
      %s446 = scalar_lea.vmem %s5, %s445
      %p447 = scmp.lt.s32.totalorder %s22, 1
      %s448 = scalar_select %p447, %s22, 1
      %p449 = scmp.lt.s32.totalorder %s23, 0
      %s450 = scalar_select %p449, %s23, 0
      %s451 = sadd.s32 %s450, %s448
      %s452 = scalar_lea.vmem %s6, %s451
      %v453 = vld [vmem:[%s394] sm:$0xff]
      %v454 = vld [vmem:[%s394 + $0x8] sm:$0xff]
      %v455 = vld [vmem:[%s394 + $0x10] sm:$0xff]
      %v456 = vld [vmem:[%s394 + $0x18] sm:$0xff]
      %v457 = vld [vmem:[%s394 + $0x20] sm:$0xff]
      %v458 = vld [vmem:[%s394 + $0x28] sm:$0xff]
      %v459 = vld [vmem:[%s394 + $0x30] sm:$0xff]
      %v460 = vld [vmem:[%s394 + $0x38] sm:$0xff]
      %v461 = vld [vmem:[%s394 + $0x40] sm:$0xff]
      %v462 = vld [vmem:[%s394 + $0x48] sm:$0xff]
      %v463 = vld [vmem:[%s394 + $0x50] sm:$0xff]
      %v464 = vld [vmem:[%s394 + $0x58] sm:$0xff]
      %v465 = vld [vmem:[%s394 + $0x60] sm:$0xff]
      %v466 = vld [vmem:[%s394 + $0x68] sm:$0xff]
      %v467 = vld [vmem:[%s394 + $0x70] sm:$0xff]
      %v468 = vld [vmem:[%s394 + $0x78] sm:$0xff]
      %v469 = vld [vmem:[%s394 + $0x80] sm:$0xff]
      %v470 = vld [vmem:[%s394 + $0x88] sm:$0xff]
      %v471 = vld [vmem:[%s394 + $0x90] sm:$0xff]
      %v472 = vld [vmem:[%s394 + $0x98] sm:$0xff]
      %v473 = vld [vmem:[%s394 + $0xa0] sm:$0xff]
      %v474 = vld [vmem:[%s394 + $0xa8] sm:$0xff]
      %v475 = vld [vmem:[%s394 + $0xb0] sm:$0xff]
      %v476 = vld [vmem:[%s394 + $0xb8] sm:$0xff]
      %v477 = vld [vmem:[%s394 + $0xc0] sm:$0xff]
      %v478 = vld [vmem:[%s394 + $0xc8] sm:$0xff]
      %v479 = vld [vmem:[%s394 + $0xd0] sm:$0xff]
      %v480 = vld [vmem:[%s394 + $0xd8] sm:$0xff]
      %v481 = vld [vmem:[%s394 + $0xe0] sm:$0xff]
      %v482 = vld [vmem:[%s394 + $0xe8] sm:$0xff]
      %v483 = vld [vmem:[%s394 + $0xf0] sm:$0xff]
      %v484 = vld [vmem:[%s394 + $0xf8] sm:$0xff]
      %v485 = vld [vmem:[%s408] sm:$0xff]
      %v486 = vld [vmem:[%s408 + $0x8] sm:$0xff]
      %v487 = vld [vmem:[%s425] sm:$0xff]
      %v488 = vld [vmem:[%s425 + $0x8] sm:$0xff]
      %p489 = scmp.ne.s32.totalorder %s23, 0
      %s490 = scalar_select %p489, 1, 0
      %s491 = scvt.s32.f32 %s490
      %v492 = vstv %s491
      %v493 = vmul.f32 %v485, %v492
      %v494 = vmul.f32 %v486, %v492
      %v495 = vmul.f32 %v487, %v492
      %v496 = vmul.f32 %v488, %v492
      %vm533 = vcmask 1040384
      %v534 = vrot.slane %v493, 7
      %v535 = vrot.slane %v494, 7
      %v536 = vsel %vm533, %v534, %v535
      %v537 = vrot.slane %v453, 7
      %v538 = vrot.slane %v454, 7
      %v539 = vsel %vm533, %v537, %v538
      %v540 = vrot.slane %v455, 7
      %v541 = vrot.slane %v456, 7
      %v542 = vsel %vm533, %v540, %v541
      %v543 = vrot.slane %v457, 7
      %v544 = vrot.slane %v458, 7
      %v545 = vsel %vm533, %v543, %v544
      %v546 = vrot.slane %v459, 7
      %v547 = vrot.slane %v460, 7
      %v548 = vsel %vm533, %v546, %v547
      %v549 = vrot.slane %v461, 7
      %v550 = vrot.slane %v462, 7
      %v551 = vsel %vm533, %v549, %v550
      %v552 = vrot.slane %v463, 7
      %v553 = vrot.slane %v464, 7
      %v554 = vsel %vm533, %v552, %v553
      %v555 = vrot.slane %v465, 7
      %v556 = vrot.slane %v466, 7
      %v557 = vsel %vm533, %v555, %v556
      %v558 = vrot.slane %v467, 7
      %v559 = vrot.slane %v468, 7
      %v560 = vsel %vm533, %v558, %v559
      %v561 = vrot.slane %v469, 7
      %v562 = vrot.slane %v470, 7
      %v563 = vsel %vm533, %v561, %v562
      %v564 = vrot.slane %v471, 7
      %v565 = vrot.slane %v472, 7
      %v566 = vsel %vm533, %v564, %v565
      %v567 = vrot.slane %v473, 7
      %v568 = vrot.slane %v474, 7
      %v569 = vsel %vm533, %v567, %v568
      %v570 = vrot.slane %v475, 7
      %v571 = vrot.slane %v476, 7
      %v572 = vsel %vm533, %v570, %v571
      %v573 = vrot.slane %v477, 7
      %v574 = vrot.slane %v478, 7
      %v575 = vsel %vm533, %v573, %v574
      %v576 = vrot.slane %v479, 7
      %v577 = vrot.slane %v480, 7
      %v578 = vsel %vm533, %v576, %v577
      %v579 = vrot.slane %v481, 7
      %v580 = vrot.slane %v482, 7
      %v581 = vsel %vm533, %v579, %v580
      %v582 = vrot.slane %v483, 7
      %v583 = vrot.slane %v484, 7
      %v584 = vsel %vm533, %v582, %v583
      %v585 = vrot.slane %v495, 7
      %v586 = vrot.slane %v496, 7
      %v587 = vsel %vm533, %v585, %v586
      %v624 = vsel %vm533, 0.0, %v534
      %v625 = vsel %vm533, 0.0, %v537
      %v626 = vsel %vm533, 0.0, %v540
      %v627 = vsel %vm533, 0.0, %v543
      %v628 = vsel %vm533, 0.0, %v546
      %v629 = vsel %vm533, 0.0, %v549
      %v630 = vsel %vm533, 0.0, %v552
      %v631 = vsel %vm533, 0.0, %v555
      %v632 = vsel %vm533, 0.0, %v558
      %v633 = vsel %vm533, 0.0, %v561
      %v634 = vsel %vm533, 0.0, %v564
      %v635 = vsel %vm533, 0.0, %v567
      %v636 = vsel %vm533, 0.0, %v570
      %v637 = vsel %vm533, 0.0, %v573
      %v638 = vsel %vm533, 0.0, %v576
      %v639 = vsel %vm533, 0.0, %v579
      %v640 = vsel %vm533, 0.0, %v582
      %v641 = vsel %vm533, 0.0, %v585
      %vm642 = vcmask 1046528
      %v643 = vrot.slane %v493, 1
      %v644 = vrot.slane %v494, 1
      %v645 = vsel %vm642, %v643, %v644
      %v646 = vrot.slane %v453, 1
      %v647 = vrot.slane %v454, 1
      %v648 = vsel %vm642, %v646, %v647
      %v649 = vrot.slane %v455, 1
      %v650 = vrot.slane %v456, 1
      %v651 = vsel %vm642, %v649, %v650
      %v652 = vrot.slane %v457, 1
      %v653 = vrot.slane %v458, 1
      %v654 = vsel %vm642, %v652, %v653
      %v655 = vrot.slane %v459, 1
      %v656 = vrot.slane %v460, 1
      %v657 = vsel %vm642, %v655, %v656
      %v658 = vrot.slane %v461, 1
      %v659 = vrot.slane %v462, 1
      %v660 = vsel %vm642, %v658, %v659
      %v661 = vrot.slane %v463, 1
      %v662 = vrot.slane %v464, 1
      %v663 = vsel %vm642, %v661, %v662
      %v664 = vrot.slane %v465, 1
      %v665 = vrot.slane %v466, 1
      %v666 = vsel %vm642, %v664, %v665
      %v667 = vrot.slane %v467, 1
      %v668 = vrot.slane %v468, 1
      %v669 = vsel %vm642, %v667, %v668
      %v670 = vrot.slane %v469, 1
      %v671 = vrot.slane %v470, 1
      %v672 = vsel %vm642, %v670, %v671
      %v673 = vrot.slane %v471, 1
      %v674 = vrot.slane %v472, 1
      %v675 = vsel %vm642, %v673, %v674
      %v676 = vrot.slane %v473, 1
      %v677 = vrot.slane %v474, 1
      %v678 = vsel %vm642, %v676, %v677
      %v679 = vrot.slane %v475, 1
      %v680 = vrot.slane %v476, 1
      %v681 = vsel %vm642, %v679, %v680
      %v682 = vrot.slane %v477, 1
      %v683 = vrot.slane %v478, 1
      %v684 = vsel %vm642, %v682, %v683
      %v685 = vrot.slane %v479, 1
      %v686 = vrot.slane %v480, 1
      %v687 = vsel %vm642, %v685, %v686
      %v688 = vrot.slane %v481, 1
      %v689 = vrot.slane %v482, 1
      %v690 = vsel %vm642, %v688, %v689
      %v691 = vrot.slane %v483, 1
      %v692 = vrot.slane %v484, 1
      %v693 = vsel %vm642, %v691, %v692
      %v694 = vrot.slane %v495, 1
      %v695 = vrot.slane %v496, 1
      %v696 = vsel %vm642, %v694, %v695
      %v715 = vsel %vm642, %v644, 0.0
      %v716 = vsel %vm642, %v647, 0.0
      %v717 = vsel %vm642, %v650, 0.0
      %v718 = vsel %vm642, %v653, 0.0
      %v719 = vsel %vm642, %v656, 0.0
      %v720 = vsel %vm642, %v659, 0.0
      %v721 = vsel %vm642, %v662, 0.0
      %v722 = vsel %vm642, %v665, 0.0
      %v723 = vsel %vm642, %v668, 0.0
      %v724 = vsel %vm642, %v671, 0.0
      %v725 = vsel %vm642, %v674, 0.0
      %v726 = vsel %vm642, %v677, 0.0
      %v727 = vsel %vm642, %v680, 0.0
      %v728 = vsel %vm642, %v683, 0.0
      %v729 = vsel %vm642, %v686, 0.0
      %v730 = vsel %vm642, %v689, 0.0
      %v731 = vsel %vm642, %v692, 0.0
      %v732 = vsel %vm642, %v695, 0.0
      %733 = vrot.lane.b32.xlu0 %v493, 4
      %v734 = vpop.permute.xlu0 %733
      %735 = vrot.lane.b32.xlu0 %v494, 4
      %v736 = vpop.permute.xlu0 %735
      %737 = vrot.lane.b32.xlu0 %v453, 4
      %v738 = vpop.permute.xlu0 %737
      %739 = vrot.lane.b32.xlu0 %v454, 4
      %v740 = vpop.permute.xlu0 %739
      %741 = vrot.lane.b32.xlu0 %v455, 4
      %v742 = vpop.permute.xlu0 %741
      %743 = vrot.lane.b32.xlu0 %v456, 4
      %v744 = vpop.permute.xlu0 %743
      %745 = vrot.lane.b32.xlu0 %v457, 4
      %v746 = vpop.permute.xlu0 %745
      %747 = vrot.lane.b32.xlu0 %v458, 4
      %v748 = vpop.permute.xlu0 %747
      %749 = vrot.lane.b32.xlu0 %v459, 4
      %v750 = vpop.permute.xlu0 %749
      %751 = vrot.lane.b32.xlu0 %v460, 4
      %v752 = vpop.permute.xlu0 %751
      %753 = vrot.lane.b32.xlu0 %v461, 4
      %v754 = vpop.permute.xlu0 %753
      %755 = vrot.lane.b32.xlu0 %v462, 4
      %v756 = vpop.permute.xlu0 %755
      %757 = vrot.lane.b32.xlu0 %v463, 4
      %v758 = vpop.permute.xlu0 %757
      %759 = vrot.lane.b32.xlu0 %v464, 4
      %v760 = vpop.permute.xlu0 %759
      %761 = vrot.lane.b32.xlu0 %v465, 4
      %v762 = vpop.permute.xlu0 %761
      %763 = vrot.lane.b32.xlu0 %v466, 4
      %v764 = vpop.permute.xlu0 %763
      %765 = vrot.lane.b32.xlu0 %v467, 4
      %v766 = vpop.permute.xlu0 %765
      %767 = vrot.lane.b32.xlu0 %v468, 4
      %v768 = vpop.permute.xlu0 %767
      %769 = vrot.lane.b32.xlu0 %v469, 4
      %v770 = vpop.permute.xlu0 %769
      %771 = vrot.lane.b32.xlu0 %v470, 4
      %v772 = vpop.permute.xlu0 %771
      %773 = vrot.lane.b32.xlu0 %v471, 4
      %v774 = vpop.permute.xlu0 %773
      %775 = vrot.lane.b32.xlu0 %v472, 4
      %v776 = vpop.permute.xlu0 %775
      %777 = vrot.lane.b32.xlu0 %v473, 4
      %v778 = vpop.permute.xlu0 %777
      %779 = vrot.lane.b32.xlu0 %v474, 4
      %v780 = vpop.permute.xlu0 %779
      %781 = vrot.lane.b32.xlu0 %v475, 4
      %v782 = vpop.permute.xlu0 %781
      %783 = vrot.lane.b32.xlu0 %v476, 4
      %v784 = vpop.permute.xlu0 %783
      %785 = vrot.lane.b32.xlu0 %v477, 4
      %v786 = vpop.permute.xlu0 %785
      %787 = vrot.lane.b32.xlu0 %v478, 4
      %v788 = vpop.permute.xlu0 %787
      %789 = vrot.lane.b32.xlu0 %v479, 4
      %v790 = vpop.permute.xlu0 %789
      %791 = vrot.lane.b32.xlu0 %v480, 4
      %v792 = vpop.permute.xlu0 %791
      %793 = vrot.lane.b32.xlu0 %v481, 4
      %v794 = vpop.permute.xlu0 %793
      %795 = vrot.lane.b32.xlu0 %v482, 4
      %v796 = vpop.permute.xlu0 %795
      %797 = vrot.lane.b32.xlu0 %v483, 4
      %v798 = vpop.permute.xlu0 %797
      %799 = vrot.lane.b32.xlu0 %v484, 4
      %v800 = vpop.permute.xlu0 %799
      %801 = vrot.lane.b32.xlu0 %v495, 4
      %v802 = vpop.permute.xlu0 %801
      %803 = vrot.lane.b32.xlu0 %v496, 4
      %v804 = vpop.permute.xlu0 %803
      %859 = vrot.lane.b32.xlu0 %v645, 8
      %v860 = vpop.permute.xlu0 %859
      %861 = vrot.lane.b32.xlu0 %v715, 8
      %v862 = vpop.permute.xlu0 %861
      %863 = vrot.lane.b32.xlu0 %v648, 8
      %v864 = vpop.permute.xlu0 %863
      %865 = vrot.lane.b32.xlu0 %v716, 8
      %v866 = vpop.permute.xlu0 %865
      %867 = vrot.lane.b32.xlu0 %v651, 8
      %v868 = vpop.permute.xlu0 %867
      %869 = vrot.lane.b32.xlu0 %v717, 8
      %v870 = vpop.permute.xlu0 %869
      %871 = vrot.lane.b32.xlu0 %v654, 8
      %v872 = vpop.permute.xlu0 %871
      %873 = vrot.lane.b32.xlu0 %v718, 8
      %v874 = vpop.permute.xlu0 %873
      %875 = vrot.lane.b32.xlu0 %v657, 8
      %v876 = vpop.permute.xlu0 %875
      %877 = vrot.lane.b32.xlu0 %v719, 8
      %v878 = vpop.permute.xlu0 %877
      %879 = vrot.lane.b32.xlu0 %v660, 8
      %v880 = vpop.permute.xlu0 %879
      %881 = vrot.lane.b32.xlu0 %v720, 8
      %v882 = vpop.permute.xlu0 %881
      %883 = vrot.lane.b32.xlu0 %v663, 8
      %v884 = vpop.permute.xlu0 %883
      %885 = vrot.lane.b32.xlu0 %v721, 8
      %v886 = vpop.permute.xlu0 %885
      %887 = vrot.lane.b32.xlu0 %v666, 8
      %v888 = vpop.permute.xlu0 %887
      %889 = vrot.lane.b32.xlu0 %v722, 8
      %v890 = vpop.permute.xlu0 %889
      %891 = vrot.lane.b32.xlu0 %v669, 8
      %v892 = vpop.permute.xlu0 %891
      %893 = vrot.lane.b32.xlu0 %v723, 8
      %v894 = vpop.permute.xlu0 %893
      %895 = vrot.lane.b32.xlu0 %v672, 8
      %v896 = vpop.permute.xlu0 %895
      %897 = vrot.lane.b32.xlu0 %v724, 8
      %v898 = vpop.permute.xlu0 %897
      %899 = vrot.lane.b32.xlu0 %v675, 8
      %v900 = vpop.permute.xlu0 %899
      %901 = vrot.lane.b32.xlu0 %v725, 8
      %v902 = vpop.permute.xlu0 %901
      %903 = vrot.lane.b32.xlu0 %v678, 8
      %v904 = vpop.permute.xlu0 %903
      %905 = vrot.lane.b32.xlu0 %v726, 8
      %v906 = vpop.permute.xlu0 %905
      %907 = vrot.lane.b32.xlu0 %v681, 8
      %v908 = vpop.permute.xlu0 %907
      %909 = vrot.lane.b32.xlu0 %v727, 8
      %v910 = vpop.permute.xlu0 %909
      %911 = vrot.lane.b32.xlu0 %v684, 8
      %v912 = vpop.permute.xlu0 %911
      %913 = vrot.lane.b32.xlu0 %v728, 8
      %v914 = vpop.permute.xlu0 %913
      %915 = vrot.lane.b32.xlu0 %v687, 8
      %v916 = vpop.permute.xlu0 %915
      %917 = vrot.lane.b32.xlu0 %v729, 8
      %v918 = vpop.permute.xlu0 %917
      %919 = vrot.lane.b32.xlu0 %v690, 8
      %v920 = vpop.permute.xlu0 %919
      %921 = vrot.lane.b32.xlu0 %v730, 8
      %v922 = vpop.permute.xlu0 %921
      %923 = vrot.lane.b32.xlu0 %v693, 8
      %v924 = vpop.permute.xlu0 %923
      %925 = vrot.lane.b32.xlu0 %v731, 8
      %v926 = vpop.permute.xlu0 %925
      %927 = vrot.lane.b32.xlu0 %v696, 8
      %v928 = vpop.permute.xlu0 %927
      %929 = vrot.lane.b32.xlu0 %v732, 8
      %v930 = vpop.permute.xlu0 %929
      %vm967 = vcmask 31744
      %v968 = vsel %vm967, %v624, %v734
      %v969 = vsel %vm967, %v536, %v736
      %v970 = vsel %vm967, %v625, %v738
      %v971 = vsel %vm967, %v539, %v740
      %v972 = vsel %vm967, %v626, %v742
      %v973 = vsel %vm967, %v542, %v744
      %v974 = vsel %vm967, %v627, %v746
      %v975 = vsel %vm967, %v545, %v748
      %v976 = vsel %vm967, %v628, %v750
      %v977 = vsel %vm967, %v548, %v752
      %v978 = vsel %vm967, %v629, %v754
      %v979 = vsel %vm967, %v551, %v756
      %v980 = vsel %vm967, %v630, %v758
      %v981 = vsel %vm967, %v554, %v760
      %v982 = vsel %vm967, %v631, %v762
      %v983 = vsel %vm967, %v557, %v764
      %v984 = vsel %vm967, %v632, %v766
      %v985 = vsel %vm967, %v560, %v768
      %v986 = vsel %vm967, %v633, %v770
      %v987 = vsel %vm967, %v563, %v772
      %v988 = vsel %vm967, %v634, %v774
      %v989 = vsel %vm967, %v566, %v776
      %v990 = vsel %vm967, %v635, %v778
      %v991 = vsel %vm967, %v569, %v780
      %v992 = vsel %vm967, %v636, %v782
      %v993 = vsel %vm967, %v572, %v784
      %v994 = vsel %vm967, %v637, %v786
      %v995 = vsel %vm967, %v575, %v788
      %v996 = vsel %vm967, %v638, %v790
      %v997 = vsel %vm967, %v578, %v792
      %v998 = vsel %vm967, %v639, %v794
      %v999 = vsel %vm967, %v581, %v796
      %v1000 = vsel %vm967, %v640, %v798
      %v1001 = vsel %vm967, %v584, %v800
      %v1002 = vsel %vm967, %v641, %v802
      %v1003 = vsel %vm967, %v587, %v804
      %vm1004 = vcmask 64512
      %v1005 = vsel %vm1004, %v968, %v860
      %v1006 = vsel %vm1004, %v969, %v862
      %v1007 = vsel %vm1004, %v970, %v864
      %v1008 = vsel %vm1004, %v971, %v866
      %v1009 = vsel %vm1004, %v972, %v868
      %v1010 = vsel %vm1004, %v973, %v870
      %v1011 = vsel %vm1004, %v974, %v872
      %v1012 = vsel %vm1004, %v975, %v874
      %v1013 = vsel %vm1004, %v976, %v876
      %v1014 = vsel %vm1004, %v977, %v878
      %v1015 = vsel %vm1004, %v978, %v880
      %v1016 = vsel %vm1004, %v979, %v882
      %v1017 = vsel %vm1004, %v980, %v884
      %v1018 = vsel %vm1004, %v981, %v886
      %v1019 = vsel %vm1004, %v982, %v888
      %v1020 = vsel %vm1004, %v983, %v890
      %v1021 = vsel %vm1004, %v984, %v892
      %v1022 = vsel %vm1004, %v985, %v894
      %v1023 = vsel %vm1004, %v986, %v896
      %v1024 = vsel %vm1004, %v987, %v898
      %v1025 = vsel %vm1004, %v988, %v900
      %v1026 = vsel %vm1004, %v989, %v902
      %v1027 = vsel %vm1004, %v990, %v904
      %v1028 = vsel %vm1004, %v991, %v906
      %v1029 = vsel %vm1004, %v992, %v908
      %v1030 = vsel %vm1004, %v993, %v910
      %v1031 = vsel %vm1004, %v994, %v912
      %v1032 = vsel %vm1004, %v995, %v914
      %v1033 = vsel %vm1004, %v996, %v916
      %v1034 = vsel %vm1004, %v997, %v918
      %v1035 = vsel %vm1004, %v998, %v920
      %v1036 = vsel %vm1004, %v999, %v922
      %v1037 = vsel %vm1004, %v1000, %v924
      %v1038 = vsel %vm1004, %v1001, %v926
      %v1039 = vsel %vm1004, %v1002, %v928
      %v1040 = vsel %vm1004, %v1003, %v930
      %v1041 = vld [vmem:[%s3] sm:$0xff]
      %v1042 = vld [vmem:[%s3 + $0x8] sm:$0xf]
      %s1043 = scalar_lea.vmem %s3, 16
      %v1044 = vld [vmem:[%s1043] sm:$0xff]
      %v1045 = vld [vmem:[%s1043 + $0x8] sm:$0xf]
      %vm1046 = vcmask 97280
      %v1048 = vsel %vm1046, %v1007, 0
      %v1051 = vsel %vm1046, %v1008, 0
      %v1054 = vsel %vm1046, %v1009, 0
      %v1057 = vsel %vm1046, %v1010, 0
      %v1060 = vsel %vm1046, %v1011, 0
      %v1063 = vsel %vm1046, %v1012, 0
      %v1066 = vsel %vm1046, %v1013, 0
      %v1069 = vsel %vm1046, %v1014, 0
      %v1072 = vsel %vm1046, %v1015, 0
      %v1075 = vsel %vm1046, %v1016, 0
      %v1078 = vsel %vm1046, %v1017, 0
      %v1081 = vsel %vm1046, %v1018, 0
      %v1084 = vsel %vm1046, %v1019, 0
      %v1087 = vsel %vm1046, %v1020, 0
      %v1090 = vsel %vm1046, %v1021, 0
      %v1093 = vsel %vm1046, %v1022, 0
      %v1096 = vsel %vm1046, %v1023, 0
      %v1099 = vsel %vm1046, %v1024, 0
      %v1102 = vsel %vm1046, %v1025, 0
      %v1105 = vsel %vm1046, %v1026, 0
      %v1108 = vsel %vm1046, %v1027, 0
      %v1111 = vsel %vm1046, %v1028, 0
      %v1114 = vsel %vm1046, %v1029, 0
      %v1117 = vsel %vm1046, %v1030, 0
      %v1120 = vsel %vm1046, %v1031, 0
      %v1123 = vsel %vm1046, %v1032, 0
      %v1126 = vsel %vm1046, %v1033, 0
      %v1129 = vsel %vm1046, %v1034, 0
      %v1132 = vsel %vm1046, %v1035, 0
      %v1135 = vsel %vm1046, %v1036, 0
      %v1138 = vsel %vm1046, %v1037, 0
      %v1141 = vsel %vm1046, %v1038, 0
      %vm1143 = vcmask 1043456
      %v1145 = vsel %vm1143, %v1045, 0
      %1147 = vmatprep.subr.mxu0 0.0
      %1148 = vmatpush1.msra.mxu0 %v1044
      %1149 = vmatprep.subr.mxu0 0.0
      %1150 = vmatpush1.msra.mxu0 %v1145
      %1151 = vmatprep.subr.mxu0 0.0
      %1152 = vmatpush1.msra.mxu0 0.0
      %1153 = vmatprep.subr.mxu0 0.0
      %1154 = vmatpush1.msra.mxu0 0.0
      %1155 = vmatprep.subr.mxu0 0.0
      %1156 = vmatpush1.msra.mxu0 0.0
      %1157 = vmatprep.subr.mxu0 0.0
      %1158 = vmatpush1.msra.mxu0 0.0
      %1159 = vmatprep.subr.mxu0 0.0
      %1160 = vmatpush1.msra.mxu0 0.0
      %1161 = vmatprep.subr.mxu0 0.0
      %1162 = vmatpush1.msra.mxu0 0.0
      %1163 = vmatprep.subr.mxu0 0.0
      %1164 = vmatpush1.msra.mxu0 0.0
      %1165 = vmatprep.subr.mxu0 0.0
      %1166 = vmatpush1.msra.mxu0 0.0
      %1167 = vmatprep.subr.mxu0 0.0
      %1168 = vmatpush1.msra.mxu0 0.0
      %1169 = vmatprep.subr.mxu0 0.0
      %1170 = vmatpush1.msra.mxu0 0.0
      %1171 = vmatprep.subr.mxu0 0.0
      %1172 = vmatpush1.msra.mxu0 0.0
      %1173 = vmatprep.subr.mxu0 0.0
      %1174 = vmatpush1.msra.mxu0 0.0
      %1175 = vmatprep.subr.mxu0 0.0
      %1176 = vmatpush1.msra.mxu0 0.0
      %1177 = vmatprep.subr.mxu0 0.0
      %1178 = vmatpush1.msra.mxu0 0.0
      %1179 = vmatprep.subr.mxu0 0.0
      %1180 = vmatpush1.msra.mxu0 0.0
      %1181 = vmatprep.subr.mxu0 0.0
      %1182 = vmatpush1.msra.mxu0 0.0
      %1183 = vmatprep.subr.mxu0 0.0
      %1184 = vmatpush1.msra.mxu0 0.0
      %1185 = vmatprep.subr.mxu0 0.0
      %1186 = vmatpush1.msra.mxu0 0.0
      %1187 = vmatprep.subr.mxu0 0.0
      %1188 = vmatpush1.msra.mxu0 0.0
      %1189 = vmatprep.subr.mxu0 0.0
      %1190 = vmatpush1.msra.mxu0 0.0
      %1191 = vmatprep.subr.mxu0 0.0
      %1192 = vmatpush1.msra.mxu0 0.0
      %1193 = vmatprep.subr.mxu0 0.0
      %1194 = vmatpush1.msra.mxu0 0.0
      %1195 = vmatprep.subr.mxu0 0.0
      %1196 = vmatpush1.msra.mxu0 0.0
      %1197 = vmatprep.subr.mxu0 0.0
      %1198 = vmatpush1.msra.mxu0 0.0
      %1199 = vmatprep.subr.mxu0 0.0
      %1200 = vmatpush1.msra.mxu0 0.0
      %1201 = vmatprep.subr.mxu0 0.0
      %1202 = vmatpush1.msra.mxu0 0.0
      %1203 = vmatprep.subr.mxu0 0.0
      %1204 = vmatpush1.msra.mxu0 0.0
      %1205 = vmatprep.subr.mxu0 0.0
      %1206 = vmatpush1.msra.mxu0 0.0
      %1207 = vmatprep.subr.mxu0 0.0
      %1208 = vmatpush1.msra.mxu0 0.0
      %1209 = vmatprep.subr.mxu0 0.0
      %1210 = vmatpush1.msra.mxu0 0.0
      %1211 = vmatprep.mubr.f32.mxu0 0.0
      %1212 = vmatmul.mubr.f32.gmra.mrb[0].mxu0 %v1048
      %v1213 = vpop.f32.mrb[0].mxu0
      %v1214 = vadd.f32 0.0, %v1213
      %v1215 = vpop.f32.mrb[0].mxu0
      %1216 = vmatprep.mubr.f32.mxu0 0.0
      %1217 = vmatmul.mubr.f32.gmra.mrb[0].mxu0 %v1051
      %v1218 = vpop.f32.mrb[0].mxu0
      %v1219 = vadd.f32 0.0, %v1218
      %v1220 = vpop.f32.mrb[0].mxu0
      %1221 = vmatprep.mubr.f32.mxu0 0.0
      %1222 = vmatmul.mubr.f32.gmra.mrb[0].mxu0 %v1054
      %v1223 = vpop.f32.mrb[0].mxu0
      %v1224 = vadd.f32 0.0, %v1223
      %v1225 = vpop.f32.mrb[0].mxu0
      %1226 = vmatprep.mubr.f32.mxu0 0.0
      %1227 = vmatmul.mubr.f32.gmra.mrb[0].mxu0 %v1057
      %v1228 = vpop.f32.mrb[0].mxu0
      %v1229 = vadd.f32 0.0, %v1228
      %v1230 = vpop.f32.mrb[0].mxu0
      %1231 = vmatprep.mubr.f32.mxu0 0.0
      %1232 = vmatmul.mubr.f32.gmra.mrb[0].mxu0 %v1060
      %v1233 = vpop.f32.mrb[0].mxu0
      %v1234 = vadd.f32 0.0, %v1233
      %v1235 = vpop.f32.mrb[0].mxu0
      %1236 = vmatprep.mubr.f32.mxu0 0.0
      %1237 = vmatmul.mubr.f32.gmra.mrb[0].mxu0 %v1063
      %v1238 = vpop.f32.mrb[0].mxu0
      %v1239 = vadd.f32 0.0, %v1238
      %v1240 = vpop.f32.mrb[0].mxu0
      %1241 = vmatprep.mubr.f32.mxu0 0.0
      %1242 = vmatmul.mubr.f32.gmra.mrb[0].mxu0 %v1066
      %v1243 = vpop.f32.mrb[0].mxu0
      %v1244 = vadd.f32 0.0, %v1243
      %v1245 = vpop.f32.mrb[0].mxu0
      %1246 = vmatprep.mubr.f32.mxu0 0.0
      %1247 = vmatmul.mubr.f32.gmra.mrb[0].mxu0 %v1069
      %v1248 = vpop.f32.mrb[0].mxu0
      %v1249 = vadd.f32 0.0, %v1248
      %v1250 = vpop.f32.mrb[0].mxu0
      %1251 = vmatprep.mubr.f32.mxu0 0.0
      %1252 = vmatmul.mubr.f32.gmra.mrb[0].mxu0 %v1072
      %v1253 = vpop.f32.mrb[0].mxu0
      %v1254 = vadd.f32 0.0, %v1253
      %v1255 = vpop.f32.mrb[0].mxu0
      %1256 = vmatprep.mubr.f32.mxu0 0.0
      %1257 = vmatmul.mubr.f32.gmra.mrb[0].mxu0 %v1075
      %v1258 = vpop.f32.mrb[0].mxu0
      %v1259 = vadd.f32 0.0, %v1258
      %v1260 = vpop.f32.mrb[0].mxu0
      %1261 = vmatprep.mubr.f32.mxu0 0.0
      %1262 = vmatmul.mubr.f32.gmra.mrb[0].mxu0 %v1078
      %v1263 = vpop.f32.mrb[0].mxu0
      %v1264 = vadd.f32 0.0, %v1263
      %v1265 = vpop.f32.mrb[0].mxu0
      %1266 = vmatprep.mubr.f32.mxu0 0.0
      %1267 = vmatmul.mubr.f32.gmra.mrb[0].mxu0 %v1081
      %v1268 = vpop.f32.mrb[0].mxu0
      %v1269 = vadd.f32 0.0, %v1268
      %v1270 = vpop.f32.mrb[0].mxu0
      %1271 = vmatprep.mubr.f32.mxu0 0.0
      %1272 = vmatmul.mubr.f32.gmra.mrb[0].mxu0 %v1084
      %v1273 = vpop.f32.mrb[0].mxu0
      %v1274 = vadd.f32 0.0, %v1273
      %v1275 = vpop.f32.mrb[0].mxu0
      %1276 = vmatprep.mubr.f32.mxu0 0.0
      %1277 = vmatmul.mubr.f32.gmra.mrb[0].mxu0 %v1087
      %v1278 = vpop.f32.mrb[0].mxu0
      %v1279 = vadd.f32 0.0, %v1278
      %v1280 = vpop.f32.mrb[0].mxu0
      %1281 = vmatprep.mubr.f32.mxu0 0.0
      %1282 = vmatmul.mubr.f32.gmra.mrb[0].mxu0 %v1090
      %v1283 = vpop.f32.mrb[0].mxu0
      %v1284 = vadd.f32 0.0, %v1283
      %v1285 = vpop.f32.mrb[0].mxu0
      %1286 = vmatprep.mubr.f32.mxu0 0.0
      %1287 = vmatmul.mubr.f32.gmra.mrb[0].mxu0 %v1093
      %v1288 = vpop.f32.mrb[0].mxu0
      %v1289 = vadd.f32 0.0, %v1288
      %v1290 = vpop.f32.mrb[0].mxu0
      %1291 = vmatprep.mubr.f32.mxu0 0.0
      %1292 = vmatmul.mubr.f32.gmra.mrb[0].mxu0 %v1096
      %v1293 = vpop.f32.mrb[0].mxu0
      %v1294 = vadd.f32 0.0, %v1293
      %v1295 = vpop.f32.mrb[0].mxu0
      %1296 = vmatprep.mubr.f32.mxu0 0.0
      %1297 = vmatmul.mubr.f32.gmra.mrb[0].mxu0 %v1099
      %v1298 = vpop.f32.mrb[0].mxu0
      %v1299 = vadd.f32 0.0, %v1298
      %v1300 = vpop.f32.mrb[0].mxu0
      %1301 = vmatprep.mubr.f32.mxu0 0.0
      %1302 = vmatmul.mubr.f32.gmra.mrb[0].mxu0 %v1102
      %v1303 = vpop.f32.mrb[0].mxu0
      %v1304 = vadd.f32 0.0, %v1303
      %v1305 = vpop.f32.mrb[0].mxu0
      %1306 = vmatprep.mubr.f32.mxu0 0.0
      %1307 = vmatmul.mubr.f32.gmra.mrb[0].mxu0 %v1105
      %v1308 = vpop.f32.mrb[0].mxu0
      %v1309 = vadd.f32 0.0, %v1308
      %v1310 = vpop.f32.mrb[0].mxu0
      %1311 = vmatprep.mubr.f32.mxu0 0.0
      %1312 = vmatmul.mubr.f32.gmra.mrb[0].mxu0 %v1108
      %v1313 = vpop.f32.mrb[0].mxu0
      %v1314 = vadd.f32 0.0, %v1313
      %v1315 = vpop.f32.mrb[0].mxu0
      %1316 = vmatprep.mubr.f32.mxu0 0.0
      %1317 = vmatmul.mubr.f32.gmra.mrb[0].mxu0 %v1111
      %v1318 = vpop.f32.mrb[0].mxu0
      %v1319 = vadd.f32 0.0, %v1318
      %v1320 = vpop.f32.mrb[0].mxu0
      %1321 = vmatprep.mubr.f32.mxu0 0.0
      %1322 = vmatmul.mubr.f32.gmra.mrb[0].mxu0 %v1114
      %v1323 = vpop.f32.mrb[0].mxu0
      %v1324 = vadd.f32 0.0, %v1323
      %v1325 = vpop.f32.mrb[0].mxu0
      %1326 = vmatprep.mubr.f32.mxu0 0.0
      %1327 = vmatmul.mubr.f32.gmra.mrb[0].mxu0 %v1117
      %v1328 = vpop.f32.mrb[0].mxu0
      %v1329 = vadd.f32 0.0, %v1328
      %v1330 = vpop.f32.mrb[0].mxu0
      %1331 = vmatprep.mubr.f32.mxu0 0.0
      %1332 = vmatmul.mubr.f32.gmra.mrb[0].mxu0 %v1120
      %v1333 = vpop.f32.mrb[0].mxu0
      %v1334 = vadd.f32 0.0, %v1333
      %v1335 = vpop.f32.mrb[0].mxu0
      %1336 = vmatprep.mubr.f32.mxu0 0.0
      %1337 = vmatmul.mubr.f32.gmra.mrb[0].mxu0 %v1123
      %v1338 = vpop.f32.mrb[0].mxu0
      %v1339 = vadd.f32 0.0, %v1338
      %v1340 = vpop.f32.mrb[0].mxu0
      %1341 = vmatprep.mubr.f32.mxu0 0.0
      %1342 = vmatmul.mubr.f32.gmra.mrb[0].mxu0 %v1126
      %v1343 = vpop.f32.mrb[0].mxu0
      %v1344 = vadd.f32 0.0, %v1343
      %v1345 = vpop.f32.mrb[0].mxu0
      %1346 = vmatprep.mubr.f32.mxu0 0.0
      %1347 = vmatmul.mubr.f32.gmra.mrb[0].mxu0 %v1129
      %v1348 = vpop.f32.mrb[0].mxu0
      %v1349 = vadd.f32 0.0, %v1348
      %v1350 = vpop.f32.mrb[0].mxu0
      %1351 = vmatprep.mubr.f32.mxu0 0.0
      %1352 = vmatmul.mubr.f32.gmra.mrb[0].mxu0 %v1132
      %v1353 = vpop.f32.mrb[0].mxu0
      %v1354 = vadd.f32 0.0, %v1353
      %v1355 = vpop.f32.mrb[0].mxu0
      %1356 = vmatprep.mubr.f32.mxu0 0.0
      %1357 = vmatmul.mubr.f32.gmra.mrb[0].mxu0 %v1135
      %v1358 = vpop.f32.mrb[0].mxu0
      %v1359 = vadd.f32 0.0, %v1358
      %v1360 = vpop.f32.mrb[0].mxu0
      %1361 = vmatprep.mubr.f32.mxu0 0.0
      %1362 = vmatmul.mubr.f32.gmra.mrb[0].mxu0 %v1138
      %v1363 = vpop.f32.mrb[0].mxu0
      %v1364 = vadd.f32 0.0, %v1363
      %v1365 = vpop.f32.mrb[0].mxu0
      %1366 = vmatprep.mubr.f32.mxu0 0.0
      %1367 = vmatmul.mubr.f32.gmra.mrb[0].mxu0 %v1141
      %v1368 = vpop.f32.mrb[0].mxu0
      %v1369 = vadd.f32 0.0, %v1368
      %v1370 = vpop.f32.mrb[0].mxu0
      %1371 = vdwg.mxu0
      %v1373 = vsel %vm1046, %v1005, 0
      %v1376 = vsel %vm1046, %v1006, 0
      %v1379 = vsel %vm1143, %v1042, 0
      %1381 = vmatprep.subr.mxu0 0.0
      %1382 = vmatpush1.msra.mxu0 %v1041
      %1383 = vmatprep.subr.mxu0 0.0
      %1384 = vmatpush1.msra.mxu0 %v1379
      %1385 = vmatprep.subr.mxu0 0.0
      %1386 = vmatpush1.msra.mxu0 0.0
      %1387 = vmatprep.subr.mxu0 0.0
      %1388 = vmatpush1.msra.mxu0 0.0
      %1389 = vmatprep.subr.mxu0 0.0
      %1390 = vmatpush1.msra.mxu0 0.0
      %1391 = vmatprep.subr.mxu0 0.0
      %1392 = vmatpush1.msra.mxu0 0.0
      %1393 = vmatprep.subr.mxu0 0.0
      %1394 = vmatpush1.msra.mxu0 0.0
      %1395 = vmatprep.subr.mxu0 0.0
      %1396 = vmatpush1.msra.mxu0 0.0
      %1397 = vmatprep.subr.mxu0 0.0
      %1398 = vmatpush1.msra.mxu0 0.0
      %1399 = vmatprep.subr.mxu0 0.0
      %1400 = vmatpush1.msra.mxu0 0.0
      %1401 = vmatprep.subr.mxu0 0.0
      %1402 = vmatpush1.msra.mxu0 0.0
      %1403 = vmatprep.subr.mxu0 0.0
      %1404 = vmatpush1.msra.mxu0 0.0
      %1405 = vmatprep.subr.mxu0 0.0
      %1406 = vmatpush1.msra.mxu0 0.0
      %1407 = vmatprep.subr.mxu0 0.0
      %1408 = vmatpush1.msra.mxu0 0.0
      %1409 = vmatprep.subr.mxu0 0.0
      %1410 = vmatpush1.msra.mxu0 0.0
      %1411 = vmatprep.subr.mxu0 0.0
      %1412 = vmatpush1.msra.mxu0 0.0
      %1413 = vmatprep.subr.mxu0 0.0
      %1414 = vmatpush1.msra.mxu0 0.0
      %1415 = vmatprep.subr.mxu0 0.0
      %1416 = vmatpush1.msra.mxu0 0.0
      %1417 = vmatprep.subr.mxu0 0.0
      %1418 = vmatpush1.msra.mxu0 0.0
      %1419 = vmatprep.subr.mxu0 0.0
      %1420 = vmatpush1.msra.mxu0 0.0
      %1421 = vmatprep.subr.mxu0 0.0
      %1422 = vmatpush1.msra.mxu0 0.0
      %1423 = vmatprep.subr.mxu0 0.0
      %1424 = vmatpush1.msra.mxu0 0.0
      %1425 = vmatprep.subr.mxu0 0.0
      %1426 = vmatpush1.msra.mxu0 0.0
      %1427 = vmatprep.subr.mxu0 0.0
      %1428 = vmatpush1.msra.mxu0 0.0
      %1429 = vmatprep.subr.mxu0 0.0
      %1430 = vmatpush1.msra.mxu0 0.0
      %1431 = vmatprep.subr.mxu0 0.0
      %1432 = vmatpush1.msra.mxu0 0.0
      %1433 = vmatprep.subr.mxu0 0.0
      %1434 = vmatpush1.msra.mxu0 0.0
      %1435 = vmatprep.subr.mxu0 0.0
      %1436 = vmatpush1.msra.mxu0 0.0
      %1437 = vmatprep.subr.mxu0 0.0
      %1438 = vmatpush1.msra.mxu0 0.0
      %1439 = vmatprep.subr.mxu0 0.0
      %1440 = vmatpush1.msra.mxu0 0.0
      %1441 = vmatprep.subr.mxu0 0.0
      %1442 = vmatpush1.msra.mxu0 0.0
      %1443 = vmatprep.subr.mxu0 0.0
      %1444 = vmatpush1.msra.mxu0 0.0
      %1445 = vmatprep.mubr.f32.mxu0 0.0
      %1446 = vmatmul.mubr.f32.gmra.mrb[0].mxu0 %v1373
      %v1447 = vpop.f32.mrb[0].mxu0
      %v1448 = vadd.f32 %v1214, %v1447
      %v1449 = vpop.f32.mrb[0].mxu0
      %1450 = vmatprep.mubr.f32.mxu0 0.0
      %1451 = vmatmul.mubr.f32.gmra.mrb[0].mxu0 %v1376
      %v1452 = vpop.f32.mrb[0].mxu0
      %v1453 = vadd.f32 %v1219, %v1452
      %v1454 = vpop.f32.mrb[0].mxu0
      %1455 = vmatprep.mubr.f32.mxu0 0.0
      %1456 = vmatmul.mubr.f32.gmra.mrb[0].mxu0 %v1048
      %v1457 = vpop.f32.mrb[0].mxu0
      %v1458 = vadd.f32 %v1224, %v1457
      %v1459 = vpop.f32.mrb[0].mxu0
      %1460 = vmatprep.mubr.f32.mxu0 0.0
      %1461 = vmatmul.mubr.f32.gmra.mrb[0].mxu0 %v1051
      %v1462 = vpop.f32.mrb[0].mxu0
      %v1463 = vadd.f32 %v1229, %v1462
      %v1464 = vpop.f32.mrb[0].mxu0
      %1465 = vmatprep.mubr.f32.mxu0 0.0
      %1466 = vmatmul.mubr.f32.gmra.mrb[0].mxu0 %v1054
      %v1467 = vpop.f32.mrb[0].mxu0
      %v1468 = vadd.f32 %v1234, %v1467
      %v1469 = vpop.f32.mrb[0].mxu0
      %1470 = vmatprep.mubr.f32.mxu0 0.0
      %1471 = vmatmul.mubr.f32.gmra.mrb[0].mxu0 %v1057
      %v1472 = vpop.f32.mrb[0].mxu0
      %v1473 = vadd.f32 %v1239, %v1472
      %v1474 = vpop.f32.mrb[0].mxu0
      %1475 = vmatprep.mubr.f32.mxu0 0.0
      %1476 = vmatmul.mubr.f32.gmra.mrb[0].mxu0 %v1060
      %v1477 = vpop.f32.mrb[0].mxu0
      %v1478 = vadd.f32 %v1244, %v1477
      %v1479 = vpop.f32.mrb[0].mxu0
      %1480 = vmatprep.mubr.f32.mxu0 0.0
      %1481 = vmatmul.mubr.f32.gmra.mrb[0].mxu0 %v1063
      %v1482 = vpop.f32.mrb[0].mxu0
      %v1483 = vadd.f32 %v1249, %v1482
      %v1484 = vpop.f32.mrb[0].mxu0
      %1485 = vmatprep.mubr.f32.mxu0 0.0
      %1486 = vmatmul.mubr.f32.gmra.mrb[0].mxu0 %v1066
      %v1487 = vpop.f32.mrb[0].mxu0
      %v1488 = vadd.f32 %v1254, %v1487
      %v1489 = vpop.f32.mrb[0].mxu0
      %1490 = vmatprep.mubr.f32.mxu0 0.0
      %1491 = vmatmul.mubr.f32.gmra.mrb[0].mxu0 %v1069
      %v1492 = vpop.f32.mrb[0].mxu0
      %v1493 = vadd.f32 %v1259, %v1492
      %v1494 = vpop.f32.mrb[0].mxu0
      %1495 = vmatprep.mubr.f32.mxu0 0.0
      %1496 = vmatmul.mubr.f32.gmra.mrb[0].mxu0 %v1072
      %v1497 = vpop.f32.mrb[0].mxu0
      %v1498 = vadd.f32 %v1264, %v1497
      %v1499 = vpop.f32.mrb[0].mxu0
      %1500 = vmatprep.mubr.f32.mxu0 0.0
      %1501 = vmatmul.mubr.f32.gmra.mrb[0].mxu0 %v1075
      %v1502 = vpop.f32.mrb[0].mxu0
      %v1503 = vadd.f32 %v1269, %v1502
      %v1504 = vpop.f32.mrb[0].mxu0
      %1505 = vmatprep.mubr.f32.mxu0 0.0
      %1506 = vmatmul.mubr.f32.gmra.mrb[0].mxu0 %v1078
      %v1507 = vpop.f32.mrb[0].mxu0
      %v1508 = vadd.f32 %v1274, %v1507
      %v1509 = vpop.f32.mrb[0].mxu0
      %1510 = vmatprep.mubr.f32.mxu0 0.0
      %1511 = vmatmul.mubr.f32.gmra.mrb[0].mxu0 %v1081
      %v1512 = vpop.f32.mrb[0].mxu0
      %v1513 = vadd.f32 %v1279, %v1512
      %v1514 = vpop.f32.mrb[0].mxu0
      %1515 = vmatprep.mubr.f32.mxu0 0.0
      %1516 = vmatmul.mubr.f32.gmra.mrb[0].mxu0 %v1084
      %v1517 = vpop.f32.mrb[0].mxu0
      %v1518 = vadd.f32 %v1284, %v1517
      %v1519 = vpop.f32.mrb[0].mxu0
      %1520 = vmatprep.mubr.f32.mxu0 0.0
      %1521 = vmatmul.mubr.f32.gmra.mrb[0].mxu0 %v1087
      %v1522 = vpop.f32.mrb[0].mxu0
      %v1523 = vadd.f32 %v1289, %v1522
      %v1524 = vpop.f32.mrb[0].mxu0
      %1525 = vmatprep.mubr.f32.mxu0 0.0
      %1526 = vmatmul.mubr.f32.gmra.mrb[0].mxu0 %v1090
      %v1527 = vpop.f32.mrb[0].mxu0
      %v1528 = vadd.f32 %v1294, %v1527
      %v1529 = vpop.f32.mrb[0].mxu0
      %1530 = vmatprep.mubr.f32.mxu0 0.0
      %1531 = vmatmul.mubr.f32.gmra.mrb[0].mxu0 %v1093
      %v1532 = vpop.f32.mrb[0].mxu0
      %v1533 = vadd.f32 %v1299, %v1532
      %v1534 = vpop.f32.mrb[0].mxu0
      %1535 = vmatprep.mubr.f32.mxu0 0.0
      %1536 = vmatmul.mubr.f32.gmra.mrb[0].mxu0 %v1096
      %v1537 = vpop.f32.mrb[0].mxu0
      %v1538 = vadd.f32 %v1304, %v1537
      %v1539 = vpop.f32.mrb[0].mxu0
      %1540 = vmatprep.mubr.f32.mxu0 0.0
      %1541 = vmatmul.mubr.f32.gmra.mrb[0].mxu0 %v1099
      %v1542 = vpop.f32.mrb[0].mxu0
      %v1543 = vadd.f32 %v1309, %v1542
      %v1544 = vpop.f32.mrb[0].mxu0
      %1545 = vmatprep.mubr.f32.mxu0 0.0
      %1546 = vmatmul.mubr.f32.gmra.mrb[0].mxu0 %v1102
      %v1547 = vpop.f32.mrb[0].mxu0
      %v1548 = vadd.f32 %v1314, %v1547
      %v1549 = vpop.f32.mrb[0].mxu0
      %1550 = vmatprep.mubr.f32.mxu0 0.0
      %1551 = vmatmul.mubr.f32.gmra.mrb[0].mxu0 %v1105
      %v1552 = vpop.f32.mrb[0].mxu0
      %v1553 = vadd.f32 %v1319, %v1552
      %v1554 = vpop.f32.mrb[0].mxu0
      %1555 = vmatprep.mubr.f32.mxu0 0.0
      %1556 = vmatmul.mubr.f32.gmra.mrb[0].mxu0 %v1108
      %v1557 = vpop.f32.mrb[0].mxu0
      %v1558 = vadd.f32 %v1324, %v1557
      %v1559 = vpop.f32.mrb[0].mxu0
      %1560 = vmatprep.mubr.f32.mxu0 0.0
      %1561 = vmatmul.mubr.f32.gmra.mrb[0].mxu0 %v1111
      %v1562 = vpop.f32.mrb[0].mxu0
      %v1563 = vadd.f32 %v1329, %v1562
      %v1564 = vpop.f32.mrb[0].mxu0
      %1565 = vmatprep.mubr.f32.mxu0 0.0
      %1566 = vmatmul.mubr.f32.gmra.mrb[0].mxu0 %v1114
      %v1567 = vpop.f32.mrb[0].mxu0
      %v1568 = vadd.f32 %v1334, %v1567
      %v1569 = vpop.f32.mrb[0].mxu0
      %1570 = vmatprep.mubr.f32.mxu0 0.0
      %1571 = vmatmul.mubr.f32.gmra.mrb[0].mxu0 %v1117
      %v1572 = vpop.f32.mrb[0].mxu0
      %v1573 = vadd.f32 %v1339, %v1572
      %v1574 = vpop.f32.mrb[0].mxu0
      %1575 = vmatprep.mubr.f32.mxu0 0.0
      %1576 = vmatmul.mubr.f32.gmra.mrb[0].mxu0 %v1120
      %v1577 = vpop.f32.mrb[0].mxu0
      %v1578 = vadd.f32 %v1344, %v1577
      %v1579 = vpop.f32.mrb[0].mxu0
      %1580 = vmatprep.mubr.f32.mxu0 0.0
      %1581 = vmatmul.mubr.f32.gmra.mrb[0].mxu0 %v1123
      %v1582 = vpop.f32.mrb[0].mxu0
      %v1583 = vadd.f32 %v1349, %v1582
      %v1584 = vpop.f32.mrb[0].mxu0
      %1585 = vmatprep.mubr.f32.mxu0 0.0
      %1586 = vmatmul.mubr.f32.gmra.mrb[0].mxu0 %v1126
      %v1587 = vpop.f32.mrb[0].mxu0
      %v1588 = vadd.f32 %v1354, %v1587
      %v1589 = vpop.f32.mrb[0].mxu0
      %1590 = vmatprep.mubr.f32.mxu0 0.0
      %1591 = vmatmul.mubr.f32.gmra.mrb[0].mxu0 %v1129
      %v1592 = vpop.f32.mrb[0].mxu0
      %v1593 = vadd.f32 %v1359, %v1592
      %v1594 = vpop.f32.mrb[0].mxu0
      %1595 = vmatprep.mubr.f32.mxu0 0.0
      %1596 = vmatmul.mubr.f32.gmra.mrb[0].mxu0 %v1132
      %v1597 = vpop.f32.mrb[0].mxu0
      %v1598 = vadd.f32 %v1364, %v1597
      %v1599 = vpop.f32.mrb[0].mxu0
      %1600 = vmatprep.mubr.f32.mxu0 0.0
      %1601 = vmatmul.mubr.f32.gmra.mrb[0].mxu0 %v1135
      %v1602 = vpop.f32.mrb[0].mxu0
      %v1603 = vadd.f32 %v1369, %v1602
      %v1604 = vpop.f32.mrb[0].mxu0
      %1605 = vdwg.mxu0
      %s1606 = scalar_lea.vmem %s3, 32
      %v1607 = vld [vmem:[%s1606] sm:$0xff]
      %v1608 = vld [vmem:[%s1606 + $0x8] sm:$0xf]
      %v1610 = vsel %vm1046, %v1039, 0
      %v1613 = vsel %vm1046, %v1040, 0
      %v1616 = vsel %vm1143, %v1608, 0
      %1618 = vmatprep.subr.mxu0 0.0
      %1619 = vmatpush1.msra.mxu0 %v1607
      %1620 = vmatprep.subr.mxu0 0.0
      %1621 = vmatpush1.msra.mxu0 %v1616
      %1622 = vmatprep.subr.mxu0 0.0
      %1623 = vmatpush1.msra.mxu0 0.0
      %1624 = vmatprep.subr.mxu0 0.0
      %1625 = vmatpush1.msra.mxu0 0.0
      %1626 = vmatprep.subr.mxu0 0.0
      %1627 = vmatpush1.msra.mxu0 0.0
      %1628 = vmatprep.subr.mxu0 0.0
      %1629 = vmatpush1.msra.mxu0 0.0
      %1630 = vmatprep.subr.mxu0 0.0
      %1631 = vmatpush1.msra.mxu0 0.0
      %1632 = vmatprep.subr.mxu0 0.0
      %1633 = vmatpush1.msra.mxu0 0.0
      %1634 = vmatprep.subr.mxu0 0.0
      %1635 = vmatpush1.msra.mxu0 0.0
      %1636 = vmatprep.subr.mxu0 0.0
      %1637 = vmatpush1.msra.mxu0 0.0
      %1638 = vmatprep.subr.mxu0 0.0
      %1639 = vmatpush1.msra.mxu0 0.0
      %1640 = vmatprep.subr.mxu0 0.0
      %1641 = vmatpush1.msra.mxu0 0.0
      %1642 = vmatprep.subr.mxu0 0.0
      %1643 = vmatpush1.msra.mxu0 0.0
      %1644 = vmatprep.subr.mxu0 0.0
      %1645 = vmatpush1.msra.mxu0 0.0
      %1646 = vmatprep.subr.mxu0 0.0
      %1647 = vmatpush1.msra.mxu0 0.0
      %1648 = vmatprep.subr.mxu0 0.0
      %1649 = vmatpush1.msra.mxu0 0.0
      %1650 = vmatprep.subr.mxu0 0.0
      %1651 = vmatpush1.msra.mxu0 0.0
      %1652 = vmatprep.subr.mxu0 0.0
      %1653 = vmatpush1.msra.mxu0 0.0
      %1654 = vmatprep.subr.mxu0 0.0
      %1655 = vmatpush1.msra.mxu0 0.0
      %1656 = vmatprep.subr.mxu0 0.0
      %1657 = vmatpush1.msra.mxu0 0.0
      %1658 = vmatprep.subr.mxu0 0.0
      %1659 = vmatpush1.msra.mxu0 0.0
      %1660 = vmatprep.subr.mxu0 0.0
      %1661 = vmatpush1.msra.mxu0 0.0
      %1662 = vmatprep.subr.mxu0 0.0
      %1663 = vmatpush1.msra.mxu0 0.0
      %1664 = vmatprep.subr.mxu0 0.0
      %1665 = vmatpush1.msra.mxu0 0.0
      %1666 = vmatprep.subr.mxu0 0.0
      %1667 = vmatpush1.msra.mxu0 0.0
      %1668 = vmatprep.subr.mxu0 0.0
      %1669 = vmatpush1.msra.mxu0 0.0
      %1670 = vmatprep.subr.mxu0 0.0
      %1671 = vmatpush1.msra.mxu0 0.0
      %1672 = vmatprep.subr.mxu0 0.0
      %1673 = vmatpush1.msra.mxu0 0.0
      %1674 = vmatprep.subr.mxu0 0.0
      %1675 = vmatpush1.msra.mxu0 0.0
      %1676 = vmatprep.subr.mxu0 0.0
      %1677 = vmatpush1.msra.mxu0 0.0
      %1678 = vmatprep.subr.mxu0 0.0
      %1679 = vmatpush1.msra.mxu0 0.0
      %1680 = vmatprep.subr.mxu0 0.0
      %1681 = vmatpush1.msra.mxu0 0.0
      %1682 = vmatprep.mubr.f32.mxu0 0.0
      %1683 = vmatmul.mubr.f32.gmra.mrb[0].mxu0 %v1054
      %v1684 = vpop.f32.mrb[0].mxu0
      %v1685 = vadd.f32 0.0, %v1684
      %v1686 = vpop.f32.mrb[0].mxu0
      %1687 = vmatprep.mubr.f32.mxu0 0.0
      %1688 = vmatmul.mubr.f32.gmra.mrb[0].mxu0 %v1057
      %v1689 = vpop.f32.mrb[0].mxu0
      %v1690 = vadd.f32 0.0, %v1689
      %v1691 = vpop.f32.mrb[0].mxu0
      %1692 = vmatprep.mubr.f32.mxu0 0.0
      %1693 = vmatmul.mubr.f32.gmra.mrb[0].mxu0 %v1060
      %v1694 = vpop.f32.mrb[0].mxu0
      %v1695 = vadd.f32 0.0, %v1694
      %v1696 = vpop.f32.mrb[0].mxu0
      %1697 = vmatprep.mubr.f32.mxu0 0.0
      %1698 = vmatmul.mubr.f32.gmra.mrb[0].mxu0 %v1063
      %v1699 = vpop.f32.mrb[0].mxu0
      %v1700 = vadd.f32 0.0, %v1699
      %v1701 = vpop.f32.mrb[0].mxu0
      %1702 = vmatprep.mubr.f32.mxu0 0.0
      %1703 = vmatmul.mubr.f32.gmra.mrb[0].mxu0 %v1066
      %v1704 = vpop.f32.mrb[0].mxu0
      %v1705 = vadd.f32 0.0, %v1704
      %v1706 = vpop.f32.mrb[0].mxu0
      %1707 = vmatprep.mubr.f32.mxu0 0.0
      %1708 = vmatmul.mubr.f32.gmra.mrb[0].mxu0 %v1069
      %v1709 = vpop.f32.mrb[0].mxu0
      %v1710 = vadd.f32 0.0, %v1709
      %v1711 = vpop.f32.mrb[0].mxu0
      %1712 = vmatprep.mubr.f32.mxu0 0.0
      %1713 = vmatmul.mubr.f32.gmra.mrb[0].mxu0 %v1072
      %v1714 = vpop.f32.mrb[0].mxu0
      %v1715 = vadd.f32 0.0, %v1714
      %v1716 = vpop.f32.mrb[0].mxu0
      %1717 = vmatprep.mubr.f32.mxu0 0.0
      %1718 = vmatmul.mubr.f32.gmra.mrb[0].mxu0 %v1075
      %v1719 = vpop.f32.mrb[0].mxu0
      %v1720 = vadd.f32 0.0, %v1719
      %v1721 = vpop.f32.mrb[0].mxu0
      %1722 = vmatprep.mubr.f32.mxu0 0.0
      %1723 = vmatmul.mubr.f32.gmra.mrb[0].mxu0 %v1078
      %v1724 = vpop.f32.mrb[0].mxu0
      %v1725 = vadd.f32 0.0, %v1724
      %v1726 = vpop.f32.mrb[0].mxu0
      %1727 = vmatprep.mubr.f32.mxu0 0.0
      %1728 = vmatmul.mubr.f32.gmra.mrb[0].mxu0 %v1081
      %v1729 = vpop.f32.mrb[0].mxu0
      %v1730 = vadd.f32 0.0, %v1729
      %v1731 = vpop.f32.mrb[0].mxu0
      %1732 = vmatprep.mubr.f32.mxu0 0.0
      %1733 = vmatmul.mubr.f32.gmra.mrb[0].mxu0 %v1084
      %v1734 = vpop.f32.mrb[0].mxu0
      %v1735 = vadd.f32 0.0, %v1734
      %v1736 = vpop.f32.mrb[0].mxu0
      %1737 = vmatprep.mubr.f32.mxu0 0.0
      %1738 = vmatmul.mubr.f32.gmra.mrb[0].mxu0 %v1087
      %v1739 = vpop.f32.mrb[0].mxu0
      %v1740 = vadd.f32 0.0, %v1739
      %v1741 = vpop.f32.mrb[0].mxu0
      %1742 = vmatprep.mubr.f32.mxu0 0.0
      %1743 = vmatmul.mubr.f32.gmra.mrb[0].mxu0 %v1090
      %v1744 = vpop.f32.mrb[0].mxu0
      %v1745 = vadd.f32 0.0, %v1744
      %v1746 = vpop.f32.mrb[0].mxu0
      %1747 = vmatprep.mubr.f32.mxu0 0.0
      %1748 = vmatmul.mubr.f32.gmra.mrb[0].mxu0 %v1093
      %v1749 = vpop.f32.mrb[0].mxu0
      %v1750 = vadd.f32 0.0, %v1749
      %v1751 = vpop.f32.mrb[0].mxu0
      %1752 = vmatprep.mubr.f32.mxu0 0.0
      %1753 = vmatmul.mubr.f32.gmra.mrb[0].mxu0 %v1096
      %v1754 = vpop.f32.mrb[0].mxu0
      %v1755 = vadd.f32 0.0, %v1754
      %v1756 = vpop.f32.mrb[0].mxu0
      %1757 = vmatprep.mubr.f32.mxu0 0.0
      %1758 = vmatmul.mubr.f32.gmra.mrb[0].mxu0 %v1099
      %v1759 = vpop.f32.mrb[0].mxu0
      %v1760 = vadd.f32 0.0, %v1759
      %v1761 = vpop.f32.mrb[0].mxu0
      %1762 = vmatprep.mubr.f32.mxu0 0.0
      %1763 = vmatmul.mubr.f32.gmra.mrb[0].mxu0 %v1102
      %v1764 = vpop.f32.mrb[0].mxu0
      %v1765 = vadd.f32 0.0, %v1764
      %v1766 = vpop.f32.mrb[0].mxu0
      %1767 = vmatprep.mubr.f32.mxu0 0.0
      %1768 = vmatmul.mubr.f32.gmra.mrb[0].mxu0 %v1105
      %v1769 = vpop.f32.mrb[0].mxu0
      %v1770 = vadd.f32 0.0, %v1769
      %v1771 = vpop.f32.mrb[0].mxu0
      %1772 = vmatprep.mubr.f32.mxu0 0.0
      %1773 = vmatmul.mubr.f32.gmra.mrb[0].mxu0 %v1108
      %v1774 = vpop.f32.mrb[0].mxu0
      %v1775 = vadd.f32 0.0, %v1774
      %v1776 = vpop.f32.mrb[0].mxu0
      %1777 = vmatprep.mubr.f32.mxu0 0.0
      %1778 = vmatmul.mubr.f32.gmra.mrb[0].mxu0 %v1111
      %v1779 = vpop.f32.mrb[0].mxu0
      %v1780 = vadd.f32 0.0, %v1779
      %v1781 = vpop.f32.mrb[0].mxu0
      %1782 = vmatprep.mubr.f32.mxu0 0.0
      %1783 = vmatmul.mubr.f32.gmra.mrb[0].mxu0 %v1114
      %v1784 = vpop.f32.mrb[0].mxu0
      %v1785 = vadd.f32 0.0, %v1784
      %v1786 = vpop.f32.mrb[0].mxu0
      %1787 = vmatprep.mubr.f32.mxu0 0.0
      %1788 = vmatmul.mubr.f32.gmra.mrb[0].mxu0 %v1117
      %v1789 = vpop.f32.mrb[0].mxu0
      %v1790 = vadd.f32 0.0, %v1789
      %v1791 = vpop.f32.mrb[0].mxu0
      %1792 = vmatprep.mubr.f32.mxu0 0.0
      %1793 = vmatmul.mubr.f32.gmra.mrb[0].mxu0 %v1120
      %v1794 = vpop.f32.mrb[0].mxu0
      %v1795 = vadd.f32 0.0, %v1794
      %v1796 = vpop.f32.mrb[0].mxu0
      %1797 = vmatprep.mubr.f32.mxu0 0.0
      %1798 = vmatmul.mubr.f32.gmra.mrb[0].mxu0 %v1123
      %v1799 = vpop.f32.mrb[0].mxu0
      %v1800 = vadd.f32 0.0, %v1799
      %v1801 = vpop.f32.mrb[0].mxu0
      %1802 = vmatprep.mubr.f32.mxu0 0.0
      %1803 = vmatmul.mubr.f32.gmra.mrb[0].mxu0 %v1126
      %v1804 = vpop.f32.mrb[0].mxu0
      %v1805 = vadd.f32 0.0, %v1804
      %v1806 = vpop.f32.mrb[0].mxu0
      %1807 = vmatprep.mubr.f32.mxu0 0.0
      %1808 = vmatmul.mubr.f32.gmra.mrb[0].mxu0 %v1129
      %v1809 = vpop.f32.mrb[0].mxu0
      %v1810 = vadd.f32 0.0, %v1809
      %v1811 = vpop.f32.mrb[0].mxu0
      %1812 = vmatprep.mubr.f32.mxu0 0.0
      %1813 = vmatmul.mubr.f32.gmra.mrb[0].mxu0 %v1132
      %v1814 = vpop.f32.mrb[0].mxu0
      %v1815 = vadd.f32 0.0, %v1814
      %v1816 = vpop.f32.mrb[0].mxu0
      %1817 = vmatprep.mubr.f32.mxu0 0.0
      %1818 = vmatmul.mubr.f32.gmra.mrb[0].mxu0 %v1135
      %v1819 = vpop.f32.mrb[0].mxu0
      %v1820 = vadd.f32 0.0, %v1819
      %v1821 = vpop.f32.mrb[0].mxu0
      %1822 = vmatprep.mubr.f32.mxu0 0.0
      %1823 = vmatmul.mubr.f32.gmra.mrb[0].mxu0 %v1138
      %v1824 = vpop.f32.mrb[0].mxu0
      %v1825 = vadd.f32 0.0, %v1824
      %v1826 = vpop.f32.mrb[0].mxu0
      %1827 = vmatprep.mubr.f32.mxu0 0.0
      %1828 = vmatmul.mubr.f32.gmra.mrb[0].mxu0 %v1141
      %v1829 = vpop.f32.mrb[0].mxu0
      %v1830 = vadd.f32 0.0, %v1829
      %v1831 = vpop.f32.mrb[0].mxu0
      %1832 = vmatprep.mubr.f32.mxu0 0.0
      %1833 = vmatmul.mubr.f32.gmra.mrb[0].mxu0 %v1610
      %v1834 = vpop.f32.mrb[0].mxu0
      %v1835 = vadd.f32 0.0, %v1834
      %v1836 = vpop.f32.mrb[0].mxu0
      %1837 = vmatprep.mubr.f32.mxu0 0.0
      %1838 = vmatmul.mubr.f32.gmra.mrb[0].mxu0 %v1613
      %v1839 = vpop.f32.mrb[0].mxu0
      %v1840 = vadd.f32 0.0, %v1839
      %v1841 = vpop.f32.mrb[0].mxu0
      %1842 = vdwg.mxu0
      %v1843 = vadd.f32 %v1448, %v1685
      %v1844 = vadd.f32 %v1453, %v1690
      %v1845 = vadd.f32 %v1458, %v1695
      %v1846 = vadd.f32 %v1463, %v1700
      %v1847 = vadd.f32 %v1468, %v1705
      %v1848 = vadd.f32 %v1473, %v1710
      %v1849 = vadd.f32 %v1478, %v1715
      %v1850 = vadd.f32 %v1483, %v1720
      %v1851 = vadd.f32 %v1488, %v1725
      %v1852 = vadd.f32 %v1493, %v1730
      %v1853 = vadd.f32 %v1498, %v1735
      %v1854 = vadd.f32 %v1503, %v1740
      %v1855 = vadd.f32 %v1508, %v1745
      %v1856 = vadd.f32 %v1513, %v1750
      %v1857 = vadd.f32 %v1518, %v1755
      %v1858 = vadd.f32 %v1523, %v1760
      %v1859 = vadd.f32 %v1528, %v1765
      %v1860 = vadd.f32 %v1533, %v1770
      %v1861 = vadd.f32 %v1538, %v1775
      %v1862 = vadd.f32 %v1543, %v1780
      %v1863 = vadd.f32 %v1548, %v1785
      %v1864 = vadd.f32 %v1553, %v1790
      %v1865 = vadd.f32 %v1558, %v1795
      %v1866 = vadd.f32 %v1563, %v1800
      %v1867 = vadd.f32 %v1568, %v1805
      %v1868 = vadd.f32 %v1573, %v1810
      %v1869 = vadd.f32 %v1578, %v1815
      %v1870 = vadd.f32 %v1583, %v1820
      %v1871 = vadd.f32 %v1588, %v1825
      %v1872 = vadd.f32 %v1593, %v1830
      %v1873 = vadd.f32 %v1598, %v1835
      %v1874 = vadd.f32 %v1603, %v1840
      %1875 = vst.msk [vmem:[%s439] sm:$0xff] %vm1004, %v1843
      %1876 = vst.msk [vmem:[%s439 + $0x8] sm:$0xff] %vm1004, %v1844
      %1877 = vst.msk [vmem:[%s439 + $0x10] sm:$0xff] %vm1004, %v1845
      %1878 = vst.msk [vmem:[%s439 + $0x18] sm:$0xff] %vm1004, %v1846
      %1879 = vst.msk [vmem:[%s439 + $0x20] sm:$0xff] %vm1004, %v1847
      %1880 = vst.msk [vmem:[%s439 + $0x28] sm:$0xff] %vm1004, %v1848
      %1881 = vst.msk [vmem:[%s439 + $0x30] sm:$0xff] %vm1004, %v1849
      %1882 = vst.msk [vmem:[%s439 + $0x38] sm:$0xff] %vm1004, %v1850
      %1883 = vst.msk [vmem:[%s439 + $0x40] sm:$0xff] %vm1004, %v1851
      %1884 = vst.msk [vmem:[%s439 + $0x48] sm:$0xff] %vm1004, %v1852
      %1885 = vst.msk [vmem:[%s439 + $0x50] sm:$0xff] %vm1004, %v1853
      %1886 = vst.msk [vmem:[%s439 + $0x58] sm:$0xff] %vm1004, %v1854
      %1887 = vst.msk [vmem:[%s439 + $0x60] sm:$0xff] %vm1004, %v1855
      %1888 = vst.msk [vmem:[%s439 + $0x68] sm:$0xff] %vm1004, %v1856
      %1889 = vst.msk [vmem:[%s439 + $0x70] sm:$0xff] %vm1004, %v1857
      %1890 = vst.msk [vmem:[%s439 + $0x78] sm:$0xff] %vm1004, %v1858
      %1891 = vst.msk [vmem:[%s439 + $0x80] sm:$0xff] %vm1004, %v1859
      %1892 = vst.msk [vmem:[%s439 + $0x88] sm:$0xff] %vm1004, %v1860
      %1893 = vst.msk [vmem:[%s439 + $0x90] sm:$0xff] %vm1004, %v1861
      %1894 = vst.msk [vmem:[%s439 + $0x98] sm:$0xff] %vm1004, %v1862
      %1895 = vst.msk [vmem:[%s439 + $0xa0] sm:$0xff] %vm1004, %v1863
      %1896 = vst.msk [vmem:[%s439 + $0xa8] sm:$0xff] %vm1004, %v1864
      %1897 = vst.msk [vmem:[%s439 + $0xb0] sm:$0xff] %vm1004, %v1865
      %1898 = vst.msk [vmem:[%s439 + $0xb8] sm:$0xff] %vm1004, %v1866
      %1899 = vst.msk [vmem:[%s439 + $0xc0] sm:$0xff] %vm1004, %v1867
      %1900 = vst.msk [vmem:[%s439 + $0xc8] sm:$0xff] %vm1004, %v1868
      %1901 = vst.msk [vmem:[%s439 + $0xd0] sm:$0xff] %vm1004, %v1869
      %1902 = vst.msk [vmem:[%s439 + $0xd8] sm:$0xff] %vm1004, %v1870
      %1903 = vst.msk [vmem:[%s439 + $0xe0] sm:$0xff] %vm1004, %v1871
      %1904 = vst.msk [vmem:[%s439 + $0xe8] sm:$0xff] %vm1004, %v1872
      %1905 = vst.msk [vmem:[%s439 + $0xf0] sm:$0xff] %vm1004, %v1873
      %1906 = vst.msk [vmem:[%s439 + $0xf8] sm:$0xff] %vm1004, %v1874
      %v1907 = vsel %vm1004, %v1843, 0.0
      %v1908 = vsel %vm1004, %v1844, 0.0
      %v1909 = vadd.f32 %v1907, %v1908
      %v1910 = vsel %vm1004, %v1845, 0.0
      %v1911 = vadd.f32 %v1909, %v1910
      %v1912 = vsel %vm1004, %v1846, 0.0
      %v1913 = vadd.f32 %v1911, %v1912
      %v1914 = vsel %vm1004, %v1847, 0.0
      %v1915 = vadd.f32 %v1913, %v1914
      %v1916 = vsel %vm1004, %v1848, 0.0
      %v1917 = vadd.f32 %v1915, %v1916
      %v1918 = vsel %vm1004, %v1849, 0.0
      %v1919 = vadd.f32 %v1917, %v1918
      %v1920 = vsel %vm1004, %v1850, 0.0
      %v1921 = vadd.f32 %v1919, %v1920
      %v1922 = vsel %vm1004, %v1851, 0.0
      %v1923 = vadd.f32 %v1921, %v1922
      %v1924 = vsel %vm1004, %v1852, 0.0
      %v1925 = vadd.f32 %v1923, %v1924
      %v1926 = vsel %vm1004, %v1853, 0.0
      %v1927 = vadd.f32 %v1925, %v1926
      %v1928 = vsel %vm1004, %v1854, 0.0
      %v1929 = vadd.f32 %v1927, %v1928
      %v1930 = vsel %vm1004, %v1855, 0.0
      %v1931 = vadd.f32 %v1929, %v1930
      %v1932 = vsel %vm1004, %v1856, 0.0
      %v1933 = vadd.f32 %v1931, %v1932
      %v1934 = vsel %vm1004, %v1857, 0.0
      %v1935 = vadd.f32 %v1933, %v1934
      %v1936 = vsel %vm1004, %v1858, 0.0
      %v1937 = vadd.f32 %v1935, %v1936
      %v1938 = vsel %vm1004, %v1859, 0.0
      %v1939 = vadd.f32 %v1937, %v1938
      %v1940 = vsel %vm1004, %v1860, 0.0
      %v1941 = vadd.f32 %v1939, %v1940
      %v1942 = vsel %vm1004, %v1861, 0.0
      %v1943 = vadd.f32 %v1941, %v1942
      %v1944 = vsel %vm1004, %v1862, 0.0
      %v1945 = vadd.f32 %v1943, %v1944
      %v1946 = vsel %vm1004, %v1863, 0.0
      %v1947 = vadd.f32 %v1945, %v1946
      %v1948 = vsel %vm1004, %v1864, 0.0
      %v1949 = vadd.f32 %v1947, %v1948
      %v1950 = vsel %vm1004, %v1865, 0.0
      %v1951 = vadd.f32 %v1949, %v1950
      %v1952 = vsel %vm1004, %v1866, 0.0
      %v1953 = vadd.f32 %v1951, %v1952
      %v1954 = vsel %vm1004, %v1867, 0.0
      %v1955 = vadd.f32 %v1953, %v1954
      %v1956 = vsel %vm1004, %v1868, 0.0
      %v1957 = vadd.f32 %v1955, %v1956
      %v1958 = vsel %vm1004, %v1869, 0.0
      %v1959 = vadd.f32 %v1957, %v1958
      %v1960 = vsel %vm1004, %v1870, 0.0
      %v1961 = vadd.f32 %v1959, %v1960
      %v1962 = vsel %vm1004, %v1871, 0.0
      %v1963 = vadd.f32 %v1961, %v1962
      %v1964 = vsel %vm1004, %v1872, 0.0
      %v1965 = vadd.f32 %v1963, %v1964
      %v1966 = vsel %vm1004, %v1873, 0.0
      %v1967 = vadd.f32 %v1965, %v1966
      %v1968 = vsel %vm1004, %v1874, 0.0
      %v1969 = vadd.f32 %v1967, %v1968
      %v1970 = vrot.slane %v1969, 4
      %v1971 = vadd.f32 %v1969, %v1970
      %v1972 = vrot.slane %v1971, 2
      %v1973 = vadd.f32 %v1971, %v1972
      %v1974 = vrot.slane %v1973, 1
      %v1975 = vadd.f32 %v1973, %v1974
      %vm1976 = vcmask 57344
      %1977 = vst.msk [vmem:[%s446] sm:$0x1] %vm1976, %v1975
      %v1978 = vmul.f32 %v1843, %v1843
      %v1979 = vmul.f32 %v1844, %v1844
      %v1980 = vmul.f32 %v1845, %v1845
      %v1981 = vmul.f32 %v1846, %v1846
      %v1982 = vmul.f32 %v1847, %v1847
      %v1983 = vmul.f32 %v1848, %v1848
      %v1984 = vmul.f32 %v1849, %v1849
      %v1985 = vmul.f32 %v1850, %v1850
      %v1986 = vmul.f32 %v1851, %v1851
      %v1987 = vmul.f32 %v1852, %v1852
      %v1988 = vmul.f32 %v1853, %v1853
      %v1989 = vmul.f32 %v1854, %v1854
      %v1990 = vmul.f32 %v1855, %v1855
      %v1991 = vmul.f32 %v1856, %v1856
      %v1992 = vmul.f32 %v1857, %v1857
      %v1993 = vmul.f32 %v1858, %v1858
      %v1994 = vmul.f32 %v1859, %v1859
      %v1995 = vmul.f32 %v1860, %v1860
      %v1996 = vmul.f32 %v1861, %v1861
      %v1997 = vmul.f32 %v1862, %v1862
      %v1998 = vmul.f32 %v1863, %v1863
      %v1999 = vmul.f32 %v1864, %v1864
      %v2000 = vmul.f32 %v1865, %v1865
      %v2001 = vmul.f32 %v1866, %v1866
      %v2002 = vmul.f32 %v1867, %v1867
      %v2003 = vmul.f32 %v1868, %v1868
      %v2004 = vmul.f32 %v1869, %v1869
      %v2005 = vmul.f32 %v1870, %v1870
      %v2006 = vmul.f32 %v1871, %v1871
      %v2007 = vmul.f32 %v1872, %v1872
      %v2008 = vmul.f32 %v1873, %v1873
      %v2009 = vmul.f32 %v1874, %v1874
      %v2010 = vsel %vm1004, %v1978, 0.0
      %v2011 = vsel %vm1004, %v1979, 0.0
      %v2012 = vadd.f32 %v2010, %v2011
      %v2013 = vsel %vm1004, %v1980, 0.0
      %v2014 = vadd.f32 %v2012, %v2013
      %v2015 = vsel %vm1004, %v1981, 0.0
      %v2016 = vadd.f32 %v2014, %v2015
      %v2017 = vsel %vm1004, %v1982, 0.0
      %v2018 = vadd.f32 %v2016, %v2017
      %v2019 = vsel %vm1004, %v1983, 0.0
      %v2020 = vadd.f32 %v2018, %v2019
      %v2021 = vsel %vm1004, %v1984, 0.0
      %v2022 = vadd.f32 %v2020, %v2021
      %v2023 = vsel %vm1004, %v1985, 0.0
      %v2024 = vadd.f32 %v2022, %v2023
      %v2025 = vsel %vm1004, %v1986, 0.0
      %v2026 = vadd.f32 %v2024, %v2025
      %v2027 = vsel %vm1004, %v1987, 0.0
      %v2028 = vadd.f32 %v2026, %v2027
      %v2029 = vsel %vm1004, %v1988, 0.0
      %v2030 = vadd.f32 %v2028, %v2029
      %v2031 = vsel %vm1004, %v1989, 0.0
      %v2032 = vadd.f32 %v2030, %v2031
      %v2033 = vsel %vm1004, %v1990, 0.0
      %v2034 = vadd.f32 %v2032, %v2033
      %v2035 = vsel %vm1004, %v1991, 0.0
      %v2036 = vadd.f32 %v2034, %v2035
      %v2037 = vsel %vm1004, %v1992, 0.0
      %v2038 = vadd.f32 %v2036, %v2037
      %v2039 = vsel %vm1004, %v1993, 0.0
      %v2040 = vadd.f32 %v2038, %v2039
      %v2041 = vsel %vm1004, %v1994, 0.0
      %v2042 = vadd.f32 %v2040, %v2041
      %v2043 = vsel %vm1004, %v1995, 0.0
      %v2044 = vadd.f32 %v2042, %v2043
      %v2045 = vsel %vm1004, %v1996, 0.0
      %v2046 = vadd.f32 %v2044, %v2045
      %v2047 = vsel %vm1004, %v1997, 0.0
      %v2048 = vadd.f32 %v2046, %v2047
      %v2049 = vsel %vm1004, %v1998, 0.0
      %v2050 = vadd.f32 %v2048, %v2049
      %v2051 = vsel %vm1004, %v1999, 0.0
      %v2052 = vadd.f32 %v2050, %v2051
      %v2053 = vsel %vm1004, %v2000, 0.0
      %v2054 = vadd.f32 %v2052, %v2053
      %v2055 = vsel %vm1004, %v2001, 0.0
      %v2056 = vadd.f32 %v2054, %v2055
      %v2057 = vsel %vm1004, %v2002, 0.0
      %v2058 = vadd.f32 %v2056, %v2057
      %v2059 = vsel %vm1004, %v2003, 0.0
      %v2060 = vadd.f32 %v2058, %v2059
      %v2061 = vsel %vm1004, %v2004, 0.0
      %v2062 = vadd.f32 %v2060, %v2061
      %v2063 = vsel %vm1004, %v2005, 0.0
      %v2064 = vadd.f32 %v2062, %v2063
      %v2065 = vsel %vm1004, %v2006, 0.0
      %v2066 = vadd.f32 %v2064, %v2065
      %v2067 = vsel %vm1004, %v2007, 0.0
      %v2068 = vadd.f32 %v2066, %v2067
      %v2069 = vsel %vm1004, %v2008, 0.0
      %v2070 = vadd.f32 %v2068, %v2069
      %v2071 = vsel %vm1004, %v2009, 0.0
      %v2072 = vadd.f32 %v2070, %v2071
      %v2073 = vrot.slane %v2072, 4
      %v2074 = vadd.f32 %v2072, %v2073
      %v2075 = vrot.slane %v2074, 2
      %v2076 = vadd.f32 %v2074, %v2075
      %v2077 = vrot.slane %v2076, 1
      %v2078 = vadd.f32 %v2076, %v2077
      %2079 = vst.msk [vmem:[%s452] sm:$0x1] %vm1976, %v2078
      %s2080 = smul.u32 16, %s23
      %p2081 = scmp.lt.s32.totalorder %s22, 1
      %s2082 = scalar_select %p2081, %s22, 1
      %p2083 = scmp.lt.s32.totalorder %s2080, 15
      %s2084 = scalar_select %p2083, %s2080, 15
      %s2085 = smul.addr %s2084, 2
      %s2086 = smul.addr %s2082, 32
      %s2087 = sadd.s32 %s2085, %s2086
      %s2088 = smul.addr %s2087, 8
      %s2089 = scalar_lea.vmem %s4, %s2088
      %p2090 = scmp.lt.s32.totalorder %s22, 1
      %s2091 = scalar_select %p2090, %s22, 1
      %p2092 = scmp.lt.s32.totalorder %s23, 0
      %s2093 = scalar_select %p2092, %s23, 0
      %s2094 = sadd.s32 %s2093, %s2091
      %s2095 = scalar_lea.vmem %s5, %s2094
      %p2096 = scmp.lt.s32.totalorder %s22, 1
      %s2097 = scalar_select %p2096, %s22, 1
      %p2098 = scmp.lt.s32.totalorder %s23, 0
      %s2099 = scalar_select %p2098, %s23, 0
      %s2100 = sadd.s32 %s2099, %s2097
      %s2101 = scalar_lea.vmem %s6, %s2100
      // Predicated region
      $region37: #{double_conv.3} parent=35 // pred_check
        %p2102 = pneg %p171
      $region38: #{double_conv.3} parent=35 // pred_check_branch
        %2104 = sbr.rel (%p2102) target = $region40
      $region39: #{double_conv.3} parent=35 // pred_region
        %s2105 = smul.u32 16, %s23
      $region40: #{double_conv.3} parent=35 // pred_fallthru
        _
      // Predicated region
      $region41: #{double_conv.3} parent=35 // pred_check
        %p2106 = pneg %p199
      $region42: #{double_conv.3} parent=35 // pred_check_branch
        %2108 = sbr.rel (%p2106) target = $region44
      $region43: #{double_conv.3} parent=35 // pred_region
        _
      $region44: #{double_conv.3} parent=35 // pred_fallthru
        _
      // Predicated region
      $region45: #{double_conv.3} parent=35 // pred_check
        %p2109 = pneg %p227
      $region46: #{double_conv.3} parent=35 // pred_check_branch
        %2111 = sbr.rel (%p2109) target = $region48
      $region47: #{double_conv.3} parent=35 // pred_region
        _
      $region48: #{double_conv.3} parent=35 // pred_fallthru
        _
    $region36: #{double_conv.3} parent=5 // pred_fallthru
      _
    %p2112 = scmp.le.s32.totalorder 2, %s13
    // Predicated region
    $region49: #{double_conv.3} parent=5 // pred_check
      %p2113 = pneg %p2112
    $region50: #{double_conv.3} parent=5 // pred_check_branch
      %2115 = sbr.rel (%p2113) target = $region52
    $region51: #{double_conv.3} parent=5 // pred_region
      %s2116 = ssub.s32 %s13, 2
      // Predicated region
      $region53: #{double_conv.3} parent=51 // pred_check
        %p2117 = pneg %p177
      $region54: #{double_conv.3} parent=51 // pred_check_branch
        %2119 = sbr.rel (%p2117) target = $region56
      $region55: #{double_conv.3} parent=51 // pred_region
        %s2120 = smul.u32 16, %s25
        %p2121 = scmp.lt.s32.totalorder %s24, 1
        %s2122 = scalar_select %p2121, %s24, 1
        %p2123 = scmp.lt.s32.totalorder %s2120, 15
        %s2124 = scalar_select %p2123, %s2120, 15
        %s2125 = smul.addr %s2124, 2
        %s2126 = smul.addr %s2122, 32
        %s2127 = sadd.s32 %s2125, %s2126
        %s2128 = smul.addr %s2127, 8
        %s2129 = scalar_lea.vmem %s4, %s2128
      $region56: #{double_conv.3} parent=51 // pred_fallthru
        _
      // Predicated region
      $region57: #{double_conv.3} parent=51 // pred_check
        %p2130 = pneg %p205
      $region58: #{double_conv.3} parent=51 // pred_check_branch
        %2132 = sbr.rel (%p2130) target = $region60
      $region59: #{double_conv.3} parent=51 // pred_region
        %p2133 = scmp.lt.s32.totalorder %s24, 1
        %s2134 = scalar_select %p2133, %s24, 1
        %p2135 = scmp.lt.s32.totalorder %s25, 0
        %s2136 = scalar_select %p2135, %s25, 0
        %s2137 = sadd.s32 %s2136, %s2134
        %s2138 = scalar_lea.vmem %s5, %s2137
      $region60: #{double_conv.3} parent=51 // pred_fallthru
        _
      // Predicated region
      $region61: #{double_conv.3} parent=51 // pred_check
        %p2139 = pneg %p233
      $region62: #{double_conv.3} parent=51 // pred_check_branch
        %2141 = sbr.rel (%p2139) target = $region64
      $region63: #{double_conv.3} parent=51 // pred_region
        %p2142 = scmp.lt.s32.totalorder %s24, 1
        %s2143 = scalar_select %p2142, %s24, 1
        %p2144 = scmp.lt.s32.totalorder %s25, 0
        %s2145 = scalar_select %p2144, %s25, 0
        %s2146 = sadd.s32 %s2145, %s2143
        %s2147 = scalar_lea.vmem %s6, %s2146
      $region64: #{double_conv.3} parent=51 // pred_fallthru
        _
    $region52: #{double_conv.3} parent=5 // pred_fallthru
      _
  $region6: #{double_conv.3} parent=0 // loop_footer
    %s17 = sadd.s32 1, %s13
  $region7: #{double_conv.3} parent=0 // loop_footer_branch
    %12 = sbr.rel target = $region3
  $region8: #{double_conv.3} parent=0 // loop_exit
    _

// kernel: double_conv.4
$region0: #{double_conv.4}
  #allocation0 [shape = 'u32[]', space=smem, size = 0x4, offset = 0x4, fixed_abs, tag = 'smem constant byte address 0x4 - core index']
  #allocation1 [shape = 'u32[144,128]{1,0:T(1,128)}', space=vmem, size = 0x12000, scoped, tag = 'internal scratch']
  %s0 = inlined_call_operand.vmem [shape: f32[2,16,16,8], index: 0, kind: input, shape index: {}, may-alias: {0,1,2}]
  %s1 = inlined_call_operand.vmem [shape: f32[2,16,16,8], index: 1, kind: input, shape index: {}, may-alias: {0,1,2}]
  %s2 = inlined_call_operand.vmem [shape: f32[2,16,16,8], index: 2, kind: input, shape index: {}, may-alias: {0,1,2}]
  %s3 = inlined_call_operand.vmem [shape: f32[1,8], index: 3, kind: input, shape index: {}]
  %s4 = inlined_call_operand.vmem [shape: f32[1,8], index: 4, kind: input, shape index: {}]
  %s5 = inlined_call_operand.vmem [shape: f32[3,24,8], index: 5, kind: input, shape index: {}]
  %s6 = inlined_call_operand.vmem [shape: f32[2,16,16,8], index: 6, kind: output, shape index: {0}]
  %s7 = inlined_call_operand.vmem [shape: f32[2,1,1,8], index: 7, kind: output, shape index: {1}]
  %s8 = inlined_call_operand.vmem [shape: f32[2,1,1,8], index: 8, kind: output, shape index: {2}]
  %9 = xla_tuple %s6, %s7, %s8
  %s10 = sld [smem:[#allocation0]]
  $region73: #{double_conv.4} parent=0
    _
  %s12 = ssub.s32 1, %s10
  %s13 = scalar_select 0, %s12, %s10
  loop: start=0, step=1, limit=4
  $region2: #{double_conv.4} parent=0 // loop_pre_header
    _
  $region3: #{double_conv.4} parent=0 // loop_header
    %s15 = sphi 0, %s19
    %p16 = scmp.ge.s32.totalorder %s15, 4
    %s22 = sphi 0, %s34
    %s23 = sphi 0, %s30
    %s24 = sphi 0, %s22
    %s25 = sphi 0, %s23
    %s26 = sphi 0, %s24
    %s27 = sphi 0, %s25
    %s39 = sphi 0, %s41
    %s42 = sphi 0, %s39
    %s43 = sphi 0, %s42
    %s59 = sphi 0, %s43
    %s75 = sphi 0, %s77
    %s78 = sphi 0, %s75
    %s79 = sphi 0, %s78
    %s95 = sphi 0, %s79
    %s111 = sphi 0, %s113
    %s114 = sphi 0, %s111
    %s115 = sphi 0, %s114
    %s131 = sphi 0, %s115
    %s135 = sphi 0, %s135
    %s137 = sphi 0, %s135
    %s138 = sphi 0, %s137
    %s152 = sphi 0, %s138
    %s156 = sphi 0, %s156
    %s158 = sphi 0, %s156
    %s159 = sphi 0, %s158
    %s173 = sphi 0, %s159
    %s177 = sphi 0, %s177
    %s179 = sphi 0, %s177
    %s180 = sphi 0, %s179
    %s194 = sphi 0, %s180
    %s202 = sphi 0, %s204
    %s205 = sphi 0, %s202
    %s206 = sphi 0, %s205
    %s222 = sphi 0, %s206
    %s230 = sphi 0, %s232
    %s233 = sphi 0, %s230
    %s234 = sphi 0, %s233
    %s250 = sphi 0, %s234
    %s258 = sphi 0, %s260
    %s261 = sphi 0, %s258
    %s262 = sphi 0, %s261
    %s278 = sphi 0, %s262
  $region4: #{double_conv.4} parent=0 // loop_header_branch
    %18 = sbr.rel (%p16) target = $region8
  $region5: #{double_conv.4} parent=0 // loop_body
    %s20 = ssub.s32 %s15, 1
    %s21 = ssub.s32 %s15, 2
    %s28 = sadd.s32 1, %s23
    %p29 = scmp.ge.s32.totalorder %s28, 1
    %s30 = scalar_select %p29, 0, %s28
    %s31 = sadd.s32 1, %s22
    %s32 = scalar_select %p29, %s31, %s22
    %p33 = scmp.ge.s32.totalorder %s32, 2
    %s34 = scalar_select %p33, 0, %s32
    %s35 = ssub.s32 %s22, %s34
    %s36 = ssub.s32 %s23, %s30
    %s37 = sor.u32 %s35, %s36
    %p38 = scmp.eq.s32.totalorder %s37, 0
    %s40 = sadd.s32 %s39, 1
    %s41 = scalar_select %p38, %s39, %s40
    %p44 = pneg %p38
    %p45 = scmp.eq.s32.totalorder %s15, 1
    %p46 = por %p44, %p45
    %p47 = scmp.ne.s32.totalorder %s39, %s42
    %p48 = scmp.eq.s32.totalorder %s15, 0
    %p49 = por %p47, %p48
    %p50 = scmp.ne.s32.totalorder %s39, %s42
    %p51 = scmp.eq.s32.totalorder %s20, 1
    %p52 = por %p50, %p51
    %p53 = scmp.ne.s32.totalorder %s42, %s43
    %p54 = scmp.eq.s32.totalorder %s20, 0
    %p55 = por %p53, %p54
    %p56 = scmp.ne.s32.totalorder %s42, %s43
    %p57 = scmp.eq.s32.totalorder %s21, 1
    %p58 = por %p56, %p57
    %p60 = scmp.ne.s32.totalorder %s43, %s59
    %p61 = scmp.eq.s32.totalorder %s21, 0
    %p62 = por %p60, %p61
    %s63 = smul.u32 %s23, 16
    %s64 = ssub.s32 %s63, 1
    %p65 = scmp.gt.s32.totalorder %s64, 0
    %s66 = scalar_select %p65, %s64, 0
    %s67 = smul.u32 %s30, 16
    %s68 = ssub.s32 %s67, 1
    %p69 = scmp.gt.s32.totalorder %s68, 0
    %s70 = scalar_select %p69, %s68, 0
    %s71 = ssub.s32 %s22, %s34
    %s72 = ssub.s32 %s66, %s70
    %s73 = sor.u32 %s71, %s72
    %p74 = scmp.eq.s32.totalorder %s73, 0
    %s76 = sadd.s32 %s75, 1
    %s77 = scalar_select %p74, %s75, %s76
    %p80 = pneg %p74
    %p81 = scmp.eq.s32.totalorder %s15, 1
    %p82 = por %p80, %p81
    %p83 = scmp.ne.s32.totalorder %s75, %s78
    %p84 = scmp.eq.s32.totalorder %s15, 0
    %p85 = por %p83, %p84
    %p86 = scmp.ne.s32.totalorder %s75, %s78
    %p87 = scmp.eq.s32.totalorder %s20, 1
    %p88 = por %p86, %p87
    %p89 = scmp.ne.s32.totalorder %s78, %s79
    %p90 = scmp.eq.s32.totalorder %s20, 0
    %p91 = por %p89, %p90
    %p92 = scmp.ne.s32.totalorder %s78, %s79
    %p93 = scmp.eq.s32.totalorder %s21, 1
    %p94 = por %p92, %p93
    %p96 = scmp.ne.s32.totalorder %s79, %s95
    %p97 = scmp.eq.s32.totalorder %s21, 0
    %p98 = por %p96, %p97
    %s99 = smul.u32 %s23, 16
    %s100 = sadd.s32 %s99, 16
    %p101 = scmp.lt.s32.totalorder %s100, 15
    %s102 = scalar_select %p101, %s100, 15
    %s103 = smul.u32 %s30, 16
    %s104 = sadd.s32 %s103, 16
    %p105 = scmp.lt.s32.totalorder %s104, 15
    %s106 = scalar_select %p105, %s104, 15
    %s107 = ssub.s32 %s22, %s34
    %s108 = ssub.s32 %s102, %s106
    %s109 = sor.u32 %s107, %s108
    %p110 = scmp.eq.s32.totalorder %s109, 0
    %s112 = sadd.s32 %s111, 1
    %s113 = scalar_select %p110, %s111, %s112
    %p116 = pneg %p110
    %p117 = scmp.eq.s32.totalorder %s15, 1
    %p118 = por %p116, %p117
    %p119 = scmp.ne.s32.totalorder %s111, %s114
    %p120 = scmp.eq.s32.totalorder %s15, 0
    %p121 = por %p119, %p120
    %p122 = scmp.ne.s32.totalorder %s111, %s114
    %p123 = scmp.eq.s32.totalorder %s20, 1
    %p124 = por %p122, %p123
    %p125 = scmp.ne.s32.totalorder %s114, %s115
    %p126 = scmp.eq.s32.totalorder %s20, 0
    %p127 = por %p125, %p126
    %p128 = scmp.ne.s32.totalorder %s114, %s115
    %p129 = scmp.eq.s32.totalorder %s21, 1
    %p130 = por %p128, %p129
    %p132 = scmp.ne.s32.totalorder %s115, %s131
    %p133 = scmp.eq.s32.totalorder %s21, 0
    %p134 = por %p132, %p133
    %s136 = sadd.s32 %s135, 1
    %p139 = scmp.eq.s32.totalorder %s15, 1
    %p140 = scmp.ne.s32.totalorder %s135, %s137
    %p141 = scmp.eq.s32.totalorder %s15, 0
    %p142 = por %p140, %p141
    %p143 = scmp.ne.s32.totalorder %s135, %s137
    %p144 = scmp.eq.s32.totalorder %s20, 1
    %p145 = por %p143, %p144
    %p146 = scmp.ne.s32.totalorder %s137, %s138
    %p147 = scmp.eq.s32.totalorder %s20, 0
    %p148 = por %p146, %p147
    %p149 = scmp.ne.s32.totalorder %s137, %s138
    %p150 = scmp.eq.s32.totalorder %s21, 1
    %p151 = por %p149, %p150
    %p153 = scmp.ne.s32.totalorder %s138, %s152
    %p154 = scmp.eq.s32.totalorder %s21, 0
    %p155 = por %p153, %p154
    %s157 = sadd.s32 %s156, 1
    %p160 = scmp.eq.s32.totalorder %s15, 1
    %p161 = scmp.ne.s32.totalorder %s156, %s158
    %p162 = scmp.eq.s32.totalorder %s15, 0
    %p163 = por %p161, %p162
    %p164 = scmp.ne.s32.totalorder %s156, %s158
    %p165 = scmp.eq.s32.totalorder %s20, 1
    %p166 = por %p164, %p165
    %p167 = scmp.ne.s32.totalorder %s158, %s159
    %p168 = scmp.eq.s32.totalorder %s20, 0
    %p169 = por %p167, %p168
    %p170 = scmp.ne.s32.totalorder %s158, %s159
    %p171 = scmp.eq.s32.totalorder %s21, 1
    %p172 = por %p170, %p171
    %p174 = scmp.ne.s32.totalorder %s159, %s173
    %p175 = scmp.eq.s32.totalorder %s21, 0
    %p176 = por %p174, %p175
    %s178 = sadd.s32 %s177, 1
    %p181 = scmp.eq.s32.totalorder %s15, 1
    %p182 = scmp.ne.s32.totalorder %s177, %s179
    %p183 = scmp.eq.s32.totalorder %s15, 0
    %p184 = por %p182, %p183
    %p185 = scmp.ne.s32.totalorder %s177, %s179
    %p186 = scmp.eq.s32.totalorder %s20, 1
    %p187 = por %p185, %p186
    %p188 = scmp.ne.s32.totalorder %s179, %s180
    %p189 = scmp.eq.s32.totalorder %s20, 0
    %p190 = por %p188, %p189
    %p191 = scmp.ne.s32.totalorder %s179, %s180
    %p192 = scmp.eq.s32.totalorder %s21, 1
    %p193 = por %p191, %p192
    %p195 = scmp.ne.s32.totalorder %s180, %s194
    %p196 = scmp.eq.s32.totalorder %s21, 0
    %p197 = por %p195, %p196
    %s198 = ssub.s32 %s22, %s34
    %s199 = ssub.s32 %s23, %s30
    %s200 = sor.u32 %s198, %s199
    %p201 = scmp.eq.s32.totalorder %s200, 0
    %s203 = sadd.s32 %s202, 1
    %s204 = scalar_select %p201, %s202, %s203
    %p207 = pneg %p201
    %p208 = scmp.eq.s32.totalorder %s15, 1
    %p209 = por %p207, %p208
    %p210 = scmp.ne.s32.totalorder %s202, %s205
    %p211 = scmp.eq.s32.totalorder %s15, 0
    %p212 = por %p210, %p211
    %p213 = scmp.ne.s32.totalorder %s202, %s205
    %p214 = scmp.eq.s32.totalorder %s20, 1
    %p215 = por %p213, %p214
    %p216 = scmp.ne.s32.totalorder %s205, %s206
    %p217 = scmp.eq.s32.totalorder %s20, 0
    %p218 = por %p216, %p217
    %p219 = scmp.ne.s32.totalorder %s205, %s206
    %p220 = scmp.eq.s32.totalorder %s21, 1
    %p221 = por %p219, %p220
    %p223 = scmp.ne.s32.totalorder %s206, %s222
    %p224 = scmp.eq.s32.totalorder %s21, 0
    %p225 = por %p223, %p224
    %s226 = ssub.s32 %s22, %s34
    %s227 = ssub.s32 %s23, %s30
    %s228 = sor.u32 %s226, %s227
    %p229 = scmp.eq.s32.totalorder %s228, 0
    %s231 = sadd.s32 %s230, 1
    %s232 = scalar_select %p229, %s230, %s231
    %p235 = pneg %p229
    %p236 = scmp.eq.s32.totalorder %s15, 1
    %p237 = por %p235, %p236
    %p238 = scmp.ne.s32.totalorder %s230, %s233
    %p239 = scmp.eq.s32.totalorder %s15, 0
    %p240 = por %p238, %p239
    %p241 = scmp.ne.s32.totalorder %s230, %s233
    %p242 = scmp.eq.s32.totalorder %s20, 1
    %p243 = por %p241, %p242
    %p244 = scmp.ne.s32.totalorder %s233, %s234
    %p245 = scmp.eq.s32.totalorder %s20, 0
    %p246 = por %p244, %p245
    %p247 = scmp.ne.s32.totalorder %s233, %s234
    %p248 = scmp.eq.s32.totalorder %s21, 1
    %p249 = por %p247, %p248
    %p251 = scmp.ne.s32.totalorder %s234, %s250
    %p252 = scmp.eq.s32.totalorder %s21, 0
    %p253 = por %p251, %p252
    %s254 = ssub.s32 %s22, %s34
    %s255 = ssub.s32 %s23, %s30
    %s256 = sor.u32 %s254, %s255
    %p257 = scmp.eq.s32.totalorder %s256, 0
    %s259 = sadd.s32 %s258, 1
    %s260 = scalar_select %p257, %s258, %s259
    %p263 = pneg %p257
    %p264 = scmp.eq.s32.totalorder %s15, 1
    %p265 = por %p263, %p264
    %p266 = scmp.ne.s32.totalorder %s258, %s261
    %p267 = scmp.eq.s32.totalorder %s15, 0
    %p268 = por %p266, %p267
    %p269 = scmp.ne.s32.totalorder %s258, %s261
    %p270 = scmp.eq.s32.totalorder %s20, 1
    %p271 = por %p269, %p270
    %p272 = scmp.ne.s32.totalorder %s261, %s262
    %p273 = scmp.eq.s32.totalorder %s20, 0
    %p274 = por %p272, %p273
    %p275 = scmp.ne.s32.totalorder %s261, %s262
    %p276 = scmp.eq.s32.totalorder %s21, 1
    %p277 = por %p275, %p276
    %p279 = scmp.ne.s32.totalorder %s262, %s278
    %p280 = scmp.eq.s32.totalorder %s21, 0
    %p281 = por %p279, %p280
    %p282 = scmp.le.s32.totalorder 1, %s15
    %p283 = scmp.lt.s32.totalorder %s15, 3
    %p284 = pnand %p282, %p283
    %p285 = pneg %p284
    // Predicated region
    $region9: #{double_conv.4} parent=5 // pred_check
      _
    $region10: #{double_conv.4} parent=5 // pred_check_branch
      %287 = sbr.rel (%p284) target = $region12
    $region11: #{double_conv.4} parent=5 // pred_region
      %s288 = ssub.s32 %s15, 1
      // Predicated region
      $region13: #{double_conv.4} parent=11 // pred_check
        %p289 = pneg %p148
      $region14: #{double_conv.4} parent=11 // pred_check_branch
        %291 = sbr.rel (%p289) target = $region16
      $region15: #{double_conv.4} parent=11 // pred_region
        _
      $region16: #{double_conv.4} parent=11 // pred_fallthru
        _
      // Predicated region
      $region17: #{double_conv.4} parent=11 // pred_check
        %p292 = pneg %p169
      $region18: #{double_conv.4} parent=11 // pred_check_branch
        %294 = sbr.rel (%p292) target = $region20
      $region19: #{double_conv.4} parent=11 // pred_region
        _
      $region20: #{double_conv.4} parent=11 // pred_fallthru
        _
      // Predicated region
      $region21: #{double_conv.4} parent=11 // pred_check
        %p295 = pneg %p190
      $region22: #{double_conv.4} parent=11 // pred_check_branch
        %297 = sbr.rel (%p295) target = $region24
      $region23: #{double_conv.4} parent=11 // pred_region
        _
      $region24: #{double_conv.4} parent=11 // pred_fallthru
        _
    $region12: #{double_conv.4} parent=5 // pred_fallthru
      _
    %p298 = scmp.lt.s32.totalorder %s15, 2
    // Predicated region
    $region25: #{double_conv.4} parent=5 // pred_check
      %p299 = pneg %p298
    $region26: #{double_conv.4} parent=5 // pred_check_branch
      %301 = sbr.rel (%p299) target = $region28
    $region27: #{double_conv.4} parent=5 // pred_region
      // Predicated region
      $region29: #{double_conv.4} parent=27 // pred_check
        %p302 = pneg %p49
      $region30: #{double_conv.4} parent=27 // pred_check_branch
        %304 = sbr.rel (%p302) target = $region32
      $region31: #{double_conv.4} parent=27 // pred_region
        %s305 = smul.u32 16, %s23
        %p306 = scmp.lt.s32.totalorder %s22, 1
        %s307 = scalar_select %p306, %s22, 1
        %p308 = scmp.lt.s32.totalorder %s305, 15
        %s309 = scalar_select %p308, %s305, 15
        %s310 = smul.addr %s309, 2
        %s311 = smul.addr %s307, 32
        %s312 = sadd.s32 %s310, %s311
        %s313 = smul.addr %s312, 8
        %s314 = scalar_lea.vmem %s0, %s313
        %s315 = smul.u32 16, %s23
      $region32: #{double_conv.4} parent=27 // pred_fallthru
        _
      // Predicated region
      $region33: #{double_conv.4} parent=27 // pred_check
        %p316 = pneg %p85
      $region34: #{double_conv.4} parent=27 // pred_check_branch
        %318 = sbr.rel (%p316) target = $region36
      $region35: #{double_conv.4} parent=27 // pred_region
        %s319 = smul.u32 %s23, 16
        %s320 = ssub.s32 %s319, 1
        %p321 = scmp.gt.s32.totalorder %s320, 0
        %s322 = scalar_select %p321, %s320, 0
        %p323 = scmp.lt.s32.totalorder %s22, 1
        %s324 = scalar_select %p323, %s22, 1
        %p325 = scmp.lt.s32.totalorder %s322, 15
        %s326 = scalar_select %p325, %s322, 15
        %s327 = smul.addr %s326, 2
        %s328 = smul.addr %s324, 32
        %s329 = sadd.s32 %s327, %s328
        %s330 = smul.addr %s329, 8
        %s331 = scalar_lea.vmem %s1, %s330
        %s332 = smul.u32 %s23, 16
        %s333 = ssub.s32 %s332, 1
        %p334 = scmp.gt.s32.totalorder %s333, 0
        %s335 = scalar_select %p334, %s333, 0
      $region36: #{double_conv.4} parent=27 // pred_fallthru
        _
      // Predicated region
      $region37: #{double_conv.4} parent=27 // pred_check
        %p336 = pneg %p121
      $region38: #{double_conv.4} parent=27 // pred_check_branch
        %338 = sbr.rel (%p336) target = $region40
      $region39: #{double_conv.4} parent=27 // pred_region
        %s339 = smul.u32 %s23, 16
        %s340 = sadd.s32 %s339, 16
        %p341 = scmp.lt.s32.totalorder %s340, 15
        %s342 = scalar_select %p341, %s340, 15
        %p343 = scmp.lt.s32.totalorder %s22, 1
        %s344 = scalar_select %p343, %s22, 1
        %p345 = scmp.lt.s32.totalorder %s342, 15
        %s346 = scalar_select %p345, %s342, 15
        %s347 = smul.addr %s346, 2
        %s348 = smul.addr %s344, 32
        %s349 = sadd.s32 %s347, %s348
        %s350 = smul.addr %s349, 8
        %s351 = scalar_lea.vmem %s2, %s350
        %s352 = smul.u32 %s23, 16
        %s353 = sadd.s32 %s352, 16
        %p354 = scmp.lt.s32.totalorder %s353, 15
        %s355 = scalar_select %p354, %s353, 15
      $region40: #{double_conv.4} parent=27 // pred_fallthru
        _
    $region28: #{double_conv.4} parent=5 // pred_fallthru
      _
    %p356 = scmp.le.s32.totalorder 1, %s15
    %p357 = scmp.lt.s32.totalorder %s15, 3
    %p358 = pnand %p356, %p357
    %p359 = pneg %p358
    // Predicated region
    $region41: #{double_conv.4} parent=5 // pred_check
      _
    $region42: #{double_conv.4} parent=5 // pred_check_branch
      %361 = sbr.rel (%p358) target = $region44
    $region43: #{double_conv.4} parent=5 // pred_region
      %s362 = ssub.s32 %s15, 1
      %s363 = smul.u32 16, %s25
      %p364 = scmp.lt.s32.totalorder %s24, 1
      %s365 = scalar_select %p364, %s24, 1
      %p366 = scmp.lt.s32.totalorder %s363, 15
      %s367 = scalar_select %p366, %s363, 15
      %s368 = smul.addr %s367, 2
      %s369 = smul.addr %s365, 32
      %s370 = sadd.s32 %s368, %s369
      %s371 = smul.addr %s370, 8
      %s372 = scalar_lea.vmem %s0, %s371
      %p373 = pneg %p55
      %p374 = pneg %p52
      %s375 = smul.u32 %s25, 16
      %s376 = ssub.s32 %s375, 1
      %p377 = scmp.gt.s32.totalorder %s376, 0
      %s378 = scalar_select %p377, %s376, 0
      %p379 = scmp.lt.s32.totalorder %s24, 1
      %s380 = scalar_select %p379, %s24, 1
      %p381 = scmp.lt.s32.totalorder %s378, 15
      %s382 = scalar_select %p381, %s378, 15
      %s383 = smul.addr %s382, 2
      %s384 = smul.addr %s380, 32
      %s385 = sadd.s32 %s383, %s384
      %s386 = smul.addr %s385, 8
      %s387 = scalar_lea.vmem %s1, %s386
      %p388 = pneg %p91
      %p389 = pneg %p88
      %s390 = smul.u32 %s25, 16
      %s391 = sadd.s32 %s390, 16
      %p392 = scmp.lt.s32.totalorder %s391, 15
      %s393 = scalar_select %p392, %s391, 15
      %p394 = scmp.lt.s32.totalorder %s24, 1
      %s395 = scalar_select %p394, %s24, 1
      %p396 = scmp.lt.s32.totalorder %s393, 15
      %s397 = scalar_select %p396, %s393, 15
      %s398 = smul.addr %s397, 2
      %s399 = smul.addr %s395, 32
      %s400 = sadd.s32 %s398, %s399
      %s401 = smul.addr %s400, 8
      %s402 = scalar_lea.vmem %s2, %s401
      %p403 = pneg %p127
      %p404 = pneg %p124
      %p405 = pneg %p148
      %p406 = pneg %p145
      %p407 = pneg %p169
      %p408 = pneg %p166
      %p409 = pneg %p190
      %p410 = pneg %p187
      %p411 = pneg %p218
      %p412 = pneg %p215
      %s413 = smul.u32 16, %s25
      %p414 = scmp.lt.s32.totalorder %s24, 1
      %s415 = scalar_select %p414, %s24, 1
      %p416 = scmp.lt.s32.totalorder %s413, 15
      %s417 = scalar_select %p416, %s413, 15
      %s418 = smul.addr %s417, 2
      %s419 = smul.addr %s415, 32
      %s420 = sadd.s32 %s418, %s419
      %s421 = smul.addr %s420, 8
      %s422 = scalar_lea.vmem %s6, %s421
      %p423 = pneg %p246
      %p424 = pneg %p243
      %p425 = scmp.lt.s32.totalorder %s24, 1
      %s426 = scalar_select %p425, %s24, 1
      %p427 = scmp.lt.s32.totalorder %s25, 0
      %s428 = scalar_select %p427, %s25, 0
      %s429 = sadd.s32 %s428, %s426
      %s430 = scalar_lea.vmem %s7, %s429
      %p431 = pneg %p274
      %p432 = pneg %p271
      %p433 = scmp.lt.s32.totalorder %s24, 1
      %s434 = scalar_select %p433, %s24, 1
      %p435 = scmp.lt.s32.totalorder %s25, 0
      %s436 = scalar_select %p435, %s25, 0
      %s437 = sadd.s32 %s436, %s434
      %s438 = scalar_lea.vmem %s8, %s437
      %s439 = smul.u32 16, %s25
      %p440 = scmp.lt.s32.totalorder %s24, 1
      %s441 = scalar_select %p440, %s24, 1
      %p442 = scmp.lt.s32.totalorder %s439, 15
      %s443 = scalar_select %p442, %s439, 15
      %s444 = smul.addr %s443, 2
      %s445 = smul.addr %s441, 32
      %s446 = sadd.s32 %s444, %s445
      %s447 = smul.addr %s446, 8
      %s448 = scalar_lea.vmem %s0, %s447
      %s449 = smul.u32 16, %s25
      %s450 = smul.u32 %s25, 16
      %s451 = ssub.s32 %s450, 1
      %p452 = scmp.gt.s32.totalorder %s451, 0
      %s453 = scalar_select %p452, %s451, 0
      %p454 = scmp.lt.s32.totalorder %s24, 1
      %s455 = scalar_select %p454, %s24, 1
      %p456 = scmp.lt.s32.totalorder %s453, 15
      %s457 = scalar_select %p456, %s453, 15
      %s458 = smul.addr %s457, 2
      %s459 = smul.addr %s455, 32
      %s460 = sadd.s32 %s458, %s459
      %s461 = smul.addr %s460, 8
      %s462 = scalar_lea.vmem %s1, %s461
      %s463 = smul.u32 %s25, 16
      %s464 = ssub.s32 %s463, 1
      %p465 = scmp.gt.s32.totalorder %s464, 0
      %s466 = scalar_select %p465, %s464, 0
      %s467 = smul.u32 %s25, 16
      %s468 = sadd.s32 %s467, 16
      %p469 = scmp.lt.s32.totalorder %s468, 15
      %s470 = scalar_select %p469, %s468, 15
      %p471 = scmp.lt.s32.totalorder %s24, 1
      %s472 = scalar_select %p471, %s24, 1
      %p473 = scmp.lt.s32.totalorder %s470, 15
      %s474 = scalar_select %p473, %s470, 15
      %s475 = smul.addr %s474, 2
      %s476 = smul.addr %s472, 32
      %s477 = sadd.s32 %s475, %s476
      %s478 = smul.addr %s477, 8
      %s479 = scalar_lea.vmem %s2, %s478
      %s480 = smul.u32 %s25, 16
      %s481 = sadd.s32 %s480, 16
      %p482 = scmp.lt.s32.totalorder %s481, 15
      %s483 = scalar_select %p482, %s481, 15
      %s484 = smul.u32 16, %s25
      %p485 = scmp.lt.s32.totalorder %s24, 1
      %s486 = scalar_select %p485, %s24, 1
      %p487 = scmp.lt.s32.totalorder %s484, 15
      %s488 = scalar_select %p487, %s484, 15
      %s489 = smul.addr %s488, 2
      %s490 = smul.addr %s486, 32
      %s491 = sadd.s32 %s489, %s490
      %s492 = smul.addr %s491, 8
      %s493 = scalar_lea.vmem %s6, %s492
      %s494 = smul.u32 16, %s25
      %p495 = scmp.lt.s32.totalorder %s24, 1
      %s496 = scalar_select %p495, %s24, 1
      %p497 = scmp.lt.s32.totalorder %s25, 0
      %s498 = scalar_select %p497, %s25, 0
      %s499 = sadd.s32 %s498, %s496
      %s500 = scalar_lea.vmem %s7, %s499
      %p501 = scmp.lt.s32.totalorder %s24, 1
      %s502 = scalar_select %p501, %s24, 1
      %p503 = scmp.lt.s32.totalorder %s25, 0
      %s504 = scalar_select %p503, %s25, 0
      %s505 = sadd.s32 %s504, %s502
      %s506 = scalar_lea.vmem %s8, %s505
      %v507 = vld [vmem:[%s3] sm:$0x1]
      %v508 = vld [vmem:[%s4] sm:$0x1]
      %v509 = vld [vmem:[%s448] sm:$0xff]
      %v510 = vld [vmem:[%s448 + $0x8] sm:$0xff]
      %v511 = vld [vmem:[%s448 + $0x10] sm:$0xff]
      %v512 = vld [vmem:[%s448 + $0x18] sm:$0xff]
      %v513 = vld [vmem:[%s448 + $0x20] sm:$0xff]
      %v514 = vld [vmem:[%s448 + $0x28] sm:$0xff]
      %v515 = vld [vmem:[%s448 + $0x30] sm:$0xff]
      %v516 = vld [vmem:[%s448 + $0x38] sm:$0xff]
      %v517 = vld [vmem:[%s448 + $0x40] sm:$0xff]
      %v518 = vld [vmem:[%s448 + $0x48] sm:$0xff]
      %v519 = vld [vmem:[%s448 + $0x50] sm:$0xff]
      %v520 = vld [vmem:[%s448 + $0x58] sm:$0xff]
      %v521 = vld [vmem:[%s448 + $0x60] sm:$0xff]
      %v522 = vld [vmem:[%s448 + $0x68] sm:$0xff]
      %v523 = vld [vmem:[%s448 + $0x70] sm:$0xff]
      %v524 = vld [vmem:[%s448 + $0x78] sm:$0xff]
      %v525 = vld [vmem:[%s448 + $0x80] sm:$0xff]
      %v526 = vld [vmem:[%s448 + $0x88] sm:$0xff]
      %v527 = vld [vmem:[%s448 + $0x90] sm:$0xff]
      %v528 = vld [vmem:[%s448 + $0x98] sm:$0xff]
      %v529 = vld [vmem:[%s448 + $0xa0] sm:$0xff]
      %v530 = vld [vmem:[%s448 + $0xa8] sm:$0xff]
      %v531 = vld [vmem:[%s448 + $0xb0] sm:$0xff]
      %v532 = vld [vmem:[%s448 + $0xb8] sm:$0xff]
      %v533 = vld [vmem:[%s448 + $0xc0] sm:$0xff]
      %v534 = vld [vmem:[%s448 + $0xc8] sm:$0xff]
      %v535 = vld [vmem:[%s448 + $0xd0] sm:$0xff]
      %v536 = vld [vmem:[%s448 + $0xd8] sm:$0xff]
      %v537 = vld [vmem:[%s448 + $0xe0] sm:$0xff]
      %v538 = vld [vmem:[%s448 + $0xe8] sm:$0xff]
      %v539 = vld [vmem:[%s448 + $0xf0] sm:$0xff]
      %v540 = vld [vmem:[%s448 + $0xf8] sm:$0xff]
      %v542 = vlaneseq
      %v543 = vshrl.u32 %v542, 7
      %v544 = vsub.s32 0, %v543
      %v545 = vrot.slane %v507, %v544
      %v547 = vmul.f32 %v509, %v545
      %v548 = vmul.f32 %v510, %v545
      %v549 = vmul.f32 %v511, %v545
      %v550 = vmul.f32 %v512, %v545
      %v551 = vmul.f32 %v513, %v545
      %v552 = vmul.f32 %v514, %v545
      %v553 = vmul.f32 %v515, %v545
      %v554 = vmul.f32 %v516, %v545
      %v555 = vmul.f32 %v517, %v545
      %v556 = vmul.f32 %v518, %v545
      %v557 = vmul.f32 %v519, %v545
      %v558 = vmul.f32 %v520, %v545
      %v559 = vmul.f32 %v521, %v545
      %v560 = vmul.f32 %v522, %v545
      %v561 = vmul.f32 %v523, %v545
      %v562 = vmul.f32 %v524, %v545
      %v563 = vmul.f32 %v525, %v545
      %v564 = vmul.f32 %v526, %v545
      %v565 = vmul.f32 %v527, %v545
      %v566 = vmul.f32 %v528, %v545
      %v567 = vmul.f32 %v529, %v545
      %v568 = vmul.f32 %v530, %v545
      %v569 = vmul.f32 %v531, %v545
      %v570 = vmul.f32 %v532, %v545
      %v571 = vmul.f32 %v533, %v545
      %v572 = vmul.f32 %v534, %v545
      %v573 = vmul.f32 %v535, %v545
      %v574 = vmul.f32 %v536, %v545
      %v575 = vmul.f32 %v537, %v545
      %v576 = vmul.f32 %v538, %v545
      %v577 = vmul.f32 %v539, %v545
      %v578 = vmul.f32 %v540, %v545
      %v580 = vlaneseq
      %v581 = vshrl.u32 %v580, 7
      %v582 = vsub.s32 0, %v581
      %v583 = vrot.slane %v508, %v582
      %v585 = vadd.f32 %v547, %v583
      %v586 = vadd.f32 %v548, %v583
      %v587 = vadd.f32 %v549, %v583
      %v588 = vadd.f32 %v550, %v583
      %v589 = vadd.f32 %v551, %v583
      %v590 = vadd.f32 %v552, %v583
      %v591 = vadd.f32 %v553, %v583
      %v592 = vadd.f32 %v554, %v583
      %v593 = vadd.f32 %v555, %v583
      %v594 = vadd.f32 %v556, %v583
      %v595 = vadd.f32 %v557, %v583
      %v596 = vadd.f32 %v558, %v583
      %v597 = vadd.f32 %v559, %v583
      %v598 = vadd.f32 %v560, %v583
      %v599 = vadd.f32 %v561, %v583
      %v600 = vadd.f32 %v562, %v583
      %v601 = vadd.f32 %v563, %v583
      %v602 = vadd.f32 %v564, %v583
      %v603 = vadd.f32 %v565, %v583
      %v604 = vadd.f32 %v566, %v583
      %v605 = vadd.f32 %v567, %v583
      %v606 = vadd.f32 %v568, %v583
      %v607 = vadd.f32 %v569, %v583
      %v608 = vadd.f32 %v570, %v583
      %v609 = vadd.f32 %v571, %v583
      %v610 = vadd.f32 %v572, %v583
      %v611 = vadd.f32 %v573, %v583
      %v612 = vadd.f32 %v574, %v583
      %v613 = vadd.f32 %v575, %v583
      %v614 = vadd.f32 %v576, %v583
      %v615 = vadd.f32 %v577, %v583
      %v616 = vadd.f32 %v578, %v583
      %v617 = vmax.f32 %v585, 0.0
      %v618 = vmax.f32 %v586, 0.0
      %v619 = vmax.f32 %v587, 0.0
      %v620 = vmax.f32 %v588, 0.0
      %v621 = vmax.f32 %v589, 0.0
      %v622 = vmax.f32 %v590, 0.0
      %v623 = vmax.f32 %v591, 0.0
      %v624 = vmax.f32 %v592, 0.0
      %v625 = vmax.f32 %v593, 0.0
      %v626 = vmax.f32 %v594, 0.0
      %v627 = vmax.f32 %v595, 0.0
      %v628 = vmax.f32 %v596, 0.0
      %v629 = vmax.f32 %v597, 0.0
      %v630 = vmax.f32 %v598, 0.0
      %v631 = vmax.f32 %v599, 0.0
      %v632 = vmax.f32 %v600, 0.0
      %v633 = vmax.f32 %v601, 0.0
      %v634 = vmax.f32 %v602, 0.0
      %v635 = vmax.f32 %v603, 0.0
      %v636 = vmax.f32 %v604, 0.0
      %v637 = vmax.f32 %v605, 0.0
      %v638 = vmax.f32 %v606, 0.0
      %v639 = vmax.f32 %v607, 0.0
      %v640 = vmax.f32 %v608, 0.0
      %v641 = vmax.f32 %v609, 0.0
      %v642 = vmax.f32 %v610, 0.0
      %v643 = vmax.f32 %v611, 0.0
      %v644 = vmax.f32 %v612, 0.0
      %v645 = vmax.f32 %v613, 0.0
      %v646 = vmax.f32 %v614, 0.0
      %v647 = vmax.f32 %v615, 0.0
      %v648 = vmax.f32 %v616, 0.0
      %v649 = vld [vmem:[%s462] sm:$0xff]
      %v650 = vld [vmem:[%s462 + $0x8] sm:$0xff]
      %v651 = vmul.f32 %v649, %v545
      %v652 = vmul.f32 %v650, %v545
      %v653 = vadd.f32 %v651, %v583
      %v654 = vadd.f32 %v652, %v583
      %v655 = vmax.f32 %v653, 0.0
      %v656 = vmax.f32 %v654, 0.0
      %v657 = vld [vmem:[%s479] sm:$0xff]
      %v658 = vld [vmem:[%s479 + $0x8] sm:$0xff]
      %v659 = vmul.f32 %v657, %v545
      %v660 = vmul.f32 %v658, %v545
      %v661 = vadd.f32 %v659, %v583
      %v662 = vadd.f32 %v660, %v583
      %v663 = vmax.f32 %v661, 0.0
      %v664 = vmax.f32 %v662, 0.0
      %p665 = scmp.ne.s32.totalorder %s25, 0
      %s666 = scalar_select %p665, 1, 0
      %s667 = scvt.s32.f32 %s666
      %v668 = vstv %s667
      %v669 = vmul.f32 %v655, %v668
      %v670 = vmul.f32 %v656, %v668
      %v671 = vmul.f32 %v663, %v668
      %v672 = vmul.f32 %v664, %v668
      %vm709 = vcmask 1040384
      %v710 = vrot.slane %v669, 7
      %v711 = vrot.slane %v670, 7
      %v712 = vsel %vm709, %v710, %v711
      %v713 = vrot.slane %v617, 7
      %v714 = vrot.slane %v618, 7
      %v715 = vsel %vm709, %v713, %v714
      %v716 = vrot.slane %v619, 7
      %v717 = vrot.slane %v620, 7
      %v718 = vsel %vm709, %v716, %v717
      %v719 = vrot.slane %v621, 7
      %v720 = vrot.slane %v622, 7
      %v721 = vsel %vm709, %v719, %v720
      %v722 = vrot.slane %v623, 7
      %v723 = vrot.slane %v624, 7
      %v724 = vsel %vm709, %v722, %v723
      %v725 = vrot.slane %v625, 7
      %v726 = vrot.slane %v626, 7
      %v727 = vsel %vm709, %v725, %v726
      %v728 = vrot.slane %v627, 7
      %v729 = vrot.slane %v628, 7
      %v730 = vsel %vm709, %v728, %v729
      %v731 = vrot.slane %v629, 7
      %v732 = vrot.slane %v630, 7
      %v733 = vsel %vm709, %v731, %v732
      %v734 = vrot.slane %v631, 7
      %v735 = vrot.slane %v632, 7
      %v736 = vsel %vm709, %v734, %v735
      %v737 = vrot.slane %v633, 7
      %v738 = vrot.slane %v634, 7
      %v739 = vsel %vm709, %v737, %v738
      %v740 = vrot.slane %v635, 7
      %v741 = vrot.slane %v636, 7
      %v742 = vsel %vm709, %v740, %v741
      %v743 = vrot.slane %v637, 7
      %v744 = vrot.slane %v638, 7
      %v745 = vsel %vm709, %v743, %v744
      %v746 = vrot.slane %v639, 7
      %v747 = vrot.slane %v640, 7
      %v748 = vsel %vm709, %v746, %v747
      %v749 = vrot.slane %v641, 7
      %v750 = vrot.slane %v642, 7
      %v751 = vsel %vm709, %v749, %v750
      %v752 = vrot.slane %v643, 7
      %v753 = vrot.slane %v644, 7
      %v754 = vsel %vm709, %v752, %v753
      %v755 = vrot.slane %v645, 7
      %v756 = vrot.slane %v646, 7
      %v757 = vsel %vm709, %v755, %v756
      %v758 = vrot.slane %v647, 7
      %v759 = vrot.slane %v648, 7
      %v760 = vsel %vm709, %v758, %v759
      %v761 = vrot.slane %v671, 7
      %v762 = vrot.slane %v672, 7
      %v763 = vsel %vm709, %v761, %v762
      %v800 = vsel %vm709, 0.0, %v710
      %v801 = vsel %vm709, 0.0, %v713
      %v802 = vsel %vm709, 0.0, %v716
      %v803 = vsel %vm709, 0.0, %v719
      %v804 = vsel %vm709, 0.0, %v722
      %v805 = vsel %vm709, 0.0, %v725
      %v806 = vsel %vm709, 0.0, %v728
      %v807 = vsel %vm709, 0.0, %v731
      %v808 = vsel %vm709, 0.0, %v734
      %v809 = vsel %vm709, 0.0, %v737
      %v810 = vsel %vm709, 0.0, %v740
      %v811 = vsel %vm709, 0.0, %v743
      %v812 = vsel %vm709, 0.0, %v746
      %v813 = vsel %vm709, 0.0, %v749
      %v814 = vsel %vm709, 0.0, %v752
      %v815 = vsel %vm709, 0.0, %v755
      %v816 = vsel %vm709, 0.0, %v758
      %v817 = vsel %vm709, 0.0, %v761
      %vm818 = vcmask 1046528
      %v819 = vrot.slane %v669, 1
      %v820 = vrot.slane %v670, 1
      %v821 = vsel %vm818, %v819, %v820
      %v822 = vrot.slane %v617, 1
      %v823 = vrot.slane %v618, 1
      %v824 = vsel %vm818, %v822, %v823
      %v825 = vrot.slane %v619, 1
      %v826 = vrot.slane %v620, 1
      %v827 = vsel %vm818, %v825, %v826
      %v828 = vrot.slane %v621, 1
      %v829 = vrot.slane %v622, 1
      %v830 = vsel %vm818, %v828, %v829
      %v831 = vrot.slane %v623, 1
      %v832 = vrot.slane %v624, 1
      %v833 = vsel %vm818, %v831, %v832
      %v834 = vrot.slane %v625, 1
      %v835 = vrot.slane %v626, 1
      %v836 = vsel %vm818, %v834, %v835
      %v837 = vrot.slane %v627, 1
      %v838 = vrot.slane %v628, 1
      %v839 = vsel %vm818, %v837, %v838
      %v840 = vrot.slane %v629, 1
      %v841 = vrot.slane %v630, 1
      %v842 = vsel %vm818, %v840, %v841
      %v843 = vrot.slane %v631, 1
      %v844 = vrot.slane %v632, 1
      %v845 = vsel %vm818, %v843, %v844
      %v846 = vrot.slane %v633, 1
      %v847 = vrot.slane %v634, 1
      %v848 = vsel %vm818, %v846, %v847
      %v849 = vrot.slane %v635, 1
      %v850 = vrot.slane %v636, 1
      %v851 = vsel %vm818, %v849, %v850
      %v852 = vrot.slane %v637, 1
      %v853 = vrot.slane %v638, 1
      %v854 = vsel %vm818, %v852, %v853
      %v855 = vrot.slane %v639, 1
      %v856 = vrot.slane %v640, 1
      %v857 = vsel %vm818, %v855, %v856
      %v858 = vrot.slane %v641, 1
      %v859 = vrot.slane %v642, 1
      %v860 = vsel %vm818, %v858, %v859
      %v861 = vrot.slane %v643, 1
      %v862 = vrot.slane %v644, 1
      %v863 = vsel %vm818, %v861, %v862
      %v864 = vrot.slane %v645, 1
      %v865 = vrot.slane %v646, 1
      %v866 = vsel %vm818, %v864, %v865
      %v867 = vrot.slane %v647, 1
      %v868 = vrot.slane %v648, 1
      %v869 = vsel %vm818, %v867, %v868
      %v870 = vrot.slane %v671, 1
      %v871 = vrot.slane %v672, 1
      %v872 = vsel %vm818, %v870, %v871
      %v891 = vsel %vm818, %v820, 0.0
      %v892 = vsel %vm818, %v823, 0.0
      %v893 = vsel %vm818, %v826, 0.0
      %v894 = vsel %vm818, %v829, 0.0
      %v895 = vsel %vm818, %v832, 0.0
      %v896 = vsel %vm818, %v835, 0.0
      %v897 = vsel %vm818, %v838, 0.0
      %v898 = vsel %vm818, %v841, 0.0
      %v899 = vsel %vm818, %v844, 0.0
      %v900 = vsel %vm818, %v847, 0.0
      %v901 = vsel %vm818, %v850, 0.0
      %v902 = vsel %vm818, %v853, 0.0
      %v903 = vsel %vm818, %v856, 0.0
      %v904 = vsel %vm818, %v859, 0.0
      %v905 = vsel %vm818, %v862, 0.0
      %v906 = vsel %vm818, %v865, 0.0
      %v907 = vsel %vm818, %v868, 0.0
      %v908 = vsel %vm818, %v871, 0.0
      %909 = vrot.lane.b32.xlu0 %v669, 8
      %v910 = vpop.permute.xlu0 %909
      %911 = vrot.lane.b32.xlu0 %v670, 8
      %v912 = vpop.permute.xlu0 %911
      %913 = vrot.lane.b32.xlu0 %v617, 8
      %v914 = vpop.permute.xlu0 %913
      %915 = vrot.lane.b32.xlu0 %v618, 8
      %v916 = vpop.permute.xlu0 %915
      %917 = vrot.lane.b32.xlu0 %v619, 8
      %v918 = vpop.permute.xlu0 %917
      %919 = vrot.lane.b32.xlu0 %v620, 8
      %v920 = vpop.permute.xlu0 %919
      %921 = vrot.lane.b32.xlu0 %v621, 8
      %v922 = vpop.permute.xlu0 %921
      %923 = vrot.lane.b32.xlu0 %v622, 8
      %v924 = vpop.permute.xlu0 %923
      %925 = vrot.lane.b32.xlu0 %v623, 8
      %v926 = vpop.permute.xlu0 %925
      %927 = vrot.lane.b32.xlu0 %v624, 8
      %v928 = vpop.permute.xlu0 %927
      %929 = vrot.lane.b32.xlu0 %v625, 8
      %v930 = vpop.permute.xlu0 %929
      %931 = vrot.lane.b32.xlu0 %v626, 8
      %v932 = vpop.permute.xlu0 %931
      %933 = vrot.lane.b32.xlu0 %v627, 8
      %v934 = vpop.permute.xlu0 %933
      %935 = vrot.lane.b32.xlu0 %v628, 8
      %v936 = vpop.permute.xlu0 %935
      %937 = vrot.lane.b32.xlu0 %v629, 8
      %v938 = vpop.permute.xlu0 %937
      %939 = vrot.lane.b32.xlu0 %v630, 8
      %v940 = vpop.permute.xlu0 %939
      %941 = vrot.lane.b32.xlu0 %v631, 8
      %v942 = vpop.permute.xlu0 %941
      %943 = vrot.lane.b32.xlu0 %v632, 8
      %v944 = vpop.permute.xlu0 %943
      %945 = vrot.lane.b32.xlu0 %v633, 8
      %v946 = vpop.permute.xlu0 %945
      %947 = vrot.lane.b32.xlu0 %v634, 8
      %v948 = vpop.permute.xlu0 %947
      %949 = vrot.lane.b32.xlu0 %v635, 8
      %v950 = vpop.permute.xlu0 %949
      %951 = vrot.lane.b32.xlu0 %v636, 8
      %v952 = vpop.permute.xlu0 %951
      %953 = vrot.lane.b32.xlu0 %v637, 8
      %v954 = vpop.permute.xlu0 %953
      %955 = vrot.lane.b32.xlu0 %v638, 8
      %v956 = vpop.permute.xlu0 %955
      %957 = vrot.lane.b32.xlu0 %v639, 8
      %v958 = vpop.permute.xlu0 %957
      %959 = vrot.lane.b32.xlu0 %v640, 8
      %v960 = vpop.permute.xlu0 %959
      %961 = vrot.lane.b32.xlu0 %v641, 8
      %v962 = vpop.permute.xlu0 %961
      %963 = vrot.lane.b32.xlu0 %v642, 8
      %v964 = vpop.permute.xlu0 %963
      %965 = vrot.lane.b32.xlu0 %v643, 8
      %v966 = vpop.permute.xlu0 %965
      %967 = vrot.lane.b32.xlu0 %v644, 8
      %v968 = vpop.permute.xlu0 %967
      %969 = vrot.lane.b32.xlu0 %v645, 8
      %v970 = vpop.permute.xlu0 %969
      %971 = vrot.lane.b32.xlu0 %v646, 8
      %v972 = vpop.permute.xlu0 %971
      %973 = vrot.lane.b32.xlu0 %v647, 8
      %v974 = vpop.permute.xlu0 %973
      %975 = vrot.lane.b32.xlu0 %v648, 8
      %v976 = vpop.permute.xlu0 %975
      %977 = vrot.lane.b32.xlu0 %v671, 8
      %v978 = vpop.permute.xlu0 %977
      %979 = vrot.lane.b32.xlu0 %v672, 8
      %v980 = vpop.permute.xlu0 %979
      %1035 = vrot.lane.b32.xlu0 %v821, 16
      %v1036 = vpop.permute.xlu0 %1035
      %1037 = vrot.lane.b32.xlu0 %v891, 16
      %v1038 = vpop.permute.xlu0 %1037
      %1039 = vrot.lane.b32.xlu0 %v824, 16
      %v1040 = vpop.permute.xlu0 %1039
      %1041 = vrot.lane.b32.xlu0 %v892, 16
      %v1042 = vpop.permute.xlu0 %1041
      %1043 = vrot.lane.b32.xlu0 %v827, 16
      %v1044 = vpop.permute.xlu0 %1043
      %1045 = vrot.lane.b32.xlu0 %v893, 16
      %v1046 = vpop.permute.xlu0 %1045
      %1047 = vrot.lane.b32.xlu0 %v830, 16
      %v1048 = vpop.permute.xlu0 %1047
      %1049 = vrot.lane.b32.xlu0 %v894, 16
      %v1050 = vpop.permute.xlu0 %1049
      %1051 = vrot.lane.b32.xlu0 %v833, 16
      %v1052 = vpop.permute.xlu0 %1051
      %1053 = vrot.lane.b32.xlu0 %v895, 16
      %v1054 = vpop.permute.xlu0 %1053
      %1055 = vrot.lane.b32.xlu0 %v836, 16
      %v1056 = vpop.permute.xlu0 %1055
      %1057 = vrot.lane.b32.xlu0 %v896, 16
      %v1058 = vpop.permute.xlu0 %1057
      %1059 = vrot.lane.b32.xlu0 %v839, 16
      %v1060 = vpop.permute.xlu0 %1059
      %1061 = vrot.lane.b32.xlu0 %v897, 16
      %v1062 = vpop.permute.xlu0 %1061
      %1063 = vrot.lane.b32.xlu0 %v842, 16
      %v1064 = vpop.permute.xlu0 %1063
      %1065 = vrot.lane.b32.xlu0 %v898, 16
      %v1066 = vpop.permute.xlu0 %1065
      %1067 = vrot.lane.b32.xlu0 %v845, 16
      %v1068 = vpop.permute.xlu0 %1067
      %1069 = vrot.lane.b32.xlu0 %v899, 16
      %v1070 = vpop.permute.xlu0 %1069
      %1071 = vrot.lane.b32.xlu0 %v848, 16
      %v1072 = vpop.permute.xlu0 %1071
      %1073 = vrot.lane.b32.xlu0 %v900, 16
      %v1074 = vpop.permute.xlu0 %1073
      %1075 = vrot.lane.b32.xlu0 %v851, 16
      %v1076 = vpop.permute.xlu0 %1075
      %1077 = vrot.lane.b32.xlu0 %v901, 16
      %v1078 = vpop.permute.xlu0 %1077
      %1079 = vrot.lane.b32.xlu0 %v854, 16
      %v1080 = vpop.permute.xlu0 %1079
      %1081 = vrot.lane.b32.xlu0 %v902, 16
      %v1082 = vpop.permute.xlu0 %1081
      %1083 = vrot.lane.b32.xlu0 %v857, 16
      %v1084 = vpop.permute.xlu0 %1083
      %1085 = vrot.lane.b32.xlu0 %v903, 16
      %v1086 = vpop.permute.xlu0 %1085
      %1087 = vrot.lane.b32.xlu0 %v860, 16
      %v1088 = vpop.permute.xlu0 %1087
      %1089 = vrot.lane.b32.xlu0 %v904, 16
      %v1090 = vpop.permute.xlu0 %1089
      %1091 = vrot.lane.b32.xlu0 %v863, 16
      %v1092 = vpop.permute.xlu0 %1091
      %1093 = vrot.lane.b32.xlu0 %v905, 16
      %v1094 = vpop.permute.xlu0 %1093
      %1095 = vrot.lane.b32.xlu0 %v866, 16
      %v1096 = vpop.permute.xlu0 %1095
      %1097 = vrot.lane.b32.xlu0 %v906, 16
      %v1098 = vpop.permute.xlu0 %1097
      %1099 = vrot.lane.b32.xlu0 %v869, 16
      %v1100 = vpop.permute.xlu0 %1099
      %1101 = vrot.lane.b32.xlu0 %v907, 16
      %v1102 = vpop.permute.xlu0 %1101
      %1103 = vrot.lane.b32.xlu0 %v872, 16
      %v1104 = vpop.permute.xlu0 %1103
      %1105 = vrot.lane.b32.xlu0 %v908, 16
      %v1106 = vpop.permute.xlu0 %1105
      %vm1143 = vcmask 64512
      %v1144 = vsel %vm1143, %v800, %v910
      %v1145 = vsel %vm1143, %v712, %v912
      %v1146 = vsel %vm1143, %v801, %v914
      %v1147 = vsel %vm1143, %v715, %v916
      %v1148 = vsel %vm1143, %v802, %v918
      %v1149 = vsel %vm1143, %v718, %v920
      %v1150 = vsel %vm1143, %v803, %v922
      %v1151 = vsel %vm1143, %v721, %v924
      %v1152 = vsel %vm1143, %v804, %v926
      %v1153 = vsel %vm1143, %v724, %v928
      %v1154 = vsel %vm1143, %v805, %v930
      %v1155 = vsel %vm1143, %v727, %v932
      %v1156 = vsel %vm1143, %v806, %v934
      %v1157 = vsel %vm1143, %v730, %v936
      %v1158 = vsel %vm1143, %v807, %v938
      %v1159 = vsel %vm1143, %v733, %v940
      %v1160 = vsel %vm1143, %v808, %v942
      %v1161 = vsel %vm1143, %v736, %v944
      %v1162 = vsel %vm1143, %v809, %v946
      %v1163 = vsel %vm1143, %v739, %v948
      %v1164 = vsel %vm1143, %v810, %v950
      %v1165 = vsel %vm1143, %v742, %v952
      %v1166 = vsel %vm1143, %v811, %v954
      %v1167 = vsel %vm1143, %v745, %v956
      %v1168 = vsel %vm1143, %v812, %v958
      %v1169 = vsel %vm1143, %v748, %v960
      %v1170 = vsel %vm1143, %v813, %v962
      %v1171 = vsel %vm1143, %v751, %v964
      %v1172 = vsel %vm1143, %v814, %v966
      %v1173 = vsel %vm1143, %v754, %v968
      %v1174 = vsel %vm1143, %v815, %v970
      %v1175 = vsel %vm1143, %v757, %v972
      %v1176 = vsel %vm1143, %v816, %v974
      %v1177 = vsel %vm1143, %v760, %v976
      %v1178 = vsel %vm1143, %v817, %v978
      %v1179 = vsel %vm1143, %v763, %v980
      %vm1180 = vcmask 130048
      %v1181 = vsel %vm1180, %v1144, %v1036
      %v1182 = vsel %vm1180, %v1145, %v1038
      %v1183 = vsel %vm1180, %v1146, %v1040
      %v1184 = vsel %vm1180, %v1147, %v1042
      %v1185 = vsel %vm1180, %v1148, %v1044
      %v1186 = vsel %vm1180, %v1149, %v1046
      %v1187 = vsel %vm1180, %v1150, %v1048
      %v1188 = vsel %vm1180, %v1151, %v1050
      %v1189 = vsel %vm1180, %v1152, %v1052
      %v1190 = vsel %vm1180, %v1153, %v1054
      %v1191 = vsel %vm1180, %v1154, %v1056
      %v1192 = vsel %vm1180, %v1155, %v1058
      %v1193 = vsel %vm1180, %v1156, %v1060
      %v1194 = vsel %vm1180, %v1157, %v1062
      %v1195 = vsel %vm1180, %v1158, %v1064
      %v1196 = vsel %vm1180, %v1159, %v1066
      %v1197 = vsel %vm1180, %v1160, %v1068
      %v1198 = vsel %vm1180, %v1161, %v1070
      %v1199 = vsel %vm1180, %v1162, %v1072
      %v1200 = vsel %vm1180, %v1163, %v1074
      %v1201 = vsel %vm1180, %v1164, %v1076
      %v1202 = vsel %vm1180, %v1165, %v1078
      %v1203 = vsel %vm1180, %v1166, %v1080
      %v1204 = vsel %vm1180, %v1167, %v1082
      %v1205 = vsel %vm1180, %v1168, %v1084
      %v1206 = vsel %vm1180, %v1169, %v1086
      %v1207 = vsel %vm1180, %v1170, %v1088
      %v1208 = vsel %vm1180, %v1171, %v1090
      %v1209 = vsel %vm1180, %v1172, %v1092
      %v1210 = vsel %vm1180, %v1173, %v1094
      %v1211 = vsel %vm1180, %v1174, %v1096
      %v1212 = vsel %vm1180, %v1175, %v1098
      %v1213 = vsel %vm1180, %v1176, %v1100
      %v1214 = vsel %vm1180, %v1177, %v1102
      %v1215 = vsel %vm1180, %v1178, %v1104
      %v1216 = vsel %vm1180, %v1179, %v1106
      %v1217 = vld [vmem:[%s5] sm:$0xff]
      %v1218 = vld [vmem:[%s5 + $0x8] sm:$0xff]
      %v1219 = vld [vmem:[%s5 + $0x10] sm:$0xff]
      %s1220 = scalar_lea.vmem %s5, 24
      %v1221 = vld [vmem:[%s1220] sm:$0xff]
      %v1222 = vld [vmem:[%s1220 + $0x8] sm:$0xff]
      %v1223 = vld [vmem:[%s1220 + $0x10] sm:$0xff]
      %vm1224 = vcmask 195584
      %v1226 = vsel %vm1224, %v1183, 0
      %v1229 = vsel %vm1224, %v1184, 0
      %v1232 = vsel %vm1224, %v1185, 0
      %v1235 = vsel %vm1224, %v1186, 0
      %v1238 = vsel %vm1224, %v1187, 0
      %v1241 = vsel %vm1224, %v1188, 0
      %v1244 = vsel %vm1224, %v1189, 0
      %v1247 = vsel %vm1224, %v1190, 0
      %v1250 = vsel %vm1224, %v1191, 0
      %v1253 = vsel %vm1224, %v1192, 0
      %v1256 = vsel %vm1224, %v1193, 0
      %v1259 = vsel %vm1224, %v1194, 0
      %v1262 = vsel %vm1224, %v1195, 0
      %v1265 = vsel %vm1224, %v1196, 0
      %v1268 = vsel %vm1224, %v1197, 0
      %v1271 = vsel %vm1224, %v1198, 0
      %v1274 = vsel %vm1224, %v1199, 0
      %v1277 = vsel %vm1224, %v1200, 0
      %v1280 = vsel %vm1224, %v1201, 0
      %v1283 = vsel %vm1224, %v1202, 0
      %v1286 = vsel %vm1224, %v1203, 0
      %v1289 = vsel %vm1224, %v1204, 0
      %v1292 = vsel %vm1224, %v1205, 0
      %v1295 = vsel %vm1224, %v1206, 0
      %v1298 = vsel %vm1224, %v1207, 0
      %v1301 = vsel %vm1224, %v1208, 0
      %v1304 = vsel %vm1224, %v1209, 0
      %v1307 = vsel %vm1224, %v1210, 0
      %v1310 = vsel %vm1224, %v1211, 0
      %v1313 = vsel %vm1224, %v1212, 0
      %v1316 = vsel %vm1224, %v1213, 0
      %v1319 = vsel %vm1224, %v1214, 0
      %1321 = vmatprep.subr.mxu0 0.0
      %1322 = vmatpush1.msra.mxu0 %v1221
      %1323 = vmatprep.subr.mxu0 0.0
      %1324 = vmatpush1.msra.mxu0 %v1222
      %1325 = vmatprep.subr.mxu0 0.0
      %1326 = vmatpush1.msra.mxu0 %v1223
      %1327 = vmatprep.subr.mxu0 0.0
      %1328 = vmatpush1.msra.mxu0 0.0
      %1329 = vmatprep.subr.mxu0 0.0
      %1330 = vmatpush1.msra.mxu0 0.0
      %1331 = vmatprep.subr.mxu0 0.0
      %1332 = vmatpush1.msra.mxu0 0.0
      %1333 = vmatprep.subr.mxu0 0.0
      %1334 = vmatpush1.msra.mxu0 0.0
      %1335 = vmatprep.subr.mxu0 0.0
      %1336 = vmatpush1.msra.mxu0 0.0
      %1337 = vmatprep.subr.mxu0 0.0
      %1338 = vmatpush1.msra.mxu0 0.0
      %1339 = vmatprep.subr.mxu0 0.0
      %1340 = vmatpush1.msra.mxu0 0.0
      %1341 = vmatprep.subr.mxu0 0.0
      %1342 = vmatpush1.msra.mxu0 0.0
      %1343 = vmatprep.subr.mxu0 0.0
      %1344 = vmatpush1.msra.mxu0 0.0
      %1345 = vmatprep.subr.mxu0 0.0
      %1346 = vmatpush1.msra.mxu0 0.0
      %1347 = vmatprep.subr.mxu0 0.0
      %1348 = vmatpush1.msra.mxu0 0.0
      %1349 = vmatprep.subr.mxu0 0.0
      %1350 = vmatpush1.msra.mxu0 0.0
      %1351 = vmatprep.subr.mxu0 0.0
      %1352 = vmatpush1.msra.mxu0 0.0
      %1353 = vmatprep.subr.mxu0 0.0
      %1354 = vmatpush1.msra.mxu0 0.0
      %1355 = vmatprep.subr.mxu0 0.0
      %1356 = vmatpush1.msra.mxu0 0.0
      %1357 = vmatprep.subr.mxu0 0.0
      %1358 = vmatpush1.msra.mxu0 0.0
      %1359 = vmatprep.subr.mxu0 0.0
      %1360 = vmatpush1.msra.mxu0 0.0
      %1361 = vmatprep.subr.mxu0 0.0
      %1362 = vmatpush1.msra.mxu0 0.0
      %1363 = vmatprep.subr.mxu0 0.0
      %1364 = vmatpush1.msra.mxu0 0.0
      %1365 = vmatprep.subr.mxu0 0.0
      %1366 = vmatpush1.msra.mxu0 0.0
      %1367 = vmatprep.subr.mxu0 0.0
      %1368 = vmatpush1.msra.mxu0 0.0
      %1369 = vmatprep.subr.mxu0 0.0
      %1370 = vmatpush1.msra.mxu0 0.0
      %1371 = vmatprep.subr.mxu0 0.0
      %1372 = vmatpush1.msra.mxu0 0.0
      %1373 = vmatprep.subr.mxu0 0.0
      %1374 = vmatpush1.msra.mxu0 0.0
      %1375 = vmatprep.subr.mxu0 0.0
      %1376 = vmatpush1.msra.mxu0 0.0
      %1377 = vmatprep.subr.mxu0 0.0
      %1378 = vmatpush1.msra.mxu0 0.0
      %1379 = vmatprep.subr.mxu0 0.0
      %1380 = vmatpush1.msra.mxu0 0.0
      %1381 = vmatprep.subr.mxu0 0.0
      %1382 = vmatpush1.msra.mxu0 0.0
      %1383 = vmatprep.subr.mxu0 0.0
      %1384 = vmatpush1.msra.mxu0 0.0
      %1385 = vmatprep.mubr.f32.mxu0 0.0
      %1386 = vmatmul.mubr.f32.gmra.mrb[0].mxu0 %v1226
      %v1387 = vpop.f32.mrb[0].mxu0
      %v1388 = vadd.f32 0.0, %v1387
      %v1389 = vpop.f32.mrb[0].mxu0
      %1390 = vmatprep.mubr.f32.mxu0 0.0
      %1391 = vmatmul.mubr.f32.gmra.mrb[0].mxu0 %v1229
      %v1392 = vpop.f32.mrb[0].mxu0
      %v1393 = vadd.f32 0.0, %v1392
      %v1394 = vpop.f32.mrb[0].mxu0
      %1395 = vmatprep.mubr.f32.mxu0 0.0
      %1396 = vmatmul.mubr.f32.gmra.mrb[0].mxu0 %v1232
      %v1397 = vpop.f32.mrb[0].mxu0
      %v1398 = vadd.f32 0.0, %v1397
      %v1399 = vpop.f32.mrb[0].mxu0
      %1400 = vmatprep.mubr.f32.mxu0 0.0
      %1401 = vmatmul.mubr.f32.gmra.mrb[0].mxu0 %v1235
      %v1402 = vpop.f32.mrb[0].mxu0
      %v1403 = vadd.f32 0.0, %v1402
      %v1404 = vpop.f32.mrb[0].mxu0
      %1405 = vmatprep.mubr.f32.mxu0 0.0
      %1406 = vmatmul.mubr.f32.gmra.mrb[0].mxu0 %v1238
      %v1407 = vpop.f32.mrb[0].mxu0
      %v1408 = vadd.f32 0.0, %v1407
      %v1409 = vpop.f32.mrb[0].mxu0
      %1410 = vmatprep.mubr.f32.mxu0 0.0
      %1411 = vmatmul.mubr.f32.gmra.mrb[0].mxu0 %v1241
      %v1412 = vpop.f32.mrb[0].mxu0
      %v1413 = vadd.f32 0.0, %v1412
      %v1414 = vpop.f32.mrb[0].mxu0
      %1415 = vmatprep.mubr.f32.mxu0 0.0
      %1416 = vmatmul.mubr.f32.gmra.mrb[0].mxu0 %v1244
      %v1417 = vpop.f32.mrb[0].mxu0
      %v1418 = vadd.f32 0.0, %v1417
      %v1419 = vpop.f32.mrb[0].mxu0
      %1420 = vmatprep.mubr.f32.mxu0 0.0
      %1421 = vmatmul.mubr.f32.gmra.mrb[0].mxu0 %v1247
      %v1422 = vpop.f32.mrb[0].mxu0
      %v1423 = vadd.f32 0.0, %v1422
      %v1424 = vpop.f32.mrb[0].mxu0
      %1425 = vmatprep.mubr.f32.mxu0 0.0
      %1426 = vmatmul.mubr.f32.gmra.mrb[0].mxu0 %v1250
      %v1427 = vpop.f32.mrb[0].mxu0
      %v1428 = vadd.f32 0.0, %v1427
      %v1429 = vpop.f32.mrb[0].mxu0
      %1430 = vmatprep.mubr.f32.mxu0 0.0
      %1431 = vmatmul.mubr.f32.gmra.mrb[0].mxu0 %v1253
      %v1432 = vpop.f32.mrb[0].mxu0
      %v1433 = vadd.f32 0.0, %v1432
      %v1434 = vpop.f32.mrb[0].mxu0
      %1435 = vmatprep.mubr.f32.mxu0 0.0
      %1436 = vmatmul.mubr.f32.gmra.mrb[0].mxu0 %v1256
      %v1437 = vpop.f32.mrb[0].mxu0
      %v1438 = vadd.f32 0.0, %v1437
      %v1439 = vpop.f32.mrb[0].mxu0
      %1440 = vmatprep.mubr.f32.mxu0 0.0
      %1441 = vmatmul.mubr.f32.gmra.mrb[0].mxu0 %v1259
      %v1442 = vpop.f32.mrb[0].mxu0
      %v1443 = vadd.f32 0.0, %v1442
      %v1444 = vpop.f32.mrb[0].mxu0
      %1445 = vmatprep.mubr.f32.mxu0 0.0
      %1446 = vmatmul.mubr.f32.gmra.mrb[0].mxu0 %v1262
      %v1447 = vpop.f32.mrb[0].mxu0
      %v1448 = vadd.f32 0.0, %v1447
      %v1449 = vpop.f32.mrb[0].mxu0
      %1450 = vmatprep.mubr.f32.mxu0 0.0
      %1451 = vmatmul.mubr.f32.gmra.mrb[0].mxu0 %v1265
      %v1452 = vpop.f32.mrb[0].mxu0
      %v1453 = vadd.f32 0.0, %v1452
      %v1454 = vpop.f32.mrb[0].mxu0
      %1455 = vmatprep.mubr.f32.mxu0 0.0
      %1456 = vmatmul.mubr.f32.gmra.mrb[0].mxu0 %v1268
      %v1457 = vpop.f32.mrb[0].mxu0
      %v1458 = vadd.f32 0.0, %v1457
      %v1459 = vpop.f32.mrb[0].mxu0
      %1460 = vmatprep.mubr.f32.mxu0 0.0
      %1461 = vmatmul.mubr.f32.gmra.mrb[0].mxu0 %v1271
      %v1462 = vpop.f32.mrb[0].mxu0
      %v1463 = vadd.f32 0.0, %v1462
      %v1464 = vpop.f32.mrb[0].mxu0
      %1465 = vmatprep.mubr.f32.mxu0 0.0
      %1466 = vmatmul.mubr.f32.gmra.mrb[0].mxu0 %v1274
      %v1467 = vpop.f32.mrb[0].mxu0
      %v1468 = vadd.f32 0.0, %v1467
      %v1469 = vpop.f32.mrb[0].mxu0
      %1470 = vmatprep.mubr.f32.mxu0 0.0
      %1471 = vmatmul.mubr.f32.gmra.mrb[0].mxu0 %v1277
      %v1472 = vpop.f32.mrb[0].mxu0
      %v1473 = vadd.f32 0.0, %v1472
      %v1474 = vpop.f32.mrb[0].mxu0
      %1475 = vmatprep.mubr.f32.mxu0 0.0
      %1476 = vmatmul.mubr.f32.gmra.mrb[0].mxu0 %v1280
      %v1477 = vpop.f32.mrb[0].mxu0
      %v1478 = vadd.f32 0.0, %v1477
      %v1479 = vpop.f32.mrb[0].mxu0
      %1480 = vmatprep.mubr.f32.mxu0 0.0
      %1481 = vmatmul.mubr.f32.gmra.mrb[0].mxu0 %v1283
      %v1482 = vpop.f32.mrb[0].mxu0
      %v1483 = vadd.f32 0.0, %v1482
      %v1484 = vpop.f32.mrb[0].mxu0
      %1485 = vmatprep.mubr.f32.mxu0 0.0
      %1486 = vmatmul.mubr.f32.gmra.mrb[0].mxu0 %v1286
      %v1487 = vpop.f32.mrb[0].mxu0
      %v1488 = vadd.f32 0.0, %v1487
      %v1489 = vpop.f32.mrb[0].mxu0
      %1490 = vmatprep.mubr.f32.mxu0 0.0
      %1491 = vmatmul.mubr.f32.gmra.mrb[0].mxu0 %v1289
      %v1492 = vpop.f32.mrb[0].mxu0
      %v1493 = vadd.f32 0.0, %v1492
      %v1494 = vpop.f32.mrb[0].mxu0
      %1495 = vmatprep.mubr.f32.mxu0 0.0
      %1496 = vmatmul.mubr.f32.gmra.mrb[0].mxu0 %v1292
      %v1497 = vpop.f32.mrb[0].mxu0
      %v1498 = vadd.f32 0.0, %v1497
      %v1499 = vpop.f32.mrb[0].mxu0
      %1500 = vmatprep.mubr.f32.mxu0 0.0
      %1501 = vmatmul.mubr.f32.gmra.mrb[0].mxu0 %v1295
      %v1502 = vpop.f32.mrb[0].mxu0
      %v1503 = vadd.f32 0.0, %v1502
      %v1504 = vpop.f32.mrb[0].mxu0
      %1505 = vmatprep.mubr.f32.mxu0 0.0
      %1506 = vmatmul.mubr.f32.gmra.mrb[0].mxu0 %v1298
      %v1507 = vpop.f32.mrb[0].mxu0
      %v1508 = vadd.f32 0.0, %v1507
      %v1509 = vpop.f32.mrb[0].mxu0
      %1510 = vmatprep.mubr.f32.mxu0 0.0
      %1511 = vmatmul.mubr.f32.gmra.mrb[0].mxu0 %v1301
      %v1512 = vpop.f32.mrb[0].mxu0
      %v1513 = vadd.f32 0.0, %v1512
      %v1514 = vpop.f32.mrb[0].mxu0
      %1515 = vmatprep.mubr.f32.mxu0 0.0
      %1516 = vmatmul.mubr.f32.gmra.mrb[0].mxu0 %v1304
      %v1517 = vpop.f32.mrb[0].mxu0
      %v1518 = vadd.f32 0.0, %v1517
      %v1519 = vpop.f32.mrb[0].mxu0
      %1520 = vmatprep.mubr.f32.mxu0 0.0
      %1521 = vmatmul.mubr.f32.gmra.mrb[0].mxu0 %v1307
      %v1522 = vpop.f32.mrb[0].mxu0
      %v1523 = vadd.f32 0.0, %v1522
      %v1524 = vpop.f32.mrb[0].mxu0
      %1525 = vmatprep.mubr.f32.mxu0 0.0
      %1526 = vmatmul.mubr.f32.gmra.mrb[0].mxu0 %v1310
      %v1527 = vpop.f32.mrb[0].mxu0
      %v1528 = vadd.f32 0.0, %v1527
      %v1529 = vpop.f32.mrb[0].mxu0
      %1530 = vmatprep.mubr.f32.mxu0 0.0
      %1531 = vmatmul.mubr.f32.gmra.mrb[0].mxu0 %v1313
      %v1532 = vpop.f32.mrb[0].mxu0
      %v1533 = vadd.f32 0.0, %v1532
      %v1534 = vpop.f32.mrb[0].mxu0
      %1535 = vmatprep.mubr.f32.mxu0 0.0
      %1536 = vmatmul.mubr.f32.gmra.mrb[0].mxu0 %v1316
      %v1537 = vpop.f32.mrb[0].mxu0
      %v1538 = vadd.f32 0.0, %v1537
      %v1539 = vpop.f32.mrb[0].mxu0
      %1540 = vmatprep.mubr.f32.mxu0 0.0
      %1541 = vmatmul.mubr.f32.gmra.mrb[0].mxu0 %v1319
      %v1542 = vpop.f32.mrb[0].mxu0
      %v1543 = vadd.f32 0.0, %v1542
      %v1544 = vpop.f32.mrb[0].mxu0
      %1545 = vdwg.mxu0
      %v1547 = vsel %vm1224, %v1181, 0
      %v1550 = vsel %vm1224, %v1182, 0
      %1552 = vmatprep.subr.mxu0 0.0
      %1553 = vmatpush1.msra.mxu0 %v1217
      %1554 = vmatprep.subr.mxu0 0.0
      %1555 = vmatpush1.msra.mxu0 %v1218
      %1556 = vmatprep.subr.mxu0 0.0
      %1557 = vmatpush1.msra.mxu0 %v1219
      %1558 = vmatprep.subr.mxu0 0.0
      %1559 = vmatpush1.msra.mxu0 0.0
      %1560 = vmatprep.subr.mxu0 0.0
      %1561 = vmatpush1.msra.mxu0 0.0
      %1562 = vmatprep.subr.mxu0 0.0
      %1563 = vmatpush1.msra.mxu0 0.0
      %1564 = vmatprep.subr.mxu0 0.0
      %1565 = vmatpush1.msra.mxu0 0.0
      %1566 = vmatprep.subr.mxu0 0.0
      %1567 = vmatpush1.msra.mxu0 0.0
      %1568 = vmatprep.subr.mxu0 0.0
      %1569 = vmatpush1.msra.mxu0 0.0
      %1570 = vmatprep.subr.mxu0 0.0
      %1571 = vmatpush1.msra.mxu0 0.0
      %1572 = vmatprep.subr.mxu0 0.0
      %1573 = vmatpush1.msra.mxu0 0.0
      %1574 = vmatprep.subr.mxu0 0.0
      %1575 = vmatpush1.msra.mxu0 0.0
      %1576 = vmatprep.subr.mxu0 0.0
      %1577 = vmatpush1.msra.mxu0 0.0
      %1578 = vmatprep.subr.mxu0 0.0
      %1579 = vmatpush1.msra.mxu0 0.0
      %1580 = vmatprep.subr.mxu0 0.0
      %1581 = vmatpush1.msra.mxu0 0.0
      %1582 = vmatprep.subr.mxu0 0.0
      %1583 = vmatpush1.msra.mxu0 0.0
      %1584 = vmatprep.subr.mxu0 0.0
      %1585 = vmatpush1.msra.mxu0 0.0
      %1586 = vmatprep.subr.mxu0 0.0
      %1587 = vmatpush1.msra.mxu0 0.0
      %1588 = vmatprep.subr.mxu0 0.0
      %1589 = vmatpush1.msra.mxu0 0.0
      %1590 = vmatprep.subr.mxu0 0.0
      %1591 = vmatpush1.msra.mxu0 0.0
      %1592 = vmatprep.subr.mxu0 0.0
      %1593 = vmatpush1.msra.mxu0 0.0
      %1594 = vmatprep.subr.mxu0 0.0
      %1595 = vmatpush1.msra.mxu0 0.0
      %1596 = vmatprep.subr.mxu0 0.0
      %1597 = vmatpush1.msra.mxu0 0.0
      %1598 = vmatprep.subr.mxu0 0.0
      %1599 = vmatpush1.msra.mxu0 0.0
      %1600 = vmatprep.subr.mxu0 0.0
      %1601 = vmatpush1.msra.mxu0 0.0
      %1602 = vmatprep.subr.mxu0 0.0
      %1603 = vmatpush1.msra.mxu0 0.0
      %1604 = vmatprep.subr.mxu0 0.0
      %1605 = vmatpush1.msra.mxu0 0.0
      %1606 = vmatprep.subr.mxu0 0.0
      %1607 = vmatpush1.msra.mxu0 0.0
      %1608 = vmatprep.subr.mxu0 0.0
      %1609 = vmatpush1.msra.mxu0 0.0
      %1610 = vmatprep.subr.mxu0 0.0
      %1611 = vmatpush1.msra.mxu0 0.0
      %1612 = vmatprep.subr.mxu0 0.0
      %1613 = vmatpush1.msra.mxu0 0.0
      %1614 = vmatprep.subr.mxu0 0.0
      %1615 = vmatpush1.msra.mxu0 0.0
      %1616 = vmatprep.mubr.f32.mxu0 0.0
      %1617 = vmatmul.mubr.f32.gmra.mrb[0].mxu0 %v1547
      %v1618 = vpop.f32.mrb[0].mxu0
      %v1619 = vadd.f32 %v1388, %v1618
      %v1620 = vpop.f32.mrb[0].mxu0
      %1621 = vmatprep.mubr.f32.mxu0 0.0
      %1622 = vmatmul.mubr.f32.gmra.mrb[0].mxu0 %v1550
      %v1623 = vpop.f32.mrb[0].mxu0
      %v1624 = vadd.f32 %v1393, %v1623
      %v1625 = vpop.f32.mrb[0].mxu0
      %1626 = vmatprep.mubr.f32.mxu0 0.0
      %1627 = vmatmul.mubr.f32.gmra.mrb[0].mxu0 %v1226
      %v1628 = vpop.f32.mrb[0].mxu0
      %v1629 = vadd.f32 %v1398, %v1628
      %v1630 = vpop.f32.mrb[0].mxu0
      %1631 = vmatprep.mubr.f32.mxu0 0.0
      %1632 = vmatmul.mubr.f32.gmra.mrb[0].mxu0 %v1229
      %v1633 = vpop.f32.mrb[0].mxu0
      %v1634 = vadd.f32 %v1403, %v1633
      %v1635 = vpop.f32.mrb[0].mxu0
      %1636 = vmatprep.mubr.f32.mxu0 0.0
      %1637 = vmatmul.mubr.f32.gmra.mrb[0].mxu0 %v1232
      %v1638 = vpop.f32.mrb[0].mxu0
      %v1639 = vadd.f32 %v1408, %v1638
      %v1640 = vpop.f32.mrb[0].mxu0
      %1641 = vmatprep.mubr.f32.mxu0 0.0
      %1642 = vmatmul.mubr.f32.gmra.mrb[0].mxu0 %v1235
      %v1643 = vpop.f32.mrb[0].mxu0
      %v1644 = vadd.f32 %v1413, %v1643
      %v1645 = vpop.f32.mrb[0].mxu0
      %1646 = vmatprep.mubr.f32.mxu0 0.0
      %1647 = vmatmul.mubr.f32.gmra.mrb[0].mxu0 %v1238
      %v1648 = vpop.f32.mrb[0].mxu0
      %v1649 = vadd.f32 %v1418, %v1648
      %v1650 = vpop.f32.mrb[0].mxu0
      %1651 = vmatprep.mubr.f32.mxu0 0.0
      %1652 = vmatmul.mubr.f32.gmra.mrb[0].mxu0 %v1241
      %v1653 = vpop.f32.mrb[0].mxu0
      %v1654 = vadd.f32 %v1423, %v1653
      %v1655 = vpop.f32.mrb[0].mxu0
      %1656 = vmatprep.mubr.f32.mxu0 0.0
      %1657 = vmatmul.mubr.f32.gmra.mrb[0].mxu0 %v1244
      %v1658 = vpop.f32.mrb[0].mxu0
      %v1659 = vadd.f32 %v1428, %v1658
      %v1660 = vpop.f32.mrb[0].mxu0
      %1661 = vmatprep.mubr.f32.mxu0 0.0
      %1662 = vmatmul.mubr.f32.gmra.mrb[0].mxu0 %v1247
      %v1663 = vpop.f32.mrb[0].mxu0
      %v1664 = vadd.f32 %v1433, %v1663
      %v1665 = vpop.f32.mrb[0].mxu0
      %1666 = vmatprep.mubr.f32.mxu0 0.0
      %1667 = vmatmul.mubr.f32.gmra.mrb[0].mxu0 %v1250
      %v1668 = vpop.f32.mrb[0].mxu0
      %v1669 = vadd.f32 %v1438, %v1668
      %v1670 = vpop.f32.mrb[0].mxu0
      %1671 = vmatprep.mubr.f32.mxu0 0.0
      %1672 = vmatmul.mubr.f32.gmra.mrb[0].mxu0 %v1253
      %v1673 = vpop.f32.mrb[0].mxu0
      %v1674 = vadd.f32 %v1443, %v1673
      %v1675 = vpop.f32.mrb[0].mxu0
      %1676 = vmatprep.mubr.f32.mxu0 0.0
      %1677 = vmatmul.mubr.f32.gmra.mrb[0].mxu0 %v1256
      %v1678 = vpop.f32.mrb[0].mxu0
      %v1679 = vadd.f32 %v1448, %v1678
      %v1680 = vpop.f32.mrb[0].mxu0
      %1681 = vmatprep.mubr.f32.mxu0 0.0
      %1682 = vmatmul.mubr.f32.gmra.mrb[0].mxu0 %v1259
      %v1683 = vpop.f32.mrb[0].mxu0
      %v1684 = vadd.f32 %v1453, %v1683
      %v1685 = vpop.f32.mrb[0].mxu0
      %1686 = vmatprep.mubr.f32.mxu0 0.0
      %1687 = vmatmul.mubr.f32.gmra.mrb[0].mxu0 %v1262
      %v1688 = vpop.f32.mrb[0].mxu0
      %v1689 = vadd.f32 %v1458, %v1688
      %v1690 = vpop.f32.mrb[0].mxu0
      %1691 = vmatprep.mubr.f32.mxu0 0.0
      %1692 = vmatmul.mubr.f32.gmra.mrb[0].mxu0 %v1265
      %v1693 = vpop.f32.mrb[0].mxu0
      %v1694 = vadd.f32 %v1463, %v1693
      %v1695 = vpop.f32.mrb[0].mxu0
      %1696 = vmatprep.mubr.f32.mxu0 0.0
      %1697 = vmatmul.mubr.f32.gmra.mrb[0].mxu0 %v1268
      %v1698 = vpop.f32.mrb[0].mxu0
      %v1699 = vadd.f32 %v1468, %v1698
      %v1700 = vpop.f32.mrb[0].mxu0
      %1701 = vmatprep.mubr.f32.mxu0 0.0
      %1702 = vmatmul.mubr.f32.gmra.mrb[0].mxu0 %v1271
      %v1703 = vpop.f32.mrb[0].mxu0
      %v1704 = vadd.f32 %v1473, %v1703
      %v1705 = vpop.f32.mrb[0].mxu0
      %1706 = vmatprep.mubr.f32.mxu0 0.0
      %1707 = vmatmul.mubr.f32.gmra.mrb[0].mxu0 %v1274
      %v1708 = vpop.f32.mrb[0].mxu0
      %v1709 = vadd.f32 %v1478, %v1708
      %v1710 = vpop.f32.mrb[0].mxu0
      %1711 = vmatprep.mubr.f32.mxu0 0.0
      %1712 = vmatmul.mubr.f32.gmra.mrb[0].mxu0 %v1277
      %v1713 = vpop.f32.mrb[0].mxu0
      %v1714 = vadd.f32 %v1483, %v1713
      %v1715 = vpop.f32.mrb[0].mxu0
      %1716 = vmatprep.mubr.f32.mxu0 0.0
      %1717 = vmatmul.mubr.f32.gmra.mrb[0].mxu0 %v1280
      %v1718 = vpop.f32.mrb[0].mxu0
      %v1719 = vadd.f32 %v1488, %v1718
      %v1720 = vpop.f32.mrb[0].mxu0
      %1721 = vmatprep.mubr.f32.mxu0 0.0
      %1722 = vmatmul.mubr.f32.gmra.mrb[0].mxu0 %v1283
      %v1723 = vpop.f32.mrb[0].mxu0
      %v1724 = vadd.f32 %v1493, %v1723
      %v1725 = vpop.f32.mrb[0].mxu0
      %1726 = vmatprep.mubr.f32.mxu0 0.0
      %1727 = vmatmul.mubr.f32.gmra.mrb[0].mxu0 %v1286
      %v1728 = vpop.f32.mrb[0].mxu0
      %v1729 = vadd.f32 %v1498, %v1728
      %v1730 = vpop.f32.mrb[0].mxu0
      %1731 = vmatprep.mubr.f32.mxu0 0.0
      %1732 = vmatmul.mubr.f32.gmra.mrb[0].mxu0 %v1289
      %v1733 = vpop.f32.mrb[0].mxu0
      %v1734 = vadd.f32 %v1503, %v1733
      %v1735 = vpop.f32.mrb[0].mxu0
      %1736 = vmatprep.mubr.f32.mxu0 0.0
      %1737 = vmatmul.mubr.f32.gmra.mrb[0].mxu0 %v1292
      %v1738 = vpop.f32.mrb[0].mxu0
      %v1739 = vadd.f32 %v1508, %v1738
      %v1740 = vpop.f32.mrb[0].mxu0
      %1741 = vmatprep.mubr.f32.mxu0 0.0
      %1742 = vmatmul.mubr.f32.gmra.mrb[0].mxu0 %v1295
      %v1743 = vpop.f32.mrb[0].mxu0
      %v1744 = vadd.f32 %v1513, %v1743
      %v1745 = vpop.f32.mrb[0].mxu0
      %1746 = vmatprep.mubr.f32.mxu0 0.0
      %1747 = vmatmul.mubr.f32.gmra.mrb[0].mxu0 %v1298
      %v1748 = vpop.f32.mrb[0].mxu0
      %v1749 = vadd.f32 %v1518, %v1748
      %v1750 = vpop.f32.mrb[0].mxu0
      %1751 = vmatprep.mubr.f32.mxu0 0.0
      %1752 = vmatmul.mubr.f32.gmra.mrb[0].mxu0 %v1301
      %v1753 = vpop.f32.mrb[0].mxu0
      %v1754 = vadd.f32 %v1523, %v1753
      %v1755 = vpop.f32.mrb[0].mxu0
      %1756 = vmatprep.mubr.f32.mxu0 0.0
      %1757 = vmatmul.mubr.f32.gmra.mrb[0].mxu0 %v1304
      %v1758 = vpop.f32.mrb[0].mxu0
      %v1759 = vadd.f32 %v1528, %v1758
      %v1760 = vpop.f32.mrb[0].mxu0
      %1761 = vmatprep.mubr.f32.mxu0 0.0
      %1762 = vmatmul.mubr.f32.gmra.mrb[0].mxu0 %v1307
      %v1763 = vpop.f32.mrb[0].mxu0
      %v1764 = vadd.f32 %v1533, %v1763
      %v1765 = vpop.f32.mrb[0].mxu0
      %1766 = vmatprep.mubr.f32.mxu0 0.0
      %1767 = vmatmul.mubr.f32.gmra.mrb[0].mxu0 %v1310
      %v1768 = vpop.f32.mrb[0].mxu0
      %v1769 = vadd.f32 %v1538, %v1768
      %v1770 = vpop.f32.mrb[0].mxu0
      %1771 = vmatprep.mubr.f32.mxu0 0.0
      %1772 = vmatmul.mubr.f32.gmra.mrb[0].mxu0 %v1313
      %v1773 = vpop.f32.mrb[0].mxu0
      %v1774 = vadd.f32 %v1543, %v1773
      %v1775 = vpop.f32.mrb[0].mxu0
      %1776 = vdwg.mxu0
      %s1777 = scalar_lea.vmem %s5, 48
      %v1778 = vld [vmem:[%s1777] sm:$0xff]
      %v1779 = vld [vmem:[%s1777 + $0x8] sm:$0xff]
      %v1780 = vld [vmem:[%s1777 + $0x10] sm:$0xff]
      %v1782 = vsel %vm1224, %v1215, 0
      %v1785 = vsel %vm1224, %v1216, 0
      %1787 = vmatprep.subr.mxu0 0.0
      %1788 = vmatpush1.msra.mxu0 %v1778
      %1789 = vmatprep.subr.mxu0 0.0
      %1790 = vmatpush1.msra.mxu0 %v1779
      %1791 = vmatprep.subr.mxu0 0.0
      %1792 = vmatpush1.msra.mxu0 %v1780
      %1793 = vmatprep.subr.mxu0 0.0
      %1794 = vmatpush1.msra.mxu0 0.0
      %1795 = vmatprep.subr.mxu0 0.0
      %1796 = vmatpush1.msra.mxu0 0.0
      %1797 = vmatprep.subr.mxu0 0.0
      %1798 = vmatpush1.msra.mxu0 0.0
      %1799 = vmatprep.subr.mxu0 0.0
      %1800 = vmatpush1.msra.mxu0 0.0
      %1801 = vmatprep.subr.mxu0 0.0
      %1802 = vmatpush1.msra.mxu0 0.0
      %1803 = vmatprep.subr.mxu0 0.0
      %1804 = vmatpush1.msra.mxu0 0.0
      %1805 = vmatprep.subr.mxu0 0.0
      %1806 = vmatpush1.msra.mxu0 0.0
      %1807 = vmatprep.subr.mxu0 0.0
      %1808 = vmatpush1.msra.mxu0 0.0
      %1809 = vmatprep.subr.mxu0 0.0
      %1810 = vmatpush1.msra.mxu0 0.0
      %1811 = vmatprep.subr.mxu0 0.0
      %1812 = vmatpush1.msra.mxu0 0.0
      %1813 = vmatprep.subr.mxu0 0.0
      %1814 = vmatpush1.msra.mxu0 0.0
      %1815 = vmatprep.subr.mxu0 0.0
      %1816 = vmatpush1.msra.mxu0 0.0
      %1817 = vmatprep.subr.mxu0 0.0
      %1818 = vmatpush1.msra.mxu0 0.0
      %1819 = vmatprep.subr.mxu0 0.0
      %1820 = vmatpush1.msra.mxu0 0.0
      %1821 = vmatprep.subr.mxu0 0.0
      %1822 = vmatpush1.msra.mxu0 0.0
      %1823 = vmatprep.subr.mxu0 0.0
      %1824 = vmatpush1.msra.mxu0 0.0
      %1825 = vmatprep.subr.mxu0 0.0
      %1826 = vmatpush1.msra.mxu0 0.0
      %1827 = vmatprep.subr.mxu0 0.0
      %1828 = vmatpush1.msra.mxu0 0.0
      %1829 = vmatprep.subr.mxu0 0.0
      %1830 = vmatpush1.msra.mxu0 0.0
      %1831 = vmatprep.subr.mxu0 0.0
      %1832 = vmatpush1.msra.mxu0 0.0
      %1833 = vmatprep.subr.mxu0 0.0
      %1834 = vmatpush1.msra.mxu0 0.0
      %1835 = vmatprep.subr.mxu0 0.0
      %1836 = vmatpush1.msra.mxu0 0.0
      %1837 = vmatprep.subr.mxu0 0.0
      %1838 = vmatpush1.msra.mxu0 0.0
      %1839 = vmatprep.subr.mxu0 0.0
      %1840 = vmatpush1.msra.mxu0 0.0
      %1841 = vmatprep.subr.mxu0 0.0
      %1842 = vmatpush1.msra.mxu0 0.0
      %1843 = vmatprep.subr.mxu0 0.0
      %1844 = vmatpush1.msra.mxu0 0.0
      %1845 = vmatprep.subr.mxu0 0.0
      %1846 = vmatpush1.msra.mxu0 0.0
      %1847 = vmatprep.subr.mxu0 0.0
      %1848 = vmatpush1.msra.mxu0 0.0
      %1849 = vmatprep.subr.mxu0 0.0
      %1850 = vmatpush1.msra.mxu0 0.0
      %1851 = vmatprep.mubr.f32.mxu0 0.0
      %1852 = vmatmul.mubr.f32.gmra.mrb[0].mxu0 %v1232
      %v1853 = vpop.f32.mrb[0].mxu0
      %v1854 = vadd.f32 0.0, %v1853
      %v1855 = vpop.f32.mrb[0].mxu0
      %1856 = vmatprep.mubr.f32.mxu0 0.0
      %1857 = vmatmul.mubr.f32.gmra.mrb[0].mxu0 %v1235
      %v1858 = vpop.f32.mrb[0].mxu0
      %v1859 = vadd.f32 0.0, %v1858
      %v1860 = vpop.f32.mrb[0].mxu0
      %1861 = vmatprep.mubr.f32.mxu0 0.0
      %1862 = vmatmul.mubr.f32.gmra.mrb[0].mxu0 %v1238
      %v1863 = vpop.f32.mrb[0].mxu0
      %v1864 = vadd.f32 0.0, %v1863
      %v1865 = vpop.f32.mrb[0].mxu0
      %1866 = vmatprep.mubr.f32.mxu0 0.0
      %1867 = vmatmul.mubr.f32.gmra.mrb[0].mxu0 %v1241
      %v1868 = vpop.f32.mrb[0].mxu0
      %v1869 = vadd.f32 0.0, %v1868
      %v1870 = vpop.f32.mrb[0].mxu0
      %1871 = vmatprep.mubr.f32.mxu0 0.0
      %1872 = vmatmul.mubr.f32.gmra.mrb[0].mxu0 %v1244
      %v1873 = vpop.f32.mrb[0].mxu0
      %v1874 = vadd.f32 0.0, %v1873
      %v1875 = vpop.f32.mrb[0].mxu0
      %1876 = vmatprep.mubr.f32.mxu0 0.0
      %1877 = vmatmul.mubr.f32.gmra.mrb[0].mxu0 %v1247
      %v1878 = vpop.f32.mrb[0].mxu0
      %v1879 = vadd.f32 0.0, %v1878
      %v1880 = vpop.f32.mrb[0].mxu0
      %1881 = vmatprep.mubr.f32.mxu0 0.0
      %1882 = vmatmul.mubr.f32.gmra.mrb[0].mxu0 %v1250
      %v1883 = vpop.f32.mrb[0].mxu0
      %v1884 = vadd.f32 0.0, %v1883
      %v1885 = vpop.f32.mrb[0].mxu0
      %1886 = vmatprep.mubr.f32.mxu0 0.0
      %1887 = vmatmul.mubr.f32.gmra.mrb[0].mxu0 %v1253
      %v1888 = vpop.f32.mrb[0].mxu0
      %v1889 = vadd.f32 0.0, %v1888
      %v1890 = vpop.f32.mrb[0].mxu0
      %1891 = vmatprep.mubr.f32.mxu0 0.0
      %1892 = vmatmul.mubr.f32.gmra.mrb[0].mxu0 %v1256
      %v1893 = vpop.f32.mrb[0].mxu0
      %v1894 = vadd.f32 0.0, %v1893
      %v1895 = vpop.f32.mrb[0].mxu0
      %1896 = vmatprep.mubr.f32.mxu0 0.0
      %1897 = vmatmul.mubr.f32.gmra.mrb[0].mxu0 %v1259
      %v1898 = vpop.f32.mrb[0].mxu0
      %v1899 = vadd.f32 0.0, %v1898
      %v1900 = vpop.f32.mrb[0].mxu0
      %1901 = vmatprep.mubr.f32.mxu0 0.0
      %1902 = vmatmul.mubr.f32.gmra.mrb[0].mxu0 %v1262
      %v1903 = vpop.f32.mrb[0].mxu0
      %v1904 = vadd.f32 0.0, %v1903
      %v1905 = vpop.f32.mrb[0].mxu0
      %1906 = vmatprep.mubr.f32.mxu0 0.0
      %1907 = vmatmul.mubr.f32.gmra.mrb[0].mxu0 %v1265
      %v1908 = vpop.f32.mrb[0].mxu0
      %v1909 = vadd.f32 0.0, %v1908
      %v1910 = vpop.f32.mrb[0].mxu0
      %1911 = vmatprep.mubr.f32.mxu0 0.0
      %1912 = vmatmul.mubr.f32.gmra.mrb[0].mxu0 %v1268
      %v1913 = vpop.f32.mrb[0].mxu0
      %v1914 = vadd.f32 0.0, %v1913
      %v1915 = vpop.f32.mrb[0].mxu0
      %1916 = vmatprep.mubr.f32.mxu0 0.0
      %1917 = vmatmul.mubr.f32.gmra.mrb[0].mxu0 %v1271
      %v1918 = vpop.f32.mrb[0].mxu0
      %v1919 = vadd.f32 0.0, %v1918
      %v1920 = vpop.f32.mrb[0].mxu0
      %1921 = vmatprep.mubr.f32.mxu0 0.0
      %1922 = vmatmul.mubr.f32.gmra.mrb[0].mxu0 %v1274
      %v1923 = vpop.f32.mrb[0].mxu0
      %v1924 = vadd.f32 0.0, %v1923
      %v1925 = vpop.f32.mrb[0].mxu0
      %1926 = vmatprep.mubr.f32.mxu0 0.0
      %1927 = vmatmul.mubr.f32.gmra.mrb[0].mxu0 %v1277
      %v1928 = vpop.f32.mrb[0].mxu0
      %v1929 = vadd.f32 0.0, %v1928
      %v1930 = vpop.f32.mrb[0].mxu0
      %1931 = vmatprep.mubr.f32.mxu0 0.0
      %1932 = vmatmul.mubr.f32.gmra.mrb[0].mxu0 %v1280
      %v1933 = vpop.f32.mrb[0].mxu0
      %v1934 = vadd.f32 0.0, %v1933
      %v1935 = vpop.f32.mrb[0].mxu0
      %1936 = vmatprep.mubr.f32.mxu0 0.0
      %1937 = vmatmul.mubr.f32.gmra.mrb[0].mxu0 %v1283
      %v1938 = vpop.f32.mrb[0].mxu0
      %v1939 = vadd.f32 0.0, %v1938
      %v1940 = vpop.f32.mrb[0].mxu0
      %1941 = vmatprep.mubr.f32.mxu0 0.0
      %1942 = vmatmul.mubr.f32.gmra.mrb[0].mxu0 %v1286
      %v1943 = vpop.f32.mrb[0].mxu0
      %v1944 = vadd.f32 0.0, %v1943
      %v1945 = vpop.f32.mrb[0].mxu0
      %1946 = vmatprep.mubr.f32.mxu0 0.0
      %1947 = vmatmul.mubr.f32.gmra.mrb[0].mxu0 %v1289
      %v1948 = vpop.f32.mrb[0].mxu0
      %v1949 = vadd.f32 0.0, %v1948
      %v1950 = vpop.f32.mrb[0].mxu0
      %1951 = vmatprep.mubr.f32.mxu0 0.0
      %1952 = vmatmul.mubr.f32.gmra.mrb[0].mxu0 %v1292
      %v1953 = vpop.f32.mrb[0].mxu0
      %v1954 = vadd.f32 0.0, %v1953
      %v1955 = vpop.f32.mrb[0].mxu0
      %1956 = vmatprep.mubr.f32.mxu0 0.0
      %1957 = vmatmul.mubr.f32.gmra.mrb[0].mxu0 %v1295
      %v1958 = vpop.f32.mrb[0].mxu0
      %v1959 = vadd.f32 0.0, %v1958
      %v1960 = vpop.f32.mrb[0].mxu0
      %1961 = vmatprep.mubr.f32.mxu0 0.0
      %1962 = vmatmul.mubr.f32.gmra.mrb[0].mxu0 %v1298
      %v1963 = vpop.f32.mrb[0].mxu0
      %v1964 = vadd.f32 0.0, %v1963
      %v1965 = vpop.f32.mrb[0].mxu0
      %1966 = vmatprep.mubr.f32.mxu0 0.0
      %1967 = vmatmul.mubr.f32.gmra.mrb[0].mxu0 %v1301
      %v1968 = vpop.f32.mrb[0].mxu0
      %v1969 = vadd.f32 0.0, %v1968
      %v1970 = vpop.f32.mrb[0].mxu0
      %1971 = vmatprep.mubr.f32.mxu0 0.0
      %1972 = vmatmul.mubr.f32.gmra.mrb[0].mxu0 %v1304
      %v1973 = vpop.f32.mrb[0].mxu0
      %v1974 = vadd.f32 0.0, %v1973
      %v1975 = vpop.f32.mrb[0].mxu0
      %1976 = vmatprep.mubr.f32.mxu0 0.0
      %1977 = vmatmul.mubr.f32.gmra.mrb[0].mxu0 %v1307
      %v1978 = vpop.f32.mrb[0].mxu0
      %v1979 = vadd.f32 0.0, %v1978
      %v1980 = vpop.f32.mrb[0].mxu0
      %1981 = vmatprep.mubr.f32.mxu0 0.0
      %1982 = vmatmul.mubr.f32.gmra.mrb[0].mxu0 %v1310
      %v1983 = vpop.f32.mrb[0].mxu0
      %v1984 = vadd.f32 0.0, %v1983
      %v1985 = vpop.f32.mrb[0].mxu0
      %1986 = vmatprep.mubr.f32.mxu0 0.0
      %1987 = vmatmul.mubr.f32.gmra.mrb[0].mxu0 %v1313
      %v1988 = vpop.f32.mrb[0].mxu0
      %v1989 = vadd.f32 0.0, %v1988
      %v1990 = vpop.f32.mrb[0].mxu0
      %1991 = vmatprep.mubr.f32.mxu0 0.0
      %1992 = vmatmul.mubr.f32.gmra.mrb[0].mxu0 %v1316
      %v1993 = vpop.f32.mrb[0].mxu0
      %v1994 = vadd.f32 0.0, %v1993
      %v1995 = vpop.f32.mrb[0].mxu0
      %1996 = vmatprep.mubr.f32.mxu0 0.0
      %1997 = vmatmul.mubr.f32.gmra.mrb[0].mxu0 %v1319
      %v1998 = vpop.f32.mrb[0].mxu0
      %v1999 = vadd.f32 0.0, %v1998
      %v2000 = vpop.f32.mrb[0].mxu0
      %2001 = vmatprep.mubr.f32.mxu0 0.0
      %2002 = vmatmul.mubr.f32.gmra.mrb[0].mxu0 %v1782
      %v2003 = vpop.f32.mrb[0].mxu0
      %v2004 = vadd.f32 0.0, %v2003
      %v2005 = vpop.f32.mrb[0].mxu0
      %2006 = vmatprep.mubr.f32.mxu0 0.0
      %2007 = vmatmul.mubr.f32.gmra.mrb[0].mxu0 %v1785
      %v2008 = vpop.f32.mrb[0].mxu0
      %v2009 = vadd.f32 0.0, %v2008
      %v2010 = vpop.f32.mrb[0].mxu0
      %2011 = vdwg.mxu0
      %v2012 = vadd.f32 %v1619, %v1854
      %v2013 = vadd.f32 %v1624, %v1859
      %v2014 = vadd.f32 %v1629, %v1864
      %v2015 = vadd.f32 %v1634, %v1869
      %v2016 = vadd.f32 %v1639, %v1874
      %v2017 = vadd.f32 %v1644, %v1879
      %v2018 = vadd.f32 %v1649, %v1884
      %v2019 = vadd.f32 %v1654, %v1889
      %v2020 = vadd.f32 %v1659, %v1894
      %v2021 = vadd.f32 %v1664, %v1899
      %v2022 = vadd.f32 %v1669, %v1904
      %v2023 = vadd.f32 %v1674, %v1909
      %v2024 = vadd.f32 %v1679, %v1914
      %v2025 = vadd.f32 %v1684, %v1919
      %v2026 = vadd.f32 %v1689, %v1924
      %v2027 = vadd.f32 %v1694, %v1929
      %v2028 = vadd.f32 %v1699, %v1934
      %v2029 = vadd.f32 %v1704, %v1939
      %v2030 = vadd.f32 %v1709, %v1944
      %v2031 = vadd.f32 %v1714, %v1949
      %v2032 = vadd.f32 %v1719, %v1954
      %v2033 = vadd.f32 %v1724, %v1959
      %v2034 = vadd.f32 %v1729, %v1964
      %v2035 = vadd.f32 %v1734, %v1969
      %v2036 = vadd.f32 %v1739, %v1974
      %v2037 = vadd.f32 %v1744, %v1979
      %v2038 = vadd.f32 %v1749, %v1984
      %v2039 = vadd.f32 %v1754, %v1989
      %v2040 = vadd.f32 %v1759, %v1994
      %v2041 = vadd.f32 %v1764, %v1999
      %v2042 = vadd.f32 %v1769, %v2004
      %v2043 = vadd.f32 %v1774, %v2009
      %2044 = vst.msk [vmem:[%s493] sm:$0xff] %vm1143, %v2012
      %2045 = vst.msk [vmem:[%s493 + $0x8] sm:$0xff] %vm1143, %v2013
      %2046 = vst.msk [vmem:[%s493 + $0x10] sm:$0xff] %vm1143, %v2014
      %2047 = vst.msk [vmem:[%s493 + $0x18] sm:$0xff] %vm1143, %v2015
      %2048 = vst.msk [vmem:[%s493 + $0x20] sm:$0xff] %vm1143, %v2016
      %2049 = vst.msk [vmem:[%s493 + $0x28] sm:$0xff] %vm1143, %v2017
      %2050 = vst.msk [vmem:[%s493 + $0x30] sm:$0xff] %vm1143, %v2018
      %2051 = vst.msk [vmem:[%s493 + $0x38] sm:$0xff] %vm1143, %v2019
      %2052 = vst.msk [vmem:[%s493 + $0x40] sm:$0xff] %vm1143, %v2020
      %2053 = vst.msk [vmem:[%s493 + $0x48] sm:$0xff] %vm1143, %v2021
      %2054 = vst.msk [vmem:[%s493 + $0x50] sm:$0xff] %vm1143, %v2022
      %2055 = vst.msk [vmem:[%s493 + $0x58] sm:$0xff] %vm1143, %v2023
      %2056 = vst.msk [vmem:[%s493 + $0x60] sm:$0xff] %vm1143, %v2024
      %2057 = vst.msk [vmem:[%s493 + $0x68] sm:$0xff] %vm1143, %v2025
      %2058 = vst.msk [vmem:[%s493 + $0x70] sm:$0xff] %vm1143, %v2026
      %2059 = vst.msk [vmem:[%s493 + $0x78] sm:$0xff] %vm1143, %v2027
      %2060 = vst.msk [vmem:[%s493 + $0x80] sm:$0xff] %vm1143, %v2028
      %2061 = vst.msk [vmem:[%s493 + $0x88] sm:$0xff] %vm1143, %v2029
      %2062 = vst.msk [vmem:[%s493 + $0x90] sm:$0xff] %vm1143, %v2030
      %2063 = vst.msk [vmem:[%s493 + $0x98] sm:$0xff] %vm1143, %v2031
      %2064 = vst.msk [vmem:[%s493 + $0xa0] sm:$0xff] %vm1143, %v2032
      %2065 = vst.msk [vmem:[%s493 + $0xa8] sm:$0xff] %vm1143, %v2033
      %2066 = vst.msk [vmem:[%s493 + $0xb0] sm:$0xff] %vm1143, %v2034
      %2067 = vst.msk [vmem:[%s493 + $0xb8] sm:$0xff] %vm1143, %v2035
      %2068 = vst.msk [vmem:[%s493 + $0xc0] sm:$0xff] %vm1143, %v2036
      %2069 = vst.msk [vmem:[%s493 + $0xc8] sm:$0xff] %vm1143, %v2037
      %2070 = vst.msk [vmem:[%s493 + $0xd0] sm:$0xff] %vm1143, %v2038
      %2071 = vst.msk [vmem:[%s493 + $0xd8] sm:$0xff] %vm1143, %v2039
      %2072 = vst.msk [vmem:[%s493 + $0xe0] sm:$0xff] %vm1143, %v2040
      %2073 = vst.msk [vmem:[%s493 + $0xe8] sm:$0xff] %vm1143, %v2041
      %2074 = vst.msk [vmem:[%s493 + $0xf0] sm:$0xff] %vm1143, %v2042
      %2075 = vst.msk [vmem:[%s493 + $0xf8] sm:$0xff] %vm1143, %v2043
      %v2076 = vsel %vm1143, %v2012, 0.0
      %v2077 = vsel %vm1143, %v2013, 0.0
      %v2078 = vadd.f32 %v2076, %v2077
      %v2079 = vsel %vm1143, %v2014, 0.0
      %v2080 = vadd.f32 %v2078, %v2079
      %v2081 = vsel %vm1143, %v2015, 0.0
      %v2082 = vadd.f32 %v2080, %v2081
      %v2083 = vsel %vm1143, %v2016, 0.0
      %v2084 = vadd.f32 %v2082, %v2083
      %v2085 = vsel %vm1143, %v2017, 0.0
      %v2086 = vadd.f32 %v2084, %v2085
      %v2087 = vsel %vm1143, %v2018, 0.0
      %v2088 = vadd.f32 %v2086, %v2087
      %v2089 = vsel %vm1143, %v2019, 0.0
      %v2090 = vadd.f32 %v2088, %v2089
      %v2091 = vsel %vm1143, %v2020, 0.0
      %v2092 = vadd.f32 %v2090, %v2091
      %v2093 = vsel %vm1143, %v2021, 0.0
      %v2094 = vadd.f32 %v2092, %v2093
      %v2095 = vsel %vm1143, %v2022, 0.0
      %v2096 = vadd.f32 %v2094, %v2095
      %v2097 = vsel %vm1143, %v2023, 0.0
      %v2098 = vadd.f32 %v2096, %v2097
      %v2099 = vsel %vm1143, %v2024, 0.0
      %v2100 = vadd.f32 %v2098, %v2099
      %v2101 = vsel %vm1143, %v2025, 0.0
      %v2102 = vadd.f32 %v2100, %v2101
      %v2103 = vsel %vm1143, %v2026, 0.0
      %v2104 = vadd.f32 %v2102, %v2103
      %v2105 = vsel %vm1143, %v2027, 0.0
      %v2106 = vadd.f32 %v2104, %v2105
      %v2107 = vsel %vm1143, %v2028, 0.0
      %v2108 = vadd.f32 %v2106, %v2107
      %v2109 = vsel %vm1143, %v2029, 0.0
      %v2110 = vadd.f32 %v2108, %v2109
      %v2111 = vsel %vm1143, %v2030, 0.0
      %v2112 = vadd.f32 %v2110, %v2111
      %v2113 = vsel %vm1143, %v2031, 0.0
      %v2114 = vadd.f32 %v2112, %v2113
      %v2115 = vsel %vm1143, %v2032, 0.0
      %v2116 = vadd.f32 %v2114, %v2115
      %v2117 = vsel %vm1143, %v2033, 0.0
      %v2118 = vadd.f32 %v2116, %v2117
      %v2119 = vsel %vm1143, %v2034, 0.0
      %v2120 = vadd.f32 %v2118, %v2119
      %v2121 = vsel %vm1143, %v2035, 0.0
      %v2122 = vadd.f32 %v2120, %v2121
      %v2123 = vsel %vm1143, %v2036, 0.0
      %v2124 = vadd.f32 %v2122, %v2123
      %v2125 = vsel %vm1143, %v2037, 0.0
      %v2126 = vadd.f32 %v2124, %v2125
      %v2127 = vsel %vm1143, %v2038, 0.0
      %v2128 = vadd.f32 %v2126, %v2127
      %v2129 = vsel %vm1143, %v2039, 0.0
      %v2130 = vadd.f32 %v2128, %v2129
      %v2131 = vsel %vm1143, %v2040, 0.0
      %v2132 = vadd.f32 %v2130, %v2131
      %v2133 = vsel %vm1143, %v2041, 0.0
      %v2134 = vadd.f32 %v2132, %v2133
      %v2135 = vsel %vm1143, %v2042, 0.0
      %v2136 = vadd.f32 %v2134, %v2135
      %v2137 = vsel %vm1143, %v2043, 0.0
      %v2138 = vadd.f32 %v2136, %v2137
      %v2139 = vrot.slane %v2138, 4
      %v2140 = vadd.f32 %v2138, %v2139
      %v2141 = vrot.slane %v2140, 2
      %v2142 = vadd.f32 %v2140, %v2141
      %v2143 = vrot.slane %v2142, 1
      %v2144 = vadd.f32 %v2142, %v2143
      %vm2145 = vcmask 57344
      %2146 = vst.msk [vmem:[%s500] sm:$0x1] %vm2145, %v2144
      %v2147 = vmul.f32 %v2012, %v2012
      %v2148 = vmul.f32 %v2013, %v2013
      %v2149 = vmul.f32 %v2014, %v2014
      %v2150 = vmul.f32 %v2015, %v2015
      %v2151 = vmul.f32 %v2016, %v2016
      %v2152 = vmul.f32 %v2017, %v2017
      %v2153 = vmul.f32 %v2018, %v2018
      %v2154 = vmul.f32 %v2019, %v2019
      %v2155 = vmul.f32 %v2020, %v2020
      %v2156 = vmul.f32 %v2021, %v2021
      %v2157 = vmul.f32 %v2022, %v2022
      %v2158 = vmul.f32 %v2023, %v2023
      %v2159 = vmul.f32 %v2024, %v2024
      %v2160 = vmul.f32 %v2025, %v2025
      %v2161 = vmul.f32 %v2026, %v2026
      %v2162 = vmul.f32 %v2027, %v2027
      %v2163 = vmul.f32 %v2028, %v2028
      %v2164 = vmul.f32 %v2029, %v2029
      %v2165 = vmul.f32 %v2030, %v2030
      %v2166 = vmul.f32 %v2031, %v2031
      %v2167 = vmul.f32 %v2032, %v2032
      %v2168 = vmul.f32 %v2033, %v2033
      %v2169 = vmul.f32 %v2034, %v2034
      %v2170 = vmul.f32 %v2035, %v2035
      %v2171 = vmul.f32 %v2036, %v2036
      %v2172 = vmul.f32 %v2037, %v2037
      %v2173 = vmul.f32 %v2038, %v2038
      %v2174 = vmul.f32 %v2039, %v2039
      %v2175 = vmul.f32 %v2040, %v2040
      %v2176 = vmul.f32 %v2041, %v2041
      %v2177 = vmul.f32 %v2042, %v2042
      %v2178 = vmul.f32 %v2043, %v2043
      %v2179 = vsel %vm1143, %v2147, 0.0
      %v2180 = vsel %vm1143, %v2148, 0.0
      %v2181 = vadd.f32 %v2179, %v2180
      %v2182 = vsel %vm1143, %v2149, 0.0
      %v2183 = vadd.f32 %v2181, %v2182
      %v2184 = vsel %vm1143, %v2150, 0.0
      %v2185 = vadd.f32 %v2183, %v2184
      %v2186 = vsel %vm1143, %v2151, 0.0
      %v2187 = vadd.f32 %v2185, %v2186
      %v2188 = vsel %vm1143, %v2152, 0.0
      %v2189 = vadd.f32 %v2187, %v2188
      %v2190 = vsel %vm1143, %v2153, 0.0
      %v2191 = vadd.f32 %v2189, %v2190
      %v2192 = vsel %vm1143, %v2154, 0.0
      %v2193 = vadd.f32 %v2191, %v2192
      %v2194 = vsel %vm1143, %v2155, 0.0
      %v2195 = vadd.f32 %v2193, %v2194
      %v2196 = vsel %vm1143, %v2156, 0.0
      %v2197 = vadd.f32 %v2195, %v2196
      %v2198 = vsel %vm1143, %v2157, 0.0
      %v2199 = vadd.f32 %v2197, %v2198
      %v2200 = vsel %vm1143, %v2158, 0.0
      %v2201 = vadd.f32 %v2199, %v2200
      %v2202 = vsel %vm1143, %v2159, 0.0
      %v2203 = vadd.f32 %v2201, %v2202
      %v2204 = vsel %vm1143, %v2160, 0.0
      %v2205 = vadd.f32 %v2203, %v2204
      %v2206 = vsel %vm1143, %v2161, 0.0
      %v2207 = vadd.f32 %v2205, %v2206
      %v2208 = vsel %vm1143, %v2162, 0.0
      %v2209 = vadd.f32 %v2207, %v2208
      %v2210 = vsel %vm1143, %v2163, 0.0
      %v2211 = vadd.f32 %v2209, %v2210
      %v2212 = vsel %vm1143, %v2164, 0.0
      %v2213 = vadd.f32 %v2211, %v2212
      %v2214 = vsel %vm1143, %v2165, 0.0
      %v2215 = vadd.f32 %v2213, %v2214
      %v2216 = vsel %vm1143, %v2166, 0.0
      %v2217 = vadd.f32 %v2215, %v2216
      %v2218 = vsel %vm1143, %v2167, 0.0
      %v2219 = vadd.f32 %v2217, %v2218
      %v2220 = vsel %vm1143, %v2168, 0.0
      %v2221 = vadd.f32 %v2219, %v2220
      %v2222 = vsel %vm1143, %v2169, 0.0
      %v2223 = vadd.f32 %v2221, %v2222
      %v2224 = vsel %vm1143, %v2170, 0.0
      %v2225 = vadd.f32 %v2223, %v2224
      %v2226 = vsel %vm1143, %v2171, 0.0
      %v2227 = vadd.f32 %v2225, %v2226
      %v2228 = vsel %vm1143, %v2172, 0.0
      %v2229 = vadd.f32 %v2227, %v2228
      %v2230 = vsel %vm1143, %v2173, 0.0
      %v2231 = vadd.f32 %v2229, %v2230
      %v2232 = vsel %vm1143, %v2174, 0.0
      %v2233 = vadd.f32 %v2231, %v2232
      %v2234 = vsel %vm1143, %v2175, 0.0
      %v2235 = vadd.f32 %v2233, %v2234
      %v2236 = vsel %vm1143, %v2176, 0.0
      %v2237 = vadd.f32 %v2235, %v2236
      %v2238 = vsel %vm1143, %v2177, 0.0
      %v2239 = vadd.f32 %v2237, %v2238
      %v2240 = vsel %vm1143, %v2178, 0.0
      %v2241 = vadd.f32 %v2239, %v2240
      %v2242 = vrot.slane %v2241, 4
      %v2243 = vadd.f32 %v2241, %v2242
      %v2244 = vrot.slane %v2243, 2
      %v2245 = vadd.f32 %v2243, %v2244
      %v2246 = vrot.slane %v2245, 1
      %v2247 = vadd.f32 %v2245, %v2246
      %2248 = vst.msk [vmem:[%s506] sm:$0x1] %vm2145, %v2247
      %s2249 = smul.u32 16, %s25
      %p2250 = scmp.lt.s32.totalorder %s24, 1
      %s2251 = scalar_select %p2250, %s24, 1
      %p2252 = scmp.lt.s32.totalorder %s2249, 15
      %s2253 = scalar_select %p2252, %s2249, 15
      %s2254 = smul.addr %s2253, 2
      %s2255 = smul.addr %s2251, 32
      %s2256 = sadd.s32 %s2254, %s2255
      %s2257 = smul.addr %s2256, 8
      %s2258 = scalar_lea.vmem %s6, %s2257
      %p2259 = scmp.lt.s32.totalorder %s24, 1
      %s2260 = scalar_select %p2259, %s24, 1
      %p2261 = scmp.lt.s32.totalorder %s25, 0
      %s2262 = scalar_select %p2261, %s25, 0
      %s2263 = sadd.s32 %s2262, %s2260
      %s2264 = scalar_lea.vmem %s7, %s2263
      %p2265 = scmp.lt.s32.totalorder %s24, 1
      %s2266 = scalar_select %p2265, %s24, 1
      %p2267 = scmp.lt.s32.totalorder %s25, 0
      %s2268 = scalar_select %p2267, %s25, 0
      %s2269 = sadd.s32 %s2268, %s2266
      %s2270 = scalar_lea.vmem %s8, %s2269
      // Predicated region
      $region45: #{double_conv.4} parent=43 // pred_check
        %p2271 = pneg %p215
      $region46: #{double_conv.4} parent=43 // pred_check_branch
        %2273 = sbr.rel (%p2271) target = $region48
      $region47: #{double_conv.4} parent=43 // pred_region
        %s2274 = smul.u32 16, %s25
      $region48: #{double_conv.4} parent=43 // pred_fallthru
        _
      // Predicated region
      $region49: #{double_conv.4} parent=43 // pred_check
        %p2275 = pneg %p243
      $region50: #{double_conv.4} parent=43 // pred_check_branch
        %2277 = sbr.rel (%p2275) target = $region52
      $region51: #{double_conv.4} parent=43 // pred_region
        _
      $region52: #{double_conv.4} parent=43 // pred_fallthru
        _
      // Predicated region
      $region53: #{double_conv.4} parent=43 // pred_check
        %p2278 = pneg %p271
      $region54: #{double_conv.4} parent=43 // pred_check_branch
        %2280 = sbr.rel (%p2278) target = $region56
      $region55: #{double_conv.4} parent=43 // pred_region
        _
      $region56: #{double_conv.4} parent=43 // pred_fallthru
        _
    $region44: #{double_conv.4} parent=5 // pred_fallthru
      _
    %p2281 = scmp.le.s32.totalorder 2, %s15
    // Predicated region
    $region57: #{double_conv.4} parent=5 // pred_check
      %p2282 = pneg %p2281
    $region58: #{double_conv.4} parent=5 // pred_check_branch
      %2284 = sbr.rel (%p2282) target = $region60
    $region59: #{double_conv.4} parent=5 // pred_region
      %s2285 = ssub.s32 %s15, 2
      // Predicated region
      $region61: #{double_conv.4} parent=59 // pred_check
        %p2286 = pneg %p221
      $region62: #{double_conv.4} parent=59 // pred_check_branch
        %2288 = sbr.rel (%p2286) target = $region64
      $region63: #{double_conv.4} parent=59 // pred_region
        %s2289 = smul.u32 16, %s27
        %p2290 = scmp.lt.s32.totalorder %s26, 1
        %s2291 = scalar_select %p2290, %s26, 1
        %p2292 = scmp.lt.s32.totalorder %s2289, 15
        %s2293 = scalar_select %p2292, %s2289, 15
        %s2294 = smul.addr %s2293, 2
        %s2295 = smul.addr %s2291, 32
        %s2296 = sadd.s32 %s2294, %s2295
        %s2297 = smul.addr %s2296, 8
        %s2298 = scalar_lea.vmem %s6, %s2297
      $region64: #{double_conv.4} parent=59 // pred_fallthru
        _
      // Predicated region
      $region65: #{double_conv.4} parent=59 // pred_check
        %p2299 = pneg %p249
      $region66: #{double_conv.4} parent=59 // pred_check_branch
        %2301 = sbr.rel (%p2299) target = $region68
      $region67: #{double_conv.4} parent=59 // pred_region
        %p2302 = scmp.lt.s32.totalorder %s26, 1
        %s2303 = scalar_select %p2302, %s26, 1
        %p2304 = scmp.lt.s32.totalorder %s27, 0
        %s2305 = scalar_select %p2304, %s27, 0
        %s2306 = sadd.s32 %s2305, %s2303
        %s2307 = scalar_lea.vmem %s7, %s2306
      $region68: #{double_conv.4} parent=59 // pred_fallthru
        _
      // Predicated region
      $region69: #{double_conv.4} parent=59 // pred_check
        %p2308 = pneg %p277
      $region70: #{double_conv.4} parent=59 // pred_check_branch
        %2310 = sbr.rel (%p2308) target = $region72
      $region71: #{double_conv.4} parent=59 // pred_region
        %p2311 = scmp.lt.s32.totalorder %s26, 1
        %s2312 = scalar_select %p2311, %s26, 1
        %p2313 = scmp.lt.s32.totalorder %s27, 0
        %s2314 = scalar_select %p2313, %s27, 0
        %s2315 = sadd.s32 %s2314, %s2312
        %s2316 = scalar_lea.vmem %s8, %s2315
      $region72: #{double_conv.4} parent=59 // pred_fallthru
        _
    $region60: #{double_conv.4} parent=5 // pred_fallthru
      _
  $region6: #{double_conv.4} parent=0 // loop_footer
    %s19 = sadd.s32 1, %s15
  $region7: #{double_conv.4} parent=0 // loop_footer_branch
    %14 = sbr.rel target = $region3
  $region8: #{double_conv.4} parent=0 // loop_exit
    _

</llo_original>
